<compile_context>
chip_gen: v6e
topology: v6e:2x2x1
jax: 0.10.0
libtpu: 0.0.40
codegen_flags: <defaults>
</compile_context>

<pallas_src>
import functools

import jax
import jax.numpy as jnp
from jax.experimental import pallas as pl
from jax.experimental.pallas import tpu as pltpu

EXPANSION = 4
BN_EPS = 1e-5
LANE = 128        # TPU lane width; channel dims padded to this
TILE_M = 512      # rows per grid step for the M-tiled 1x1 kernels (mem-bound)


def _ceil_to(x, m):
    return ((x + m - 1) // m) * m


def _row_tiles(M):
    tm = min(TILE_M, M)
    return tm, pl.cdiv(M, tm)


@functools.lru_cache(maxsize=1)
def _vmem_limit_bytes():
    # Generous scoped-VMEM budget on 128 MiB parts (v5e/v6e), ~3/4 of physical on
    # v7x (64 MiB); conservative 32 MiB fallback if the query is unavailable.
    try:
        cap = int(pltpu.get_tpu_info().vmem_capacity_bytes)
        return int(min((cap * 3) // 4, 96 * 1024 * 1024))
    except Exception:  # pragma: no cover - defensive fallback
        return 32 * 1024 * 1024


def _compiler_params(n_axes):
    return pltpu.CompilerParams(
        dimension_semantics=("parallel",) * n_axes,
        vmem_limit_bytes=_vmem_limit_bytes())


# ----------------------------- Pallas kernels ------------------------------ #

def fused_conv1_conv3x3_kernel(x_ref, w1_ref, s1_ref, b1_ref,
                               w2_ref, s2_ref, b2_ref, o_ref,
                               h1x_ref, *, H, W):
    """conv1 (1x1) + BN + ReLU fused with conv2 (3x3, stride=1, pad=1) + BN + ReLU.

    One image per grid step.  The conv1 result is written into a bf16,
    channel-interleaved, column pre-shifted halo scratch:
        h1x[i, w, dx*Cmid + ci] == h1_padded[i, w + dx, ci]
    so every 3x3 row tap (dy) is a contiguous leading-dim slab reshaped into a
    (H*W, 3*Cmid) MXU operand — no per-tap relayout copies, no concat.  Only the
    halo rows / columns are zeroed (re-written every step, so no cross-step
    scratch-persistence assumption is needed).
    """
    cin = x_ref.shape[-1]
    cmid = w1_ref.shape[-1]

    # ---- conv1: (H*W, Cin) @ (Cin, Cmid), bf16 operands, f32 accumulate ----
    x2d = x_ref[0].reshape(H * W, cin)
    h1 = jnp.dot(x2d, w1_ref[...], preferred_element_type=jnp.float32)
    h1 = jnp.maximum(h1 * s1_ref[...] + b1_ref[...], 0.0)
    h1_3d = h1.astype(jnp.bfloat16).reshape(H, W, cmid)

    zrow = jnp.zeros((1, W, 3 * cmid), jnp.bfloat16)
    zcol = jnp.zeros((H, 1, cmid), jnp.bfloat16)
    # top / bottom halo rows
    h1x_ref[0:1] = zrow
    h1x_ref[H + 1:H + 2] = zrow
    # dx = 1 tap block: unshifted, lane-aligned, full width
    h1x_ref[1:H + 1, :, cmid:2 * cmid] = h1_3d
    # dx = 0 tap block: columns shifted right by one; column 0 is the left halo
    h1x_ref[1:H + 1, 0:1, 0:cmid] = zcol
    h1x_ref[1:H + 1, 1:W, 0:cmid] = h1_3d[:, 0:W - 1, :]
    # dx = 2 tap block: columns shifted left by one; column W-1 is the right halo
    h1x_ref[1:H + 1, W - 1:W, 2 * cmid:3 * cmid] = zcol
    h1x_ref[1:H + 1, 0:W - 1, 2 * cmid:3 * cmid] = h1_3d[:, 1:W, :]

    # ---- conv2: 3 matmuls with K = 3*Cmid; accumulate as values (no RMW) ----
    acc = None
    for dy in range(3):
        lhs = h1x_ref[dy:dy + H].reshape(H * W, 3 * cmid)      # contiguous slab
        part = jnp.dot(lhs, w2_ref[dy], preferred_element_type=jnp.float32)
        acc = part if acc is None else acc + part
    y = jnp.maximum(acc * s2_ref[...] + b2_ref[...], 0.0)
    o_ref[0] = y.reshape(H, W, cmid).astype(o_ref.dtype)


def conv3x3_phase_kernel(g_ref, w2_ref, s2_ref, b2_ref, o_ref, *, Ho, Wo):
    """3x3 / stride-2 conv + BN + ReLU on a dx-interleaved, row-parity-split input.

    g_ref[0, py, u, w, dx*Cmid + ci] == h1_padded[2*u + py, 2*w + dx, ci], so each
    row tap dy = 2*ay + py of the strided conv is a contiguous slab
    g_ref[0, py, ay:ay+Ho] reshaped to a (Ho*Wo, 3*Cmid) MXU operand — dense, no
    strided VMEM access, no per-tap relayout copies, no wasted FLOPs.
    """
    cmid = w2_ref.shape[-1]
    acc = None
    for dy in range(3):
        ay, py = dy // 2, dy % 2
        lhs = g_ref[0, py, ay:ay + Ho].reshape(Ho * Wo, 3 * cmid)
        part = jnp.dot(lhs, w2_ref[dy], preferred_element_type=jnp.float32)
        acc = part if acc is None else acc + part
    y = jnp.maximum(acc * s2_ref[...] + b2_ref[...], 0.0)
    o_ref[0] = y.reshape(Ho, Wo, cmid).astype(o_ref.dtype)


def matmul_bn_relu_kernel(x_ref, w_ref, s_ref, b_ref, o_ref):
    # M-tiled 1x1 conv + BN + ReLU (conv1 of the stride-2 path).  bf16 output.
    y = jnp.dot(x_ref[...], w_ref[...], preferred_element_type=jnp.float32)
    o_ref[...] = jnp.maximum(y * s_ref[...] + b_ref[...], 0.0).astype(o_ref.dtype)


def tail_projection_kernel(h_ref, xs_ref, w3_ref, s3_ref, b3_ref,
                           ws_ref, ss_ref, bs_ref, o_ref):
    # residual tail: (h @ w3)*s3+b3 ; shortcut: (xs @ ws)*ss+bs ; relu(sum)
    r = jnp.dot(h_ref[...], w3_ref[...], preferred_element_type=jnp.float32)
    r = r * s3_ref[...] + b3_ref[...]
    s = jnp.dot(xs_ref[...], ws_ref[...], preferred_element_type=jnp.float32)
    s = s * ss_ref[...] + bs_ref[...]
    o_ref[...] = jnp.maximum(r + s, 0.0).astype(o_ref.dtype)


def tail_identity_kernel(h_ref, xs_ref, w3_ref, s3_ref, b3_ref, o_ref):
    # identity shortcut: no projection matmul, just add the (bf16) input tile.
    r = jnp.dot(h_ref[...], w3_ref[...], preferred_element_type=jnp.float32)
    r = r * s3_ref[...] + b3_ref[...]
    o_ref[...] = jnp.maximum(r + xs_ref[...], 0.0).astype(o_ref.dtype)


# ------------------------------ pallas_call glue ---------------------------- #

def _fused_conv1_conv3x3(x_nhwc, w1, s1, b1, w2, s2, b2):
    N, H, W, cin = x_nhwc.shape
    cmid = w1.shape[1]
    kern = functools.partial(fused_conv1_conv3x3_kernel, H=H, W=W)
    return pl.pallas_call(
        kern,
        out_shape=jax.ShapeDtypeStruct((N, H, W, cmid), jnp.bfloat16),
        grid=(N,),
        in_specs=[
            pl.BlockSpec((1, H, W, cin), lambda n: (n, 0, 0, 0)),
            pl.BlockSpec((cin, cmid), lambda n: (0, 0)),          # resident weights
            pl.BlockSpec((1, cmid), lambda n: (0, 0)),
            pl.BlockSpec((1, cmid), lambda n: (0, 0)),
            pl.BlockSpec((3, 3 * cmid, cmid), lambda n: (0, 0, 0)),
            pl.BlockSpec((1, cmid), lambda n: (0, 0)),
            pl.BlockSpec((1, cmid), lambda n: (0, 0)),
        ],
        out_specs=pl.BlockSpec((1, H, W, cmid), lambda n: (n, 0, 0, 0)),
        scratch_shapes=[
            pltpu.VMEM((H + 2, W, 3 * cmid), jnp.bfloat16),   # interleaved halo
        ],
        compiler_params=_compiler_params(1),
    )(x_nhwc, w1, s1, b1, w2, s2, b2)


def _conv3x3_stride2_g(g, w2, s2, b2):
    N, _, Hop1, Wo, c3 = g.shape
    Ho = Hop1 - 1
    cmid = c3 // 3
    kern = functools.partial(conv3x3_phase_kernel, Ho=Ho, Wo=Wo)
    return pl.pallas_call(
        kern,
        out_shape=jax.ShapeDtypeStruct((N, Ho, Wo, cmid), jnp.bfloat16),
        grid=(N,),
        in_specs=[
            pl.BlockSpec((1, 2, Hop1, Wo, c3), lambda n: (n, 0, 0, 0, 0)),
            pl.BlockSpec((3, 3 * cmid, cmid), lambda n: (0, 0, 0)),
            pl.BlockSpec((1, cmid), lambda n: (0, 0)),
            pl.BlockSpec((1, cmid), lambda n: (0, 0)),
        ],
        out_specs=pl.BlockSpec((1, Ho, Wo, cmid), lambda n: (n, 0, 0, 0)),
        compiler_params=_compiler_params(1),
    )(g, w2, s2, b2)


def _pointwise_conv_bn_relu(x2d, w, scale, shift):
    M, cin = x2d.shape
    cout = w.shape[1]
    tm, steps = _row_tiles(M)
    return pl.pallas_call(
        matmul_bn_relu_kernel,
        out_shape=jax.ShapeDtypeStruct((M, cout), jnp.bfloat16),
        grid=(steps,),
        in_specs=[
            pl.BlockSpec((tm, cin), lambda i: (i, 0)),
            pl.BlockSpec((cin, cout), lambda i: (0, 0)),          # resident weights
            pl.BlockSpec((1, cout), lambda i: (0, 0)),
            pl.BlockSpec((1, cout), lambda i: (0, 0)),
        ],
        out_specs=pl.BlockSpec((tm, cout), lambda i: (i, 0)),
        compiler_params=_compiler_params(1),
    )(x2d, w, scale, shift)


def _tail_projection(h2d, xs2d, w3, s3, b3, ws, ss, bs):
    M, cmid = h2d.shape
    cexp = w3.shape[1]
    cin = xs2d.shape[1]
    tm, steps = _row_tiles(M)
    return pl.pallas_call(
        tail_projection_kernel,
        out_shape=jax.ShapeDtypeStruct((M, cexp), jnp.bfloat16),
        grid=(steps,),
        in_specs=[
            pl.BlockSpec((tm, cmid), lambda i: (i, 0)),
            pl.BlockSpec((tm, cin), lambda i: (i, 0)),
            pl.BlockSpec((cmid, cexp), lambda i: (0, 0)),
            pl.BlockSpec((1, cexp), lambda i: (0, 0)),
            pl.BlockSpec((1, cexp), lambda i: (0, 0)),
            pl.BlockSpec((cin, cexp), lambda i: (0, 0)),
            pl.BlockSpec((1, cexp), lambda i: (0, 0)),
            pl.BlockSpec((1, cexp), lambda i: (0, 0)),
        ],
        out_specs=pl.BlockSpec((tm, cexp), lambda i: (i, 0)),
        compiler_params=_compiler_params(1),
    )(h2d, xs2d, w3, s3, b3, ws, ss, bs)


def _tail_identity(h2d, xs2d, w3, s3, b3):
    M, cmid = h2d.shape
    cexp = w3.shape[1]
    tm, steps = _row_tiles(M)
    return pl.pallas_call(
        tail_identity_kernel,
        out_shape=jax.ShapeDtypeStruct((M, cexp), jnp.bfloat16),
        grid=(steps,),
        in_specs=[
            pl.BlockSpec((tm, cmid), lambda i: (i, 0)),
            pl.BlockSpec((tm, cexp), lambda i: (i, 0)),
            pl.BlockSpec((cmid, cexp), lambda i: (0, 0)),
            pl.BlockSpec((1, cexp), lambda i: (0, 0)),
            pl.BlockSpec((1, cexp), lambda i: (0, 0)),
        ],
        out_specs=pl.BlockSpec((tm, cexp), lambda i: (i, 0)),
        compiler_params=_compiler_params(1),
    )(h2d, xs2d, w3, s3, b3)


# ------------------------------ param plumbing ------------------------------ #

def _bn_affine(bn, c_pad):
    gamma, beta, mean, var = bn
    scale = gamma / jnp.sqrt(var + BN_EPS)
    shift = beta - mean * scale
    c = gamma.shape[0]
    scale = jnp.pad(scale, (0, c_pad - c)).reshape(1, c_pad).astype(jnp.float32)
    shift = jnp.pad(shift, (0, c_pad - c)).reshape(1, c_pad).astype(jnp.float32)
    return scale, shift


def _prep_w_1x1(w, cin_p, cout_p):
    # PyTorch OIHW (Cout, Cin, 1, 1) -> (Cin_p, Cout_p) bf16, zero padded.
    cout, cin = w.shape[0], w.shape[1]
    w2d = w.reshape(cout, cin).T
    w2d = jnp.pad(w2d, ((0, cin_p - cin), (0, cout_p - cout)))
    return w2d.astype(jnp.bfloat16)


def _prep_w_3x3(w, cmid_p):
    # PyTorch OIHW (Cout, Cin, 3, 3) -> (3, 3*Cmid_p, Cmid_p) bf16
    # index layout: [dy, dx*Cmid_p + ci, co]  (matches the interleaved scratch / G).
    cout, cin = w.shape[0], w.shape[1]
    w_hwio = jnp.transpose(w, (2, 3, 1, 0))
    w_hwio = jnp.pad(w_hwio, ((0, 0), (0, 0),
                              (0, cmid_p - cin), (0, cmid_p - cout)))
    return w_hwio.reshape(3, 3 * cmid_p, cmid_p).astype(jnp.bfloat16)


# ------------------------------- BottleNeck --------------------------------- #

@functools.partial(jax.jit, static_argnames="stride")
def bottleneck_forward(x_nchw, params, stride=1):
    """Pallas BottleNeck forward. Input/output are NCHW (PyTorch convention)."""
    N, cin, H, W = x_nchw.shape
    cmid = params["w1"].shape[0]
    cexp = cmid * EXPANSION
    cin_p = _ceil_to(cin, LANE)
    cmid_p = _ceil_to(cmid, LANE)
    cexp_p = _ceil_to(cexp, LANE)

    # Single NCHW -> NHWC, lane-padded, bf16 copy of the input (no duplicate f32
    # copy; the identity-shortcut add also uses this bf16 tensor).
    x = jnp.transpose(x_nchw, (0, 2, 3, 1))
    x = jnp.pad(x, ((0, 0), (0, 0), (0, 0), (0, cin_p - cin))).astype(jnp.bfloat16)

    s1, b1 = _bn_affine(params["bn1"], cmid_p)
    s2, b2 = _bn_affine(params["bn2"], cmid_p)
    s3, b3 = _bn_affine(params["bn3"], cexp_p)
    w1 = _prep_w_1x1(params["w1"], cin_p, cmid_p)
    w2 = _prep_w_3x3(params["w2"], cmid_p)
    w3 = _prep_w_1x1(params["w3"], cmid_p, cexp_p)

    if stride == 1:
        # conv1 fused into the 3x3 conv kernel: the intermediate stays in VMEM.
        h2 = _fused_conv1_conv3x3(x, w1, s1, b1, w2, s2, b2)
        Ho, Wo = H, W
    elif stride == 2 and H % 2 == 0 and W % 2 == 0:
        # Strided block: conv1 with the M-tiled pointwise kernel (bf16 HBM
        # round trip), then a dx-interleaved / row-parity-split gather so the
        # stride-2 3x3 conv is 3 dense slab matmuls in the kernel.
        # TODO(synk): fuse conv1 + this gather into the conv kernel as well.
        Ho, Wo = H // 2, W // 2
        h1 = _pointwise_conv_bn_relu(x.reshape(N * H * W, cin_p), w1, s1, b1)
        h1 = h1.reshape(N, H, W, cmid_p)
        h1p = jnp.pad(h1, ((0, 0), (1, 1), (1, 1), (0, 0)))
        # G[n, py, u, w, dx*c + ci] = h1p[n, 2u+py, 2w+dx, ci]
        cols = [h1p[:, :, dx:dx + 2 * Wo:2, :] for dx in range(3)]
        gfull = jnp.concatenate(cols, axis=-1)                 # (N, H+2, Wo, 3c)
        g = jnp.stack([gfull[:, 0::2], gfull[:, 1::2]], axis=1)  # (N,2,Ho+1,Wo,3c)
        h2 = _conv3x3_stride2_g(g, w2, s2, b2)
    else:
        # TODO(synk): non-standard stride / odd spatial sizes fall back to the
        # dense stride-1 conv + wrapper subsample (extra FLOPs); ResNet only
        # uses stride 1/2 on even sizes, which take the optimized paths above.
        h2 = _fused_conv1_conv3x3(x, w1, s1, b1, w2, s2, b2)
        h2 = h2[:, ::stride, ::stride, :]
        Ho, Wo = h2.shape[1], h2.shape[2]

    M = N * Ho * Wo
    h2d = h2.reshape(M, cmid_p)

    if stride == 1 and cin == cexp:
        # identity shortcut: add the bf16 input directly, no projection matmul.
        out = _tail_identity(h2d, x.reshape(M, cexp_p), w3, s3, b3)
    else:
        ws = _prep_w_1x1(params["ws"], cin_p, cexp_p)
        ss, bs = _bn_affine(params["bns"], cexp_p)
        xs = x[:, ::stride, ::stride, :] if stride > 1 else x
        out = _tail_projection(h2d, xs.reshape(M, cin_p), w3, s3, b3, ws, ss, bs)

    out = out.reshape(N, Ho, Wo, cexp_p)[..., :cexp]
    return jnp.transpose(out, (0, 3, 1, 2)).astype(jnp.float32)   # back to NCHW


# ----------------------------- pure-JAX reference --------------------------- #

def _ref_conv(x, w, stride, pad):
    return jax.lax.conv_general_dilated(
        x, w, (stride, stride), [(pad, pad), (pad, pad)],
        dimension_numbers=("NCHW", "OIHW", "NCHW"),
        precision=jax.lax.Precision.HIGHEST)


def _ref_bn(x, bn):
    gamma, beta, mean, var = bn
    s = gamma / jnp.sqrt(var + BN_EPS)
    b = beta - mean * s
    return x * s[None, :, None, None] + b[None, :, None, None]


def bottleneck_reference(x, p, stride=1):
    cin = x.shape[1]
    cexp = p["w1"].shape[0] * EXPANSION
    h = jax.nn.relu(_ref_bn(_ref_conv(x, p["w1"], 1, 0), p["bn1"]))
    h = jax.nn.relu(_ref_bn(_ref_conv(h, p["w2"], stride, 1), p["bn2"]))
    h = _ref_bn(_ref_conv(h, p["w3"], 1, 0), p["bn3"])
    if stride != 1 or cin != cexp:
        sc = _ref_bn(_ref_conv(x, p["ws"], stride, 0), p["bns"])
    else:
        sc = x
    return jax.nn.relu(h + sc)


# ------------------------------- param init --------------------------------- #

def make_params(key, in_channels, out_channels):
    cmid = out_channels
    cexp = out_channels * EXPANSION
    ks = jax.random.split(key, 8)

    def bn(k, c):
        k1, k2, k3, k4 = jax.random.split(k, 4)
        gamma = 1.0 + 0.1 * jax.random.normal(k1, (c,), jnp.float32)
        beta = 0.1 * jax.random.normal(k2, (c,), jnp.float32)
        mean = 0.1 * jax.random.normal(k3, (c,), jnp.float32)
        var = 0.5 + 0.1 * jnp.abs(jax.random.normal(k4, (c,), jnp.float32))
        return (gamma, beta, mean, var)

    return {
        "w1": 0.2 * jax.random.normal(ks[0], (cmid, in_channels, 1, 1), jnp.float32),
        "bn1": bn(ks[1], cmid),
        "w2": 0.2 * jax.random.normal(ks[2], (cmid, cmid, 3, 3), jnp.float32),
        "bn2": bn(ks[3], cmid),
        "w3": 0.2 * jax.random.normal(ks[4], (cexp, cmid, 1, 1), jnp.float32),
        "bn3": bn(ks[5], cexp),
        "ws": 0.2 * jax.random.normal(ks[6], (cexp, in_channels, 1, 1), jnp.float32),
        "bns": bn(ks[7], cexp),
    }


# ---------------------------------- main ------------------------------------ #

if __name__ == "__main__":
    key = jax.random.PRNGKey(0)
    kx, kp, kx2, kp2 = jax.random.split(key, 4)

    N, H, W = 2, 16, 16
    out_channels = 4                      # expansion 4 -> 16 residual channels
    # bf16 MXU operands / bf16 HBM intermediates (f32 accumulation) -> compare
    # vs the f32 reference with a bf16-appropriate tolerance.
    RTOL = ATOL = 5e-2
    ok = True

    # projection-shortcut block (in_channels != out*4), stride 1 and 2
    Cin = 4
    x = jax.random.normal(kx, (N, Cin, H, W), jnp.float32)
    params = make_params(kp, Cin, out_channels)
    for stride in (1, 2):
        y = jax.block_until_ready(bottleneck_forward(x, params, stride=stride))
        y_ref = jax.block_until_ready(bottleneck_reference(x, params, stride=stride))
        if y.shape != y_ref.shape or not jnp.allclose(y, y_ref, rtol=RTOL, atol=ATOL):
            ok = False

    # identity-shortcut block (in_channels == out*4, stride 1)
    Cin2 = out_channels * EXPANSION
    x2 = jax.random.normal(kx2, (N, Cin2, H, W), jnp.float32)
    params2 = make_params(kp2, Cin2, out_channels)
    y2 = jax.block_until_ready(bottleneck_forward(x2, params2, stride=1))
    y2_ref = jax.block_until_ready(bottleneck_reference(x2, params2, stride=1))
    if y2.shape != y2_ref.shape or not jnp.allclose(y2, y2_ref, rtol=RTOL, atol=ATOL):
        ok = False

    print("KERNEL_OK" if ok else "KERNEL_MISMATCH")
</pallas_src>

<mosaic_0001>
module attributes {stable_mosaic.version = 11 : i64} {
  func.func @fused_conv1_conv3x3_kernel(%arg0: i32, %arg1: memref<1x16x16x128xbf16, #tpu.memory_space<vmem>>, %arg2: memref<128x128xbf16, #tpu.memory_space<vmem>>, %arg3: memref<1x128xf32, #tpu.memory_space<vmem>>, %arg4: memref<1x128xf32, #tpu.memory_space<vmem>>, %arg5: memref<3x384x128xbf16, #tpu.memory_space<vmem>>, %arg6: memref<1x128xf32, #tpu.memory_space<vmem>>, %arg7: memref<1x128xf32, #tpu.memory_space<vmem>>, %arg8: memref<1x16x16x128xbf16, #tpu.memory_space<vmem>>, %arg9: memref<18x16x384xbf16, #tpu.memory_space<vmem>>) attributes {dimension_semantics = [#tpu.dimension_semantics<parallel>], iteration_bounds = array<i64: 2>, scalar_prefetch = 0 : i64, scratch_operands = 1 : i64, tpu.core_type = #tpu.core_type<tc>, window_params = [{transform_indices = @transform_0, window_bounds = array<i64: 1, 16, 16, 128>}, {pipeline_mode = #tpu.pipeline_mode<synchronous>, transform_indices = @transform_1, window_bounds = array<i64: 128, 128>}, {pipeline_mode = #tpu.pipeline_mode<synchronous>, transform_indices = @transform_2, window_bounds = array<i64: 1, 128>}, {pipeline_mode = #tpu.pipeline_mode<synchronous>, transform_indices = @transform_3, window_bounds = array<i64: 1, 128>}, {pipeline_mode = #tpu.pipeline_mode<synchronous>, transform_indices = @transform_4, window_bounds = array<i64: 3, 384, 128>}, {pipeline_mode = #tpu.pipeline_mode<synchronous>, transform_indices = @transform_5, window_bounds = array<i64: 1, 128>}, {pipeline_mode = #tpu.pipeline_mode<synchronous>, transform_indices = @transform_6, window_bounds = array<i64: 1, 128>}, {transform_indices = @transform_7, window_bounds = array<i64: 1, 16, 16, 128>}]} {
    %c0 = arith.constant 0 : index
    %c0_0 = arith.constant 0 : index
    %c0_1 = arith.constant 0 : index
    %c0_2 = arith.constant 0 : index
    %0 = vector.load %arg1[%c0, %c0_0, %c0_1, %c0_2] : memref<1x16x16x128xbf16, #tpu.memory_space<vmem>>, vector<1x16x16x128xbf16>
    %1 = vector.shape_cast %0 : vector<1x16x16x128xbf16> to vector<16x16x128xbf16>
    %2 = vector.shape_cast %1 : vector<16x16x128xbf16> to vector<256x128xbf16>
    %c0_3 = arith.constant 0 : index
    %c0_4 = arith.constant 0 : index
    %3 = vector.load %arg2[%c0_3, %c0_4] : memref<128x128xbf16, #tpu.memory_space<vmem>>, vector<128x128xbf16>
    %cst = arith.constant dense<0.000000e+00> : vector<256x128xf32>
    %4 = tpu.matmul %2, %3, %cst {dimension_numbers = #tpu.dot_dimension_numbers<[1], [0], [0], [1], [0, 0, 1, 1], [], []>} : vector<256x128xbf16>, vector<128x128xbf16>, vector<256x128xf32> -> vector<256x128xf32>
    %c0_5 = arith.constant 0 : index
    %c0_6 = arith.constant 0 : index
    %5 = vector.load %arg3[%c0_5, %c0_6] : memref<1x128xf32, #tpu.memory_space<vmem>>, vector<1x128xf32>
    %6 = vector.broadcast %5 : vector<1x128xf32> to vector<256x128xf32>
    %7 = arith.mulf %4, %6 : vector<256x128xf32>
    %c0_7 = arith.constant 0 : index
    %c0_8 = arith.constant 0 : index
    %8 = vector.load %arg4[%c0_7, %c0_8] : memref<1x128xf32, #tpu.memory_space<vmem>>, vector<1x128xf32>
    %9 = vector.broadcast %8 : vector<1x128xf32> to vector<256x128xf32>
    %10 = arith.addf %7, %9 : vector<256x128xf32>
    %cst_9 = arith.constant 0.000000e+00 : f32
    %11 = vector.broadcast %cst_9 : f32 to vector<256x128xf32>
    %12 = arith.maximumf %10, %11 : vector<256x128xf32>
    %13 = arith.truncf %12 : vector<256x128xf32> to vector<256x128xbf16>
    %14 = vector.shape_cast %13 : vector<256x128xbf16> to vector<16x16x128xbf16>
    %cst_10 = arith.constant 0.000000e+00 : bf16
    %15 = vector.broadcast %cst_10 : bf16 to vector<1x16x384xbf16>
    %cst_11 = arith.constant 0.000000e+00 : bf16
    %16 = vector.broadcast %cst_11 : bf16 to vector<16x1x128xbf16>
    %c0_12 = arith.constant 0 : index
    %c0_13 = arith.constant 0 : index
    %c0_14 = arith.constant 0 : index
    %17 = vector.load %arg9[%c0_12, %c0_13, %c0_14] : memref<18x16x384xbf16, #tpu.memory_space<vmem>>, vector<1x16x384xbf16>
    tpu.vector_store %arg9[%c0_12, %c0_13, %c0_14], %15 {strides = array<i32>} : memref<18x16x384xbf16, #tpu.memory_space<vmem>>, vector<1x16x384xbf16>,
    %c17 = arith.constant 17 : index
    %c0_15 = arith.constant 0 : index
    %c0_16 = arith.constant 0 : index
    %18 = vector.load %arg9[%c17, %c0_15, %c0_16] : memref<18x16x384xbf16, #tpu.memory_space<vmem>>, vector<1x16x384xbf16>
    tpu.vector_store %arg9[%c17, %c0_15, %c0_16], %15 {strides = array<i32>} : memref<18x16x384xbf16, #tpu.memory_space<vmem>>, vector<1x16x384xbf16>,
    %c1 = arith.constant 1 : index
    %c0_17 = arith.constant 0 : index
    %c128 = arith.constant 128 : index
    %19 = vector.load %arg9[%c1, %c0_17, %c128] : memref<18x16x384xbf16, #tpu.memory_space<vmem>>, vector<16x16x128xbf16>
    tpu.vector_store %arg9[%c1, %c0_17, %c128], %14 {strides = array<i32>} : memref<18x16x384xbf16, #tpu.memory_space<vmem>>, vector<16x16x128xbf16>,
    %c1_18 = arith.constant 1 : index
    %c0_19 = arith.constant 0 : index
    %c0_20 = arith.constant 0 : index
    %20 = vector.load %arg9[%c1_18, %c0_19, %c0_20] : memref<18x16x384xbf16, #tpu.memory_space<vmem>>, vector<16x1x128xbf16>
    tpu.vector_store %arg9[%c1_18, %c0_19, %c0_20], %16 {strides = array<i32>} : memref<18x16x384xbf16, #tpu.memory_space<vmem>>, vector<16x1x128xbf16>,
    %21 = vector.extract_strided_slice %14 {offsets = [0, 0, 0], sizes = [16, 15, 128], strides = [1, 1, 1]} : vector<16x16x128xbf16> to vector<16x15x128xbf16>
    %c1_21 = arith.constant 1 : index
    %c1_22 = arith.constant 1 : index
    %c0_23 = arith.constant 0 : index
    %22 = vector.load %arg9[%c1_21, %c1_22, %c0_23] : memref<18x16x384xbf16, #tpu.memory_space<vmem>>, vector<16x15x128xbf16>
    tpu.vector_store %arg9[%c1_21, %c1_22, %c0_23], %21 {strides = array<i32>} : memref<18x16x384xbf16, #tpu.memory_space<vmem>>, vector<16x15x128xbf16>,
    %c1_24 = arith.constant 1 : index
    %c15 = arith.constant 15 : index
    %c256 = arith.constant 256 : index
    %23 = vector.load %arg9[%c1_24, %c15, %c256] : memref<18x16x384xbf16, #tpu.memory_space<vmem>>, vector<16x1x128xbf16>
    tpu.vector_store %arg9[%c1_24, %c15, %c256], %16 {strides = array<i32>} : memref<18x16x384xbf16, #tpu.memory_space<vmem>>, vector<16x1x128xbf16>,
    %24 = vector.extract_strided_slice %14 {offsets = [0, 1, 0], sizes = [16, 15, 128], strides = [1, 1, 1]} : vector<16x16x128xbf16> to vector<16x15x128xbf16>
    %c1_25 = arith.constant 1 : index
    %c0_26 = arith.constant 0 : index
    %c256_27 = arith.constant 256 : index
    %25 = vector.load %arg9[%c1_25, %c0_26, %c256_27] : memref<18x16x384xbf16, #tpu.memory_space<vmem>>, vector<16x15x128xbf16>
    tpu.vector_store %arg9[%c1_25, %c0_26, %c256_27], %24 {strides = array<i32>} : memref<18x16x384xbf16, #tpu.memory_space<vmem>>, vector<16x15x128xbf16>,
    %c0_28 = arith.constant 0 : index
    %c0_29 = arith.constant 0 : index
    %c0_30 = arith.constant 0 : index
    %26 = vector.load %arg9[%c0_28, %c0_29, %c0_30] : memref<18x16x384xbf16, #tpu.memory_space<vmem>>, vector<16x16x384xbf16>
    %27 = vector.shape_cast %26 : vector<16x16x384xbf16> to vector<256x384xbf16>
    %c0_31 = arith.constant 0 : index
    %c0_32 = arith.constant 0 : index
    %c0_33 = arith.constant 0 : index
    %28 = vector.load %arg5[%c0_31, %c0_32, %c0_33] : memref<3x384x128xbf16, #tpu.memory_space<vmem>>, vector<1x384x128xbf16>
    %29 = vector.shape_cast %28 : vector<1x384x128xbf16> to vector<384x128xbf16>
    %cst_34 = arith.constant dense<0.000000e+00> : vector<256x128xf32>
    %30 = tpu.matmul %27, %29, %cst_34 {dimension_numbers = #tpu.dot_dimension_numbers<[1], [0], [0], [1], [0, 0, 1, 1], [], []>} : vector<256x384xbf16>, vector<384x128xbf16>, vector<256x128xf32> -> vector<256x128xf32>
    %c1_35 = arith.constant 1 : index
    %c0_36 = arith.constant 0 : index
    %c0_37 = arith.constant 0 : index
    %31 = vector.load %arg9[%c1_35, %c0_36, %c0_37] : memref<18x16x384xbf16, #tpu.memory_space<vmem>>, vector<16x16x384xbf16>
    %32 = vector.shape_cast %31 : vector<16x16x384xbf16> to vector<256x384xbf16>
    %c1_38 = arith.constant 1 : index
    %c0_39 = arith.constant 0 : index
    %c0_40 = arith.constant 0 : index
    %33 = vector.load %arg5[%c1_38, %c0_39, %c0_40] : memref<3x384x128xbf16, #tpu.memory_space<vmem>>, vector<1x384x128xbf16>
    %34 = vector.shape_cast %33 : vector<1x384x128xbf16> to vector<384x128xbf16>
    %cst_41 = arith.constant dense<0.000000e+00> : vector<256x128xf32>
    %35 = tpu.matmul %32, %34, %cst_41 {dimension_numbers = #tpu.dot_dimension_numbers<[1], [0], [0], [1], [0, 0, 1, 1], [], []>} : vector<256x384xbf16>, vector<384x128xbf16>, vector<256x128xf32> -> vector<256x128xf32>
    %36 = arith.addf %30, %35 : vector<256x128xf32>
    %c2 = arith.constant 2 : index
    %c0_42 = arith.constant 0 : index
    %c0_43 = arith.constant 0 : index
    %37 = vector.load %arg9[%c2, %c0_42, %c0_43] : memref<18x16x384xbf16, #tpu.memory_space<vmem>>, vector<16x16x384xbf16>
    %38 = vector.shape_cast %37 : vector<16x16x384xbf16> to vector<256x384xbf16>
    %c2_44 = arith.constant 2 : index
    %c0_45 = arith.constant 0 : index
    %c0_46 = arith.constant 0 : index
    %39 = vector.load %arg5[%c2_44, %c0_45, %c0_46] : memref<3x384x128xbf16, #tpu.memory_space<vmem>>, vector<1x384x128xbf16>
    %40 = vector.shape_cast %39 : vector<1x384x128xbf16> to vector<384x128xbf16>
    %cst_47 = arith.constant dense<0.000000e+00> : vector<256x128xf32>
    %41 = tpu.matmul %38, %40, %cst_47 {dimension_numbers = #tpu.dot_dimension_numbers<[1], [0], [0], [1], [0, 0, 1, 1], [], []>} : vector<256x384xbf16>, vector<384x128xbf16>, vector<256x128xf32> -> vector<256x128xf32>
    %42 = arith.addf %36, %41 : vector<256x128xf32>
    %c0_48 = arith.constant 0 : index
    %c0_49 = arith.constant 0 : index
    %43 = vector.load %arg6[%c0_48, %c0_49] : memref<1x128xf32, #tpu.memory_space<vmem>>, vector<1x128xf32>
    %44 = vector.broadcast %43 : vector<1x128xf32> to vector<256x128xf32>
    %45 = arith.mulf %42, %44 : vector<256x128xf32>
    %c0_50 = arith.constant 0 : index
    %c0_51 = arith.constant 0 : index
    %46 = vector.load %arg7[%c0_50, %c0_51] : memref<1x128xf32, #tpu.memory_space<vmem>>, vector<1x128xf32>
    %47 = vector.broadcast %46 : vector<1x128xf32> to vector<256x128xf32>
    %48 = arith.addf %45, %47 : vector<256x128xf32>
    %cst_52 = arith.constant 0.000000e+00 : f32
    %49 = vector.broadcast %cst_52 : f32 to vector<256x128xf32>
    %50 = arith.maximumf %48, %49 : vector<256x128xf32>
    %51 = vector.shape_cast %50 : vector<256x128xf32> to vector<16x16x128xf32>
    %52 = arith.truncf %51 : vector<16x16x128xf32> to vector<16x16x128xbf16>
    %c0_53 = arith.constant 0 : index
    %c0_54 = arith.constant 0 : index
    %c0_55 = arith.constant 0 : index
    %c0_56 = arith.constant 0 : index
    %53 = vector.load %arg8[%c0_53, %c0_54, %c0_55, %c0_56] : memref<1x16x16x128xbf16, #tpu.memory_space<vmem>>, vector<1x16x16x128xbf16>
    %54 = vector.shape_cast %53 : vector<1x16x16x128xbf16> to vector<16x16x128xbf16>
    %55 = vector.shape_cast %52 : vector<16x16x128xbf16> to vector<1x16x16x128xbf16>
    tpu.vector_store %arg8[%c0_53, %c0_54, %c0_55, %c0_56], %55 {strides = array<i32>} : memref<1x16x16x128xbf16, #tpu.memory_space<vmem>>, vector<1x16x16x128xbf16>,
    return
  }
  func.func @transform_0(%arg0: i32) -> (i32, i32, i32, i32) {
    %c0_i32 = arith.constant 0 : i32
    %c0_i32_0 = arith.constant 0 : i32
    %c0_i32_1 = arith.constant 0 : i32
    %c0_i32_2 = arith.constant 0 : i32
    return %arg0, %c0_i32, %c0_i32_0, %c0_i32_1 : i32, i32, i32, i32
  }
  func.func @transform_1(%arg0: i32) -> (i32, i32) {
    %c0_i32 = arith.constant 0 : i32
    %c0_i32_0 = arith.constant 0 : i32
    %c0_i32_1 = arith.constant 0 : i32
    return %c0_i32, %c0_i32_0 : i32, i32
  }
  func.func @transform_2(%arg0: i32) -> (i32, i32) {
    %c0_i32 = arith.constant 0 : i32
    %c0_i32_0 = arith.constant 0 : i32
    %c0_i32_1 = arith.constant 0 : i32
    return %c0_i32, %c0_i32_0 : i32, i32
  }
  func.func @transform_3(%arg0: i32) -> (i32, i32) {
    %c0_i32 = arith.constant 0 : i32
    %c0_i32_0 = arith.constant 0 : i32
    %c0_i32_1 = arith.constant 0 : i32
    return %c0_i32, %c0_i32_0 : i32, i32
  }
  func.func @transform_4(%arg0: i32) -> (i32, i32, i32) {
    %c0_i32 = arith.constant 0 : i32
    %c0_i32_0 = arith.constant 0 : i32
    %c0_i32_1 = arith.constant 0 : i32
    %c0_i32_2 = arith.constant 0 : i32
    return %c0_i32, %c0_i32_0, %c0_i32_1 : i32, i32, i32
  }
  func.func @transform_5(%arg0: i32) -> (i32, i32) {
    %c0_i32 = arith.constant 0 : i32
    %c0_i32_0 = arith.constant 0 : i32
    %c0_i32_1 = arith.constant 0 : i32
    return %c0_i32, %c0_i32_0 : i32, i32
  }
  func.func @transform_6(%arg0: i32) -> (i32, i32) {
    %c0_i32 = arith.constant 0 : i32
    %c0_i32_0 = arith.constant 0 : i32
    %c0_i32_1 = arith.constant 0 : i32
    return %c0_i32, %c0_i32_0 : i32, i32
  }
  func.func @transform_7(%arg0: i32) -> (i32, i32, i32, i32) {
    %c0_i32 = arith.constant 0 : i32
    %c0_i32_0 = arith.constant 0 : i32
    %c0_i32_1 = arith.constant 0 : i32
    %c0_i32_2 = arith.constant 0 : i32
    return %arg0, %c0_i32, %c0_i32_0, %c0_i32_1 : i32, i32, i32, i32
  }
}

module attributes {stable_mosaic.version = 11 : i64} {
  func.func @tail_projection_kernel(%arg0: i32, %arg1: memref<512x128xbf16, #tpu.memory_space<vmem>>, %arg2: memref<512x128xbf16, #tpu.memory_space<vmem>>, %arg3: memref<128x128xbf16, #tpu.memory_space<vmem>>, %arg4: memref<1x128xf32, #tpu.memory_space<vmem>>, %arg5: memref<1x128xf32, #tpu.memory_space<vmem>>, %arg6: memref<128x128xbf16, #tpu.memory_space<vmem>>, %arg7: memref<1x128xf32, #tpu.memory_space<vmem>>, %arg8: memref<1x128xf32, #tpu.memory_space<vmem>>, %arg9: memref<512x128xbf16, #tpu.memory_space<vmem>>) attributes {dimension_semantics = [#tpu.dimension_semantics<parallel>], iteration_bounds = array<i64: 1>, scalar_prefetch = 0 : i64, scratch_operands = 0 : i64, tpu.core_type = #tpu.core_type<tc>, window_params = [{transform_indices = @transform_0, window_bounds = array<i64: 512, 128>}, {transform_indices = @transform_1, window_bounds = array<i64: 512, 128>}, {pipeline_mode = #tpu.pipeline_mode<synchronous>, transform_indices = @transform_2, window_bounds = array<i64: 128, 128>}, {pipeline_mode = #tpu.pipeline_mode<synchronous>, transform_indices = @transform_3, window_bounds = array<i64: 1, 128>}, {pipeline_mode = #tpu.pipeline_mode<synchronous>, transform_indices = @transform_4, window_bounds = array<i64: 1, 128>}, {pipeline_mode = #tpu.pipeline_mode<synchronous>, transform_indices = @transform_5, window_bounds = array<i64: 128, 128>}, {pipeline_mode = #tpu.pipeline_mode<synchronous>, transform_indices = @transform_6, window_bounds = array<i64: 1, 128>}, {pipeline_mode = #tpu.pipeline_mode<synchronous>, transform_indices = @transform_7, window_bounds = array<i64: 1, 128>}, {transform_indices = @transform_8, window_bounds = array<i64: 512, 128>}]} {
    %c0 = arith.constant 0 : index
    %c0_0 = arith.constant 0 : index
    %0 = vector.load %arg1[%c0, %c0_0] : memref<512x128xbf16, #tpu.memory_space<vmem>>, vector<512x128xbf16>
    %c0_1 = arith.constant 0 : index
    %c0_2 = arith.constant 0 : index
    %1 = vector.load %arg3[%c0_1, %c0_2] : memref<128x128xbf16, #tpu.memory_space<vmem>>, vector<128x128xbf16>
    %cst = arith.constant dense<0.000000e+00> : vector<512x128xf32>
    %2 = tpu.matmul %0, %1, %cst {dimension_numbers = #tpu.dot_dimension_numbers<[1], [0], [0], [1], [0, 0, 1, 1], [], []>} : vector<512x128xbf16>, vector<128x128xbf16>, vector<512x128xf32> -> vector<512x128xf32>
    %c0_3 = arith.constant 0 : index
    %c0_4 = arith.constant 0 : index
    %3 = vector.load %arg4[%c0_3, %c0_4] : memref<1x128xf32, #tpu.memory_space<vmem>>, vector<1x128xf32>
    %4 = vector.broadcast %3 : vector<1x128xf32> to vector<512x128xf32>
    %5 = arith.mulf %2, %4 : vector<512x128xf32>
    %c0_5 = arith.constant 0 : index
    %c0_6 = arith.constant 0 : index
    %6 = vector.load %arg5[%c0_5, %c0_6] : memref<1x128xf32, #tpu.memory_space<vmem>>, vector<1x128xf32>
    %7 = vector.broadcast %6 : vector<1x128xf32> to vector<512x128xf32>
    %8 = arith.addf %5, %7 : vector<512x128xf32>
    %c0_7 = arith.constant 0 : index
    %c0_8 = arith.constant 0 : index
    %9 = vector.load %arg2[%c0_7, %c0_8] : memref<512x128xbf16, #tpu.memory_space<vmem>>, vector<512x128xbf16>
    %c0_9 = arith.constant 0 : index
    %c0_10 = arith.constant 0 : index
    %10 = vector.load %arg6[%c0_9, %c0_10] : memref<128x128xbf16, #tpu.memory_space<vmem>>, vector<128x128xbf16>
    %cst_11 = arith.constant dense<0.000000e+00> : vector<512x128xf32>
    %11 = tpu.matmul %9, %10, %cst_11 {dimension_numbers = #tpu.dot_dimension_numbers<[1], [0], [0], [1], [0, 0, 1, 1], [], []>} : vector<512x128xbf16>, vector<128x128xbf16>, vector<512x128xf32> -> vector<512x128xf32>
    %c0_12 = arith.constant 0 : index
    %c0_13 = arith.constant 0 : index
    %12 = vector.load %arg7[%c0_12, %c0_13] : memref<1x128xf32, #tpu.memory_space<vmem>>, vector<1x128xf32>
    %13 = vector.broadcast %12 : vector<1x128xf32> to vector<512x128xf32>
    %14 = arith.mulf %11, %13 : vector<512x128xf32>
    %c0_14 = arith.constant 0 : index
    %c0_15 = arith.constant 0 : index
    %15 = vector.load %arg8[%c0_14, %c0_15] : memref<1x128xf32, #tpu.memory_space<vmem>>, vector<1x128xf32>
    %16 = vector.broadcast %15 : vector<1x128xf32> to vector<512x128xf32>
    %17 = arith.addf %14, %16 : vector<512x128xf32>
    %18 = arith.addf %8, %17 : vector<512x128xf32>
    %cst_16 = arith.constant 0.000000e+00 : f32
    %19 = vector.broadcast %cst_16 : f32 to vector<512x128xf32>
    %20 = arith.maximumf %18, %19 : vector<512x128xf32>
    %21 = arith.truncf %20 : vector<512x128xf32> to vector<512x128xbf16>
    %c0_17 = arith.constant 0 : index
    %c0_18 = arith.constant 0 : index
    %22 = vector.load %arg9[%c0_17, %c0_18] : memref<512x128xbf16, #tpu.memory_space<vmem>>, vector<512x128xbf16>
    tpu.vector_store %arg9[%c0_17, %c0_18], %21 {strides = array<i32>} : memref<512x128xbf16, #tpu.memory_space<vmem>>, vector<512x128xbf16>,
    return
  }
  func.func @transform_0(%arg0: i32) -> (i32, i32) {
    %c0_i32 = arith.constant 0 : i32
    %c0_i32_0 = arith.constant 0 : i32
    return %arg0, %c0_i32 : i32, i32
  }
  func.func @transform_1(%arg0: i32) -> (i32, i32) {
    %c0_i32 = arith.constant 0 : i32
    %c0_i32_0 = arith.constant 0 : i32
    return %arg0, %c0_i32 : i32, i32
  }
  func.func @transform_2(%arg0: i32) -> (i32, i32) {
    %c0_i32 = arith.constant 0 : i32
    %c0_i32_0 = arith.constant 0 : i32
    %c0_i32_1 = arith.constant 0 : i32
    return %c0_i32, %c0_i32_0 : i32, i32
  }
  func.func @transform_3(%arg0: i32) -> (i32, i32) {
    %c0_i32 = arith.constant 0 : i32
    %c0_i32_0 = arith.constant 0 : i32
    %c0_i32_1 = arith.constant 0 : i32
    return %c0_i32, %c0_i32_0 : i32, i32
  }
  func.func @transform_4(%arg0: i32) -> (i32, i32) {
    %c0_i32 = arith.constant 0 : i32
    %c0_i32_0 = arith.constant 0 : i32
    %c0_i32_1 = arith.constant 0 : i32
    return %c0_i32, %c0_i32_0 : i32, i32
  }
  func.func @transform_5(%arg0: i32) -> (i32, i32) {
    %c0_i32 = arith.constant 0 : i32
    %c0_i32_0 = arith.constant 0 : i32
    %c0_i32_1 = arith.constant 0 : i32
    return %c0_i32, %c0_i32_0 : i32, i32
  }
  func.func @transform_6(%arg0: i32) -> (i32, i32) {
    %c0_i32 = arith.constant 0 : i32
    %c0_i32_0 = arith.constant 0 : i32
    %c0_i32_1 = arith.constant 0 : i32
    return %c0_i32, %c0_i32_0 : i32, i32
  }
  func.func @transform_7(%arg0: i32) -> (i32, i32) {
    %c0_i32 = arith.constant 0 : i32
    %c0_i32_0 = arith.constant 0 : i32
    %c0_i32_1 = arith.constant 0 : i32
    return %c0_i32, %c0_i32_0 : i32, i32
  }
  func.func @transform_8(%arg0: i32) -> (i32, i32) {
    %c0_i32 = arith.constant 0 : i32
    %c0_i32_0 = arith.constant 0 : i32
    return %arg0, %c0_i32 : i32, i32
  }
}

</mosaic_0001>

<llo_original>
// kernel: bottleneck_forward.3
$region0: #{bottleneck_forward.3}
  #allocation0 [shape = 'u32[]', space=smem, size = 0x4, offset = 0x4, fixed_abs, tag = 'smem constant byte address 0x4 - core index']
  #allocation1 [shape = 'u32[144,128]{1,0:T(1,128)}', space=vmem, size = 0x12000, scoped, tag = 'internal scratch']
  %s0 = inlined_call_operand.vmem [shape: bf16[512,128], index: 0, kind: input, shape index: {}]
  %s1 = inlined_call_operand.vmem [shape: bf16[512,128], index: 1, kind: input, shape index: {}]
  %s2 = inlined_call_operand.vmem [shape: bf16[128,128], index: 2, kind: input, shape index: {}]
  %s3 = inlined_call_operand.vmem [shape: f32[1,128], index: 3, kind: input, shape index: {}]
  %s4 = inlined_call_operand.vmem [shape: f32[1,128], index: 4, kind: input, shape index: {}]
  %s5 = inlined_call_operand.vmem [shape: bf16[128,128], index: 5, kind: input, shape index: {}]
  %s6 = inlined_call_operand.vmem [shape: f32[1,128], index: 6, kind: input, shape index: {}]
  %s7 = inlined_call_operand.vmem [shape: f32[1,128], index: 7, kind: input, shape index: {}]
  %s8 = inlined_call_operand.vmem [shape: bf16[512,128], index: 8, kind: output, shape index: {}]
  %s9 = sld [smem:[#allocation0]]
  $region42: #{bottleneck_forward.3} parent=0
    _
  %s11 = ssub.s32 1, %s9
  %s12 = scalar_select 0, %s11, %s9
  // Predicated region
  $region2: #{bottleneck_forward.3} parent=0 // pred_check
    _
  $region3: #{bottleneck_forward.3} parent=0 // pred_check_branch
    %14 = sbr.rel (0) target = $region5
  $region4: #{bottleneck_forward.3} parent=0 // pred_region
    _
  $region5: #{bottleneck_forward.3} parent=0 // pred_fallthru
    _
  // Predicated region
  $region6: #{bottleneck_forward.3} parent=0 // pred_check
    _
  $region7: #{bottleneck_forward.3} parent=0 // pred_check_branch
    %16 = sbr.rel (0) target = $region9
  $region8: #{bottleneck_forward.3} parent=0 // pred_region
    _
  $region9: #{bottleneck_forward.3} parent=0 // pred_fallthru
    _
  // Predicated region
  $region10: #{bottleneck_forward.3} parent=0 // pred_check
    _
  $region11: #{bottleneck_forward.3} parent=0 // pred_check_branch
    %18 = sbr.rel (0) target = $region13
  $region12: #{bottleneck_forward.3} parent=0 // pred_region
    _
  $region13: #{bottleneck_forward.3} parent=0 // pred_fallthru
    _
  // Predicated region
  $region14: #{bottleneck_forward.3} parent=0 // pred_check
    _
  $region15: #{bottleneck_forward.3} parent=0 // pred_check_branch
    %20 = sbr.rel (0) target = $region17
  $region16: #{bottleneck_forward.3} parent=0 // pred_region
    _
  $region17: #{bottleneck_forward.3} parent=0 // pred_fallthru
    _
  // Predicated region
  $region18: #{bottleneck_forward.3} parent=0 // pred_check
    _
  $region19: #{bottleneck_forward.3} parent=0 // pred_check_branch
    %22 = sbr.rel (0) target = $region21
  $region20: #{bottleneck_forward.3} parent=0 // pred_region
    _
  $region21: #{bottleneck_forward.3} parent=0 // pred_fallthru
    _
  // Predicated region
  $region22: #{bottleneck_forward.3} parent=0 // pred_check
    _
  $region23: #{bottleneck_forward.3} parent=0 // pred_check_branch
    %24 = sbr.rel (0) target = $region25
  $region24: #{bottleneck_forward.3} parent=0 // pred_region
    _
  $region25: #{bottleneck_forward.3} parent=0 // pred_fallthru
    _
  // Predicated region
  $region26: #{bottleneck_forward.3} parent=0 // pred_check
    _
  $region27: #{bottleneck_forward.3} parent=0 // pred_check_branch
    %26 = sbr.rel (0) target = $region29
  $region28: #{bottleneck_forward.3} parent=0 // pred_region
    _
  $region29: #{bottleneck_forward.3} parent=0 // pred_fallthru
    _
  // Predicated region
  $region30: #{bottleneck_forward.3} parent=0 // pred_check
    _
  $region31: #{bottleneck_forward.3} parent=0 // pred_check_branch
    %28 = sbr.rel (0) target = $region33
  $region32: #{bottleneck_forward.3} parent=0 // pred_region
    _
  $region33: #{bottleneck_forward.3} parent=0 // pred_fallthru
    _
  %v30 = vld [vmem:[%s0] sm:$0xf]
  %v31 = vld [vmem:[%s0 + $0x4] sm:$0xf]
  %v32 = vld [vmem:[%s0 + $0x8] sm:$0xf]
  %v33 = vld [vmem:[%s0 + $0xc] sm:$0xf]
  %v34 = vld [vmem:[%s0 + $0x10] sm:$0xf]
  %v35 = vld [vmem:[%s0 + $0x14] sm:$0xf]
  %v36 = vld [vmem:[%s0 + $0x18] sm:$0xf]
  %v37 = vld [vmem:[%s0 + $0x1c] sm:$0xf]
  %v38 = vld [vmem:[%s0 + $0x20] sm:$0xf]
  %v39 = vld [vmem:[%s0 + $0x24] sm:$0xf]
  %v40 = vld [vmem:[%s0 + $0x28] sm:$0xf]
  %v41 = vld [vmem:[%s0 + $0x2c] sm:$0xf]
  %v42 = vld [vmem:[%s0 + $0x30] sm:$0xf]
  %v43 = vld [vmem:[%s0 + $0x34] sm:$0xf]
  %v44 = vld [vmem:[%s0 + $0x38] sm:$0xf]
  %v45 = vld [vmem:[%s0 + $0x3c] sm:$0xf]
  %v46 = vld [vmem:[%s0 + $0x40] sm:$0xf]
  %v47 = vld [vmem:[%s0 + $0x44] sm:$0xf]
  %v48 = vld [vmem:[%s0 + $0x48] sm:$0xf]
  %v49 = vld [vmem:[%s0 + $0x4c] sm:$0xf]
  %v50 = vld [vmem:[%s0 + $0x50] sm:$0xf]
  %v51 = vld [vmem:[%s0 + $0x54] sm:$0xf]
  %v52 = vld [vmem:[%s0 + $0x58] sm:$0xf]
  %v53 = vld [vmem:[%s0 + $0x5c] sm:$0xf]
  %v54 = vld [vmem:[%s0 + $0x60] sm:$0xf]
  %v55 = vld [vmem:[%s0 + $0x64] sm:$0xf]
  %v56 = vld [vmem:[%s0 + $0x68] sm:$0xf]
  %v57 = vld [vmem:[%s0 + $0x6c] sm:$0xf]
  %v58 = vld [vmem:[%s0 + $0x70] sm:$0xf]
  %v59 = vld [vmem:[%s0 + $0x74] sm:$0xf]
  %v60 = vld [vmem:[%s0 + $0x78] sm:$0xf]
  %v61 = vld [vmem:[%s0 + $0x7c] sm:$0xf]
  %v62 = vld [vmem:[%s0 + $0x80] sm:$0xf]
  %v63 = vld [vmem:[%s0 + $0x84] sm:$0xf]
  %v64 = vld [vmem:[%s0 + $0x88] sm:$0xf]
  %v65 = vld [vmem:[%s0 + $0x8c] sm:$0xf]
  %v66 = vld [vmem:[%s0 + $0x90] sm:$0xf]
  %v67 = vld [vmem:[%s0 + $0x94] sm:$0xf]
  %v68 = vld [vmem:[%s0 + $0x98] sm:$0xf]
  %v69 = vld [vmem:[%s0 + $0x9c] sm:$0xf]
  %v70 = vld [vmem:[%s0 + $0xa0] sm:$0xf]
  %v71 = vld [vmem:[%s0 + $0xa4] sm:$0xf]
  %v72 = vld [vmem:[%s0 + $0xa8] sm:$0xf]
  %v73 = vld [vmem:[%s0 + $0xac] sm:$0xf]
  %v74 = vld [vmem:[%s0 + $0xb0] sm:$0xf]
  %v75 = vld [vmem:[%s0 + $0xb4] sm:$0xf]
  %v76 = vld [vmem:[%s0 + $0xb8] sm:$0xf]
  %v77 = vld [vmem:[%s0 + $0xbc] sm:$0xf]
  %v78 = vld [vmem:[%s0 + $0xc0] sm:$0xf]
  %v79 = vld [vmem:[%s0 + $0xc4] sm:$0xf]
  %v80 = vld [vmem:[%s0 + $0xc8] sm:$0xf]
  %v81 = vld [vmem:[%s0 + $0xcc] sm:$0xf]
  %v82 = vld [vmem:[%s0 + $0xd0] sm:$0xf]
  %v83 = vld [vmem:[%s0 + $0xd4] sm:$0xf]
  %v84 = vld [vmem:[%s0 + $0xd8] sm:$0xf]
  %v85 = vld [vmem:[%s0 + $0xdc] sm:$0xf]
  %v86 = vld [vmem:[%s0 + $0xe0] sm:$0xf]
  %v87 = vld [vmem:[%s0 + $0xe4] sm:$0xf]
  %v88 = vld [vmem:[%s0 + $0xe8] sm:$0xf]
  %v89 = vld [vmem:[%s0 + $0xec] sm:$0xf]
  %v90 = vld [vmem:[%s0 + $0xf0] sm:$0xf]
  %v91 = vld [vmem:[%s0 + $0xf4] sm:$0xf]
  %v92 = vld [vmem:[%s0 + $0xf8] sm:$0xf]
  %v93 = vld [vmem:[%s0 + $0xfc] sm:$0xf]
  %v94 = vld [vmem:[%s2] sm:$0xf]
  %v95 = vld [vmem:[%s2 + $0x4] sm:$0xf]
  %v96 = vld [vmem:[%s2 + $0x8] sm:$0xf]
  %v97 = vld [vmem:[%s2 + $0xc] sm:$0xf]
  %v98 = vld [vmem:[%s2 + $0x10] sm:$0xf]
  %v99 = vld [vmem:[%s2 + $0x14] sm:$0xf]
  %v100 = vld [vmem:[%s2 + $0x18] sm:$0xf]
  %v101 = vld [vmem:[%s2 + $0x1c] sm:$0xf]
  %v102 = vld [vmem:[%s2 + $0x20] sm:$0xf]
  %v103 = vld [vmem:[%s2 + $0x24] sm:$0xf]
  %v104 = vld [vmem:[%s2 + $0x28] sm:$0xf]
  %v105 = vld [vmem:[%s2 + $0x2c] sm:$0xf]
  %v106 = vld [vmem:[%s2 + $0x30] sm:$0xf]
  %v107 = vld [vmem:[%s2 + $0x34] sm:$0xf]
  %v108 = vld [vmem:[%s2 + $0x38] sm:$0xf]
  %v109 = vld [vmem:[%s2 + $0x3c] sm:$0xf]
  %v174 = vunpack.c.l.b16 %v30
  %v175 = vunpack.c.l.b16 %v31
  %v176 = vunpack.c.l.b16 %v32
  %v177 = vunpack.c.l.b16 %v33
  %v178 = vunpack.c.l.b16 %v34
  %v179 = vunpack.c.l.b16 %v35
  %v180 = vunpack.c.l.b16 %v36
  %v181 = vunpack.c.l.b16 %v37
  %v182 = vunpack.c.l.b16 %v38
  %v183 = vunpack.c.l.b16 %v39
  %v184 = vunpack.c.l.b16 %v40
  %v185 = vunpack.c.l.b16 %v41
  %v186 = vunpack.c.l.b16 %v42
  %v187 = vunpack.c.l.b16 %v43
  %v188 = vunpack.c.l.b16 %v44
  %v189 = vunpack.c.l.b16 %v45
  %v190 = vunpack.c.l.b16 %v46
  %v191 = vunpack.c.l.b16 %v47
  %v192 = vunpack.c.l.b16 %v48
  %v193 = vunpack.c.l.b16 %v49
  %v194 = vunpack.c.l.b16 %v50
  %v195 = vunpack.c.l.b16 %v51
  %v196 = vunpack.c.l.b16 %v52
  %v197 = vunpack.c.l.b16 %v53
  %v198 = vunpack.c.l.b16 %v54
  %v199 = vunpack.c.l.b16 %v55
  %v200 = vunpack.c.l.b16 %v56
  %v201 = vunpack.c.l.b16 %v57
  %v202 = vunpack.c.l.b16 %v58
  %v203 = vunpack.c.l.b16 %v59
  %v204 = vunpack.c.l.b16 %v60
  %v205 = vunpack.c.l.b16 %v61
  %v206 = vunpack.c.l.b16 %v62
  %v207 = vunpack.c.l.b16 %v63
  %v208 = vunpack.c.l.b16 %v64
  %v209 = vunpack.c.l.b16 %v65
  %v210 = vunpack.c.l.b16 %v66
  %v211 = vunpack.c.l.b16 %v67
  %v212 = vunpack.c.l.b16 %v68
  %v213 = vunpack.c.l.b16 %v69
  %v214 = vunpack.c.l.b16 %v70
  %v215 = vunpack.c.l.b16 %v71
  %v216 = vunpack.c.l.b16 %v72
  %v217 = vunpack.c.l.b16 %v73
  %v218 = vunpack.c.l.b16 %v74
  %v219 = vunpack.c.l.b16 %v75
  %v220 = vunpack.c.l.b16 %v76
  %v221 = vunpack.c.l.b16 %v77
  %v222 = vunpack.c.l.b16 %v78
  %v223 = vunpack.c.l.b16 %v79
  %v224 = vunpack.c.l.b16 %v80
  %v225 = vunpack.c.l.b16 %v81
  %v226 = vunpack.c.l.b16 %v82
  %v227 = vunpack.c.l.b16 %v83
  %v228 = vunpack.c.l.b16 %v84
  %v229 = vunpack.c.l.b16 %v85
  %v230 = vunpack.c.l.b16 %v86
  %v231 = vunpack.c.l.b16 %v87
  %v232 = vunpack.c.l.b16 %v88
  %v233 = vunpack.c.l.b16 %v89
  %v234 = vunpack.c.l.b16 %v90
  %v235 = vunpack.c.l.b16 %v91
  %v236 = vunpack.c.l.b16 %v92
  %v237 = vunpack.c.l.b16 %v93
  %v238 = vpack.c.b16 %v175, %v174
  %v239 = vpack.c.b16 %v177, %v176
  %v240 = vpack.c.b16 %v179, %v178
  %v241 = vpack.c.b16 %v181, %v180
  %v242 = vpack.c.b16 %v183, %v182
  %v243 = vpack.c.b16 %v185, %v184
  %v244 = vpack.c.b16 %v187, %v186
  %v245 = vpack.c.b16 %v189, %v188
  %v246 = vpack.c.b16 %v191, %v190
  %v247 = vpack.c.b16 %v193, %v192
  %v248 = vpack.c.b16 %v195, %v194
  %v249 = vpack.c.b16 %v197, %v196
  %v250 = vpack.c.b16 %v199, %v198
  %v251 = vpack.c.b16 %v201, %v200
  %v252 = vpack.c.b16 %v203, %v202
  %v253 = vpack.c.b16 %v205, %v204
  %v254 = vpack.c.b16 %v207, %v206
  %v255 = vpack.c.b16 %v209, %v208
  %v256 = vpack.c.b16 %v211, %v210
  %v257 = vpack.c.b16 %v213, %v212
  %v258 = vpack.c.b16 %v215, %v214
  %v259 = vpack.c.b16 %v217, %v216
  %v260 = vpack.c.b16 %v219, %v218
  %v261 = vpack.c.b16 %v221, %v220
  %v262 = vpack.c.b16 %v223, %v222
  %v263 = vpack.c.b16 %v225, %v224
  %v264 = vpack.c.b16 %v227, %v226
  %v265 = vpack.c.b16 %v229, %v228
  %v266 = vpack.c.b16 %v231, %v230
  %v267 = vpack.c.b16 %v233, %v232
  %v268 = vpack.c.b16 %v235, %v234
  %v269 = vpack.c.b16 %v237, %v236
  %v318 = vunpack.c.l.b16 %v94
  %v319 = vunpack.c.l.b16 %v95
  %v320 = vunpack.c.l.b16 %v96
  %v321 = vunpack.c.l.b16 %v97
  %v322 = vunpack.c.l.b16 %v98
  %v323 = vunpack.c.l.b16 %v99
  %v324 = vunpack.c.l.b16 %v100
  %v325 = vunpack.c.l.b16 %v101
  %v326 = vunpack.c.l.b16 %v102
  %v327 = vunpack.c.l.b16 %v103
  %v328 = vunpack.c.l.b16 %v104
  %v329 = vunpack.c.l.b16 %v105
  %v330 = vunpack.c.l.b16 %v106
  %v331 = vunpack.c.l.b16 %v107
  %v332 = vunpack.c.l.b16 %v108
  %v333 = vunpack.c.l.b16 %v109
  %v334 = vpack.c.b16 %v319, %v318
  %v335 = vpack.c.b16 %v321, %v320
  %v336 = vpack.c.b16 %v323, %v322
  %v337 = vpack.c.b16 %v325, %v324
  %v338 = vpack.c.b16 %v327, %v326
  %v339 = vpack.c.b16 %v329, %v328
  %v340 = vpack.c.b16 %v331, %v330
  %v341 = vpack.c.b16 %v333, %v332
  %350 = vmatprep.subr.bf16.mxu0 0
  %351 = vmatpush1.bf16.msra.mxu0 %v341
  %352 = vmatprep.subr.bf16.mxu0 0
  %353 = vmatpush1.bf16.msra.mxu0 %v340
  %354 = vmatprep.subr.bf16.mxu0 0
  %355 = vmatpush1.bf16.msra.mxu0 %v339
  %356 = vmatprep.subr.bf16.mxu0 0
  %357 = vmatpush1.bf16.msra.mxu0 %v338
  %358 = vmatprep.subr.bf16.mxu0 0
  %359 = vmatpush1.bf16.msra.mxu0 %v337
  %360 = vmatprep.subr.bf16.mxu0 0
  %361 = vmatpush1.bf16.msra.mxu0 %v336
  %362 = vmatprep.subr.bf16.mxu0 0
  %363 = vmatpush1.bf16.msra.mxu0 %v335
  %364 = vmatprep.subr.bf16.mxu0 0
  %365 = vmatpush1.bf16.msra.mxu0 %v334
  %366 = vmatprep.subr.bf16.mxu0 0
  %367 = vmatpush2.bf16.msra.mxu0 0
  %368 = vmatprep.subr.bf16.mxu0 0
  %369 = vmatpush2.bf16.msra.mxu0 0
  %370 = vmatprep.subr.bf16.mxu0 0
  %371 = vmatpush2.bf16.msra.mxu0 0
  %372 = vmatprep.subr.bf16.mxu0 0
  %373 = vmatpush2.bf16.msra.mxu0 0
  %374 = vmatprep.subr.bf16.mxu0 0
  %375 = vmatpush2.bf16.msra.mxu0 0
  %376 = vmatprep.subr.bf16.mxu0 0
  %377 = vmatpush2.bf16.msra.mxu0 0
  %378 = vmatprep.subr.bf16.mxu0 0
  %379 = vmatpush2.bf16.msra.mxu0 0
  %380 = vmatprep.subr.bf16.mxu0 0
  %381 = vmatpush2.bf16.msra.mxu0 0
  %382 = vmatprep.mubr.bf16.mxu0 0
  %383 = vmatmul.mubr.bf16.gmra.mxu0 %v238
  %v384 = vpop.f32.mrf.mxu0
  %v385 = vadd.f32 0.0, %v384
  %v386 = vpop.f32.mrf.mxu0
  %v387 = vpop.f32.mrf.mxu0
  %v388 = vadd.f32 0.0, %v387
  %v389 = vpop.f32.mrf.mxu0
  %390 = vmatprep.mubr.bf16.mxu0 0
  %391 = vmatmul.mubr.bf16.gmra.mxu0 %v239
  %v392 = vpop.f32.mrf.mxu0
  %v393 = vadd.f32 0.0, %v392
  %v394 = vpop.f32.mrf.mxu0
  %v395 = vpop.f32.mrf.mxu0
  %v396 = vadd.f32 0.0, %v395
  %v397 = vpop.f32.mrf.mxu0
  %398 = vmatprep.mubr.bf16.mxu0 0
  %399 = vmatmul.mubr.bf16.gmra.mxu0 %v240
  %v400 = vpop.f32.mrf.mxu0
  %v401 = vadd.f32 0.0, %v400
  %v402 = vpop.f32.mrf.mxu0
  %v403 = vpop.f32.mrf.mxu0
  %v404 = vadd.f32 0.0, %v403
  %v405 = vpop.f32.mrf.mxu0
  %406 = vmatprep.mubr.bf16.mxu0 0
  %407 = vmatmul.mubr.bf16.gmra.mxu0 %v241
  %v408 = vpop.f32.mrf.mxu0
  %v409 = vadd.f32 0.0, %v408
  %v410 = vpop.f32.mrf.mxu0
  %v411 = vpop.f32.mrf.mxu0
  %v412 = vadd.f32 0.0, %v411
  %v413 = vpop.f32.mrf.mxu0
  %414 = vmatprep.mubr.bf16.mxu0 0
  %415 = vmatmul.mubr.bf16.gmra.mxu0 %v242
  %v416 = vpop.f32.mrf.mxu0
  %v417 = vadd.f32 0.0, %v416
  %v418 = vpop.f32.mrf.mxu0
  %v419 = vpop.f32.mrf.mxu0
  %v420 = vadd.f32 0.0, %v419
  %v421 = vpop.f32.mrf.mxu0
  %422 = vmatprep.mubr.bf16.mxu0 0
  %423 = vmatmul.mubr.bf16.gmra.mxu0 %v243
  %v424 = vpop.f32.mrf.mxu0
  %v425 = vadd.f32 0.0, %v424
  %v426 = vpop.f32.mrf.mxu0
  %v427 = vpop.f32.mrf.mxu0
  %v428 = vadd.f32 0.0, %v427
  %v429 = vpop.f32.mrf.mxu0
  %430 = vmatprep.mubr.bf16.mxu0 0
  %431 = vmatmul.mubr.bf16.gmra.mxu0 %v244
  %v432 = vpop.f32.mrf.mxu0
  %v433 = vadd.f32 0.0, %v432
  %v434 = vpop.f32.mrf.mxu0
  %v435 = vpop.f32.mrf.mxu0
  %v436 = vadd.f32 0.0, %v435
  %v437 = vpop.f32.mrf.mxu0
  %438 = vmatprep.mubr.bf16.mxu0 0
  %439 = vmatmul.mubr.bf16.gmra.mxu0 %v245
  %v440 = vpop.f32.mrf.mxu0
  %v441 = vadd.f32 0.0, %v440
  %v442 = vpop.f32.mrf.mxu0
  %v443 = vpop.f32.mrf.mxu0
  %v444 = vadd.f32 0.0, %v443
  %v445 = vpop.f32.mrf.mxu0
  %446 = vmatprep.mubr.bf16.mxu0 0
  %447 = vmatmul.mubr.bf16.gmra.mxu0 %v246
  %v448 = vpop.f32.mrf.mxu0
  %v449 = vadd.f32 0.0, %v448
  %v450 = vpop.f32.mrf.mxu0
  %v451 = vpop.f32.mrf.mxu0
  %v452 = vadd.f32 0.0, %v451
  %v453 = vpop.f32.mrf.mxu0
  %454 = vmatprep.mubr.bf16.mxu0 0
  %455 = vmatmul.mubr.bf16.gmra.mxu0 %v247
  %v456 = vpop.f32.mrf.mxu0
  %v457 = vadd.f32 0.0, %v456
  %v458 = vpop.f32.mrf.mxu0
  %v459 = vpop.f32.mrf.mxu0
  %v460 = vadd.f32 0.0, %v459
  %v461 = vpop.f32.mrf.mxu0
  %462 = vmatprep.mubr.bf16.mxu0 0
  %463 = vmatmul.mubr.bf16.gmra.mxu0 %v248
  %v464 = vpop.f32.mrf.mxu0
  %v465 = vadd.f32 0.0, %v464
  %v466 = vpop.f32.mrf.mxu0
  %v467 = vpop.f32.mrf.mxu0
  %v468 = vadd.f32 0.0, %v467
  %v469 = vpop.f32.mrf.mxu0
  %470 = vmatprep.mubr.bf16.mxu0 0
  %471 = vmatmul.mubr.bf16.gmra.mxu0 %v249
  %v472 = vpop.f32.mrf.mxu0
  %v473 = vadd.f32 0.0, %v472
  %v474 = vpop.f32.mrf.mxu0
  %v475 = vpop.f32.mrf.mxu0
  %v476 = vadd.f32 0.0, %v475
  %v477 = vpop.f32.mrf.mxu0
  %478 = vmatprep.mubr.bf16.mxu0 0
  %479 = vmatmul.mubr.bf16.gmra.mxu0 %v250
  %v480 = vpop.f32.mrf.mxu0
  %v481 = vadd.f32 0.0, %v480
  %v482 = vpop.f32.mrf.mxu0
  %v483 = vpop.f32.mrf.mxu0
  %v484 = vadd.f32 0.0, %v483
  %v485 = vpop.f32.mrf.mxu0
  %486 = vmatprep.mubr.bf16.mxu0 0
  %487 = vmatmul.mubr.bf16.gmra.mxu0 %v251
  %v488 = vpop.f32.mrf.mxu0
  %v489 = vadd.f32 0.0, %v488
  %v490 = vpop.f32.mrf.mxu0
  %v491 = vpop.f32.mrf.mxu0
  %v492 = vadd.f32 0.0, %v491
  %v493 = vpop.f32.mrf.mxu0
  %494 = vmatprep.mubr.bf16.mxu0 0
  %495 = vmatmul.mubr.bf16.gmra.mxu0 %v252
  %v496 = vpop.f32.mrf.mxu0
  %v497 = vadd.f32 0.0, %v496
  %v498 = vpop.f32.mrf.mxu0
  %v499 = vpop.f32.mrf.mxu0
  %v500 = vadd.f32 0.0, %v499
  %v501 = vpop.f32.mrf.mxu0
  %502 = vmatprep.mubr.bf16.mxu0 0
  %503 = vmatmul.mubr.bf16.gmra.mxu0 %v253
  %v504 = vpop.f32.mrf.mxu0
  %v505 = vadd.f32 0.0, %v504
  %v506 = vpop.f32.mrf.mxu0
  %v507 = vpop.f32.mrf.mxu0
  %v508 = vadd.f32 0.0, %v507
  %v509 = vpop.f32.mrf.mxu0
  %510 = vmatprep.mubr.bf16.mxu0 0
  %511 = vmatmul.mubr.bf16.gmra.mxu0 %v254
  %v512 = vpop.f32.mrf.mxu0
  %v513 = vadd.f32 0.0, %v512
  %v514 = vpop.f32.mrf.mxu0
  %v515 = vpop.f32.mrf.mxu0
  %v516 = vadd.f32 0.0, %v515
  %v517 = vpop.f32.mrf.mxu0
  %518 = vmatprep.mubr.bf16.mxu0 0
  %519 = vmatmul.mubr.bf16.gmra.mxu0 %v255
  %v520 = vpop.f32.mrf.mxu0
  %v521 = vadd.f32 0.0, %v520
  %v522 = vpop.f32.mrf.mxu0
  %v523 = vpop.f32.mrf.mxu0
  %v524 = vadd.f32 0.0, %v523
  %v525 = vpop.f32.mrf.mxu0
  %526 = vmatprep.mubr.bf16.mxu0 0
  %527 = vmatmul.mubr.bf16.gmra.mxu0 %v256
  %v528 = vpop.f32.mrf.mxu0
  %v529 = vadd.f32 0.0, %v528
  %v530 = vpop.f32.mrf.mxu0
  %v531 = vpop.f32.mrf.mxu0
  %v532 = vadd.f32 0.0, %v531
  %v533 = vpop.f32.mrf.mxu0
  %534 = vmatprep.mubr.bf16.mxu0 0
  %535 = vmatmul.mubr.bf16.gmra.mxu0 %v257
  %v536 = vpop.f32.mrf.mxu0
  %v537 = vadd.f32 0.0, %v536
  %v538 = vpop.f32.mrf.mxu0
  %v539 = vpop.f32.mrf.mxu0
  %v540 = vadd.f32 0.0, %v539
  %v541 = vpop.f32.mrf.mxu0
  %542 = vmatprep.mubr.bf16.mxu0 0
  %543 = vmatmul.mubr.bf16.gmra.mxu0 %v258
  %v544 = vpop.f32.mrf.mxu0
  %v545 = vadd.f32 0.0, %v544
  %v546 = vpop.f32.mrf.mxu0
  %v547 = vpop.f32.mrf.mxu0
  %v548 = vadd.f32 0.0, %v547
  %v549 = vpop.f32.mrf.mxu0
  %550 = vmatprep.mubr.bf16.mxu0 0
  %551 = vmatmul.mubr.bf16.gmra.mxu0 %v259
  %v552 = vpop.f32.mrf.mxu0
  %v553 = vadd.f32 0.0, %v552
  %v554 = vpop.f32.mrf.mxu0
  %v555 = vpop.f32.mrf.mxu0
  %v556 = vadd.f32 0.0, %v555
  %v557 = vpop.f32.mrf.mxu0
  %558 = vmatprep.mubr.bf16.mxu0 0
  %559 = vmatmul.mubr.bf16.gmra.mxu0 %v260
  %v560 = vpop.f32.mrf.mxu0
  %v561 = vadd.f32 0.0, %v560
  %v562 = vpop.f32.mrf.mxu0
  %v563 = vpop.f32.mrf.mxu0
  %v564 = vadd.f32 0.0, %v563
  %v565 = vpop.f32.mrf.mxu0
  %566 = vmatprep.mubr.bf16.mxu0 0
  %567 = vmatmul.mubr.bf16.gmra.mxu0 %v261
  %v568 = vpop.f32.mrf.mxu0
  %v569 = vadd.f32 0.0, %v568
  %v570 = vpop.f32.mrf.mxu0
  %v571 = vpop.f32.mrf.mxu0
  %v572 = vadd.f32 0.0, %v571
  %v573 = vpop.f32.mrf.mxu0
  %574 = vmatprep.mubr.bf16.mxu0 0
  %575 = vmatmul.mubr.bf16.gmra.mxu0 %v262
  %v576 = vpop.f32.mrf.mxu0
  %v577 = vadd.f32 0.0, %v576
  %v578 = vpop.f32.mrf.mxu0
  %v579 = vpop.f32.mrf.mxu0
  %v580 = vadd.f32 0.0, %v579
  %v581 = vpop.f32.mrf.mxu0
  %582 = vmatprep.mubr.bf16.mxu0 0
  %583 = vmatmul.mubr.bf16.gmra.mxu0 %v263
  %v584 = vpop.f32.mrf.mxu0
  %v585 = vadd.f32 0.0, %v584
  %v586 = vpop.f32.mrf.mxu0
  %v587 = vpop.f32.mrf.mxu0
  %v588 = vadd.f32 0.0, %v587
  %v589 = vpop.f32.mrf.mxu0
  %590 = vmatprep.mubr.bf16.mxu0 0
  %591 = vmatmul.mubr.bf16.gmra.mxu0 %v264
  %v592 = vpop.f32.mrf.mxu0
  %v593 = vadd.f32 0.0, %v592
  %v594 = vpop.f32.mrf.mxu0
  %v595 = vpop.f32.mrf.mxu0
  %v596 = vadd.f32 0.0, %v595
  %v597 = vpop.f32.mrf.mxu0
  %598 = vmatprep.mubr.bf16.mxu0 0
  %599 = vmatmul.mubr.bf16.gmra.mxu0 %v265
  %v600 = vpop.f32.mrf.mxu0
  %v601 = vadd.f32 0.0, %v600
  %v602 = vpop.f32.mrf.mxu0
  %v603 = vpop.f32.mrf.mxu0
  %v604 = vadd.f32 0.0, %v603
  %v605 = vpop.f32.mrf.mxu0
  %606 = vmatprep.mubr.bf16.mxu0 0
  %607 = vmatmul.mubr.bf16.gmra.mxu0 %v266
  %v608 = vpop.f32.mrf.mxu0
  %v609 = vadd.f32 0.0, %v608
  %v610 = vpop.f32.mrf.mxu0
  %v611 = vpop.f32.mrf.mxu0
  %v612 = vadd.f32 0.0, %v611
  %v613 = vpop.f32.mrf.mxu0
  %614 = vmatprep.mubr.bf16.mxu0 0
  %615 = vmatmul.mubr.bf16.gmra.mxu0 %v267
  %v616 = vpop.f32.mrf.mxu0
  %v617 = vadd.f32 0.0, %v616
  %v618 = vpop.f32.mrf.mxu0
  %v619 = vpop.f32.mrf.mxu0
  %v620 = vadd.f32 0.0, %v619
  %v621 = vpop.f32.mrf.mxu0
  %622 = vmatprep.mubr.bf16.mxu0 0
  %623 = vmatmul.mubr.bf16.gmra.mxu0 %v268
  %v624 = vpop.f32.mrf.mxu0
  %v625 = vadd.f32 0.0, %v624
  %v626 = vpop.f32.mrf.mxu0
  %v627 = vpop.f32.mrf.mxu0
  %v628 = vadd.f32 0.0, %v627
  %v629 = vpop.f32.mrf.mxu0
  %630 = vmatprep.mubr.bf16.mxu0 0
  %631 = vmatmul.mubr.bf16.gmra.mxu0 %v269
  %v632 = vpop.f32.mrf.mxu0
  %v633 = vadd.f32 0.0, %v632
  %v634 = vpop.f32.mrf.mxu0
  %v635 = vpop.f32.mrf.mxu0
  %v636 = vadd.f32 0.0, %v635
  %v637 = vpop.f32.mrf.mxu0
  %638 = vdwg.mxu0
  %v639 = vld [vmem:[%s3] sm:$0x1]
  %v641 = vlaneseq
  %v642 = vshrl.u32 %v641, 7
  %v643 = vsub.s32 0, %v642
  %v644 = vrot.slane %v639, %v643
  %v646 = vmul.f32 %v385, %v644
  %v647 = vmul.f32 %v388, %v644
  %v648 = vmul.f32 %v393, %v644
  %v649 = vmul.f32 %v396, %v644
  %v650 = vmul.f32 %v401, %v644
  %v651 = vmul.f32 %v404, %v644
  %v652 = vmul.f32 %v409, %v644
  %v653 = vmul.f32 %v412, %v644
  %v654 = vmul.f32 %v417, %v644
  %v655 = vmul.f32 %v420, %v644
  %v656 = vmul.f32 %v425, %v644
  %v657 = vmul.f32 %v428, %v644
  %v658 = vmul.f32 %v433, %v644
  %v659 = vmul.f32 %v436, %v644
  %v660 = vmul.f32 %v441, %v644
  %v661 = vmul.f32 %v444, %v644
  %v662 = vmul.f32 %v449, %v644
  %v663 = vmul.f32 %v452, %v644
  %v664 = vmul.f32 %v457, %v644
  %v665 = vmul.f32 %v460, %v644
  %v666 = vmul.f32 %v465, %v644
  %v667 = vmul.f32 %v468, %v644
  %v668 = vmul.f32 %v473, %v644
  %v669 = vmul.f32 %v476, %v644
  %v670 = vmul.f32 %v481, %v644
  %v671 = vmul.f32 %v484, %v644
  %v672 = vmul.f32 %v489, %v644
  %v673 = vmul.f32 %v492, %v644
  %v674 = vmul.f32 %v497, %v644
  %v675 = vmul.f32 %v500, %v644
  %v676 = vmul.f32 %v505, %v644
  %v677 = vmul.f32 %v508, %v644
  %v678 = vmul.f32 %v513, %v644
  %v679 = vmul.f32 %v516, %v644
  %v680 = vmul.f32 %v521, %v644
  %v681 = vmul.f32 %v524, %v644
  %v682 = vmul.f32 %v529, %v644
  %v683 = vmul.f32 %v532, %v644
  %v684 = vmul.f32 %v537, %v644
  %v685 = vmul.f32 %v540, %v644
  %v686 = vmul.f32 %v545, %v644
  %v687 = vmul.f32 %v548, %v644
  %v688 = vmul.f32 %v553, %v644
  %v689 = vmul.f32 %v556, %v644
  %v690 = vmul.f32 %v561, %v644
  %v691 = vmul.f32 %v564, %v644
  %v692 = vmul.f32 %v569, %v644
  %v693 = vmul.f32 %v572, %v644
  %v694 = vmul.f32 %v577, %v644
  %v695 = vmul.f32 %v580, %v644
  %v696 = vmul.f32 %v585, %v644
  %v697 = vmul.f32 %v588, %v644
  %v698 = vmul.f32 %v593, %v644
  %v699 = vmul.f32 %v596, %v644
  %v700 = vmul.f32 %v601, %v644
  %v701 = vmul.f32 %v604, %v644
  %v702 = vmul.f32 %v609, %v644
  %v703 = vmul.f32 %v612, %v644
  %v704 = vmul.f32 %v617, %v644
  %v705 = vmul.f32 %v620, %v644
  %v706 = vmul.f32 %v625, %v644
  %v707 = vmul.f32 %v628, %v644
  %v708 = vmul.f32 %v633, %v644
  %v709 = vmul.f32 %v636, %v644
  %v710 = vld [vmem:[%s4] sm:$0x1]
  %v712 = vlaneseq
  %v713 = vshrl.u32 %v712, 7
  %v714 = vsub.s32 0, %v713
  %v715 = vrot.slane %v710, %v714
  %v717 = vadd.f32 %v646, %v715
  %v718 = vadd.f32 %v647, %v715
  %v719 = vadd.f32 %v648, %v715
  %v720 = vadd.f32 %v649, %v715
  %v721 = vadd.f32 %v650, %v715
  %v722 = vadd.f32 %v651, %v715
  %v723 = vadd.f32 %v652, %v715
  %v724 = vadd.f32 %v653, %v715
  %v725 = vadd.f32 %v654, %v715
  %v726 = vadd.f32 %v655, %v715
  %v727 = vadd.f32 %v656, %v715
  %v728 = vadd.f32 %v657, %v715
  %v729 = vadd.f32 %v658, %v715
  %v730 = vadd.f32 %v659, %v715
  %v731 = vadd.f32 %v660, %v715
  %v732 = vadd.f32 %v661, %v715
  %v733 = vadd.f32 %v662, %v715
  %v734 = vadd.f32 %v663, %v715
  %v735 = vadd.f32 %v664, %v715
  %v736 = vadd.f32 %v665, %v715
  %v737 = vadd.f32 %v666, %v715
  %v738 = vadd.f32 %v667, %v715
  %v739 = vadd.f32 %v668, %v715
  %v740 = vadd.f32 %v669, %v715
  %v741 = vadd.f32 %v670, %v715
  %v742 = vadd.f32 %v671, %v715
  %v743 = vadd.f32 %v672, %v715
  %v744 = vadd.f32 %v673, %v715
  %v745 = vadd.f32 %v674, %v715
  %v746 = vadd.f32 %v675, %v715
  %v747 = vadd.f32 %v676, %v715
  %v748 = vadd.f32 %v677, %v715
  %v749 = vadd.f32 %v678, %v715
  %v750 = vadd.f32 %v679, %v715
  %v751 = vadd.f32 %v680, %v715
  %v752 = vadd.f32 %v681, %v715
  %v753 = vadd.f32 %v682, %v715
  %v754 = vadd.f32 %v683, %v715
  %v755 = vadd.f32 %v684, %v715
  %v756 = vadd.f32 %v685, %v715
  %v757 = vadd.f32 %v686, %v715
  %v758 = vadd.f32 %v687, %v715
  %v759 = vadd.f32 %v688, %v715
  %v760 = vadd.f32 %v689, %v715
  %v761 = vadd.f32 %v690, %v715
  %v762 = vadd.f32 %v691, %v715
  %v763 = vadd.f32 %v692, %v715
  %v764 = vadd.f32 %v693, %v715
  %v765 = vadd.f32 %v694, %v715
  %v766 = vadd.f32 %v695, %v715
  %v767 = vadd.f32 %v696, %v715
  %v768 = vadd.f32 %v697, %v715
  %v769 = vadd.f32 %v698, %v715
  %v770 = vadd.f32 %v699, %v715
  %v771 = vadd.f32 %v700, %v715
  %v772 = vadd.f32 %v701, %v715
  %v773 = vadd.f32 %v702, %v715
  %v774 = vadd.f32 %v703, %v715
  %v775 = vadd.f32 %v704, %v715
  %v776 = vadd.f32 %v705, %v715
  %v777 = vadd.f32 %v706, %v715
  %v778 = vadd.f32 %v707, %v715
  %v779 = vadd.f32 %v708, %v715
  %v780 = vadd.f32 %v709, %v715
  %v781 = vld [vmem:[%s1] sm:$0xf]
  %v782 = vld [vmem:[%s1 + $0x4] sm:$0xf]
  %v783 = vld [vmem:[%s1 + $0x8] sm:$0xf]
  %v784 = vld [vmem:[%s1 + $0xc] sm:$0xf]
  %v785 = vld [vmem:[%s1 + $0x10] sm:$0xf]
  %v786 = vld [vmem:[%s1 + $0x14] sm:$0xf]
  %v787 = vld [vmem:[%s1 + $0x18] sm:$0xf]
  %v788 = vld [vmem:[%s1 + $0x1c] sm:$0xf]
  %v789 = vld [vmem:[%s1 + $0x20] sm:$0xf]
  %v790 = vld [vmem:[%s1 + $0x24] sm:$0xf]
  %v791 = vld [vmem:[%s1 + $0x28] sm:$0xf]
  %v792 = vld [vmem:[%s1 + $0x2c] sm:$0xf]
  %v793 = vld [vmem:[%s1 + $0x30] sm:$0xf]
  %v794 = vld [vmem:[%s1 + $0x34] sm:$0xf]
  %v795 = vld [vmem:[%s1 + $0x38] sm:$0xf]
  %v796 = vld [vmem:[%s1 + $0x3c] sm:$0xf]
  %v797 = vld [vmem:[%s1 + $0x40] sm:$0xf]
  %v798 = vld [vmem:[%s1 + $0x44] sm:$0xf]
  %v799 = vld [vmem:[%s1 + $0x48] sm:$0xf]
  %v800 = vld [vmem:[%s1 + $0x4c] sm:$0xf]
  %v801 = vld [vmem:[%s1 + $0x50] sm:$0xf]
  %v802 = vld [vmem:[%s1 + $0x54] sm:$0xf]
  %v803 = vld [vmem:[%s1 + $0x58] sm:$0xf]
  %v804 = vld [vmem:[%s1 + $0x5c] sm:$0xf]
  %v805 = vld [vmem:[%s1 + $0x60] sm:$0xf]
  %v806 = vld [vmem:[%s1 + $0x64] sm:$0xf]
  %v807 = vld [vmem:[%s1 + $0x68] sm:$0xf]
  %v808 = vld [vmem:[%s1 + $0x6c] sm:$0xf]
  %v809 = vld [vmem:[%s1 + $0x70] sm:$0xf]
  %v810 = vld [vmem:[%s1 + $0x74] sm:$0xf]
  %v811 = vld [vmem:[%s1 + $0x78] sm:$0xf]
  %v812 = vld [vmem:[%s1 + $0x7c] sm:$0xf]
  %v813 = vld [vmem:[%s1 + $0x80] sm:$0xf]
  %v814 = vld [vmem:[%s1 + $0x84] sm:$0xf]
  %v815 = vld [vmem:[%s1 + $0x88] sm:$0xf]
  %v816 = vld [vmem:[%s1 + $0x8c] sm:$0xf]
  %v817 = vld [vmem:[%s1 + $0x90] sm:$0xf]
  %v818 = vld [vmem:[%s1 + $0x94] sm:$0xf]
  %v819 = vld [vmem:[%s1 + $0x98] sm:$0xf]
  %v820 = vld [vmem:[%s1 + $0x9c] sm:$0xf]
  %v821 = vld [vmem:[%s1 + $0xa0] sm:$0xf]
  %v822 = vld [vmem:[%s1 + $0xa4] sm:$0xf]
  %v823 = vld [vmem:[%s1 + $0xa8] sm:$0xf]
  %v824 = vld [vmem:[%s1 + $0xac] sm:$0xf]
  %v825 = vld [vmem:[%s1 + $0xb0] sm:$0xf]
  %v826 = vld [vmem:[%s1 + $0xb4] sm:$0xf]
  %v827 = vld [vmem:[%s1 + $0xb8] sm:$0xf]
  %v828 = vld [vmem:[%s1 + $0xbc] sm:$0xf]
  %v829 = vld [vmem:[%s1 + $0xc0] sm:$0xf]
  %v830 = vld [vmem:[%s1 + $0xc4] sm:$0xf]
  %v831 = vld [vmem:[%s1 + $0xc8] sm:$0xf]
  %v832 = vld [vmem:[%s1 + $0xcc] sm:$0xf]
  %v833 = vld [vmem:[%s1 + $0xd0] sm:$0xf]
  %v834 = vld [vmem:[%s1 + $0xd4] sm:$0xf]
  %v835 = vld [vmem:[%s1 + $0xd8] sm:$0xf]
  %v836 = vld [vmem:[%s1 + $0xdc] sm:$0xf]
  %v837 = vld [vmem:[%s1 + $0xe0] sm:$0xf]
  %v838 = vld [vmem:[%s1 + $0xe4] sm:$0xf]
  %v839 = vld [vmem:[%s1 + $0xe8] sm:$0xf]
  %v840 = vld [vmem:[%s1 + $0xec] sm:$0xf]
  %v841 = vld [vmem:[%s1 + $0xf0] sm:$0xf]
  %v842 = vld [vmem:[%s1 + $0xf4] sm:$0xf]
  %v843 = vld [vmem:[%s1 + $0xf8] sm:$0xf]
  %v844 = vld [vmem:[%s1 + $0xfc] sm:$0xf]
  %v845 = vld [vmem:[%s5] sm:$0xf]
  %v846 = vld [vmem:[%s5 + $0x4] sm:$0xf]
  %v847 = vld [vmem:[%s5 + $0x8] sm:$0xf]
  %v848 = vld [vmem:[%s5 + $0xc] sm:$0xf]
  %v849 = vld [vmem:[%s5 + $0x10] sm:$0xf]
  %v850 = vld [vmem:[%s5 + $0x14] sm:$0xf]
  %v851 = vld [vmem:[%s5 + $0x18] sm:$0xf]
  %v852 = vld [vmem:[%s5 + $0x1c] sm:$0xf]
  %v853 = vld [vmem:[%s5 + $0x20] sm:$0xf]
  %v854 = vld [vmem:[%s5 + $0x24] sm:$0xf]
  %v855 = vld [vmem:[%s5 + $0x28] sm:$0xf]
  %v856 = vld [vmem:[%s5 + $0x2c] sm:$0xf]
  %v857 = vld [vmem:[%s5 + $0x30] sm:$0xf]
  %v858 = vld [vmem:[%s5 + $0x34] sm:$0xf]
  %v859 = vld [vmem:[%s5 + $0x38] sm:$0xf]
  %v860 = vld [vmem:[%s5 + $0x3c] sm:$0xf]
  %v925 = vunpack.c.l.b16 %v781
  %v926 = vunpack.c.l.b16 %v782
  %v927 = vunpack.c.l.b16 %v783
  %v928 = vunpack.c.l.b16 %v784
  %v929 = vunpack.c.l.b16 %v785
  %v930 = vunpack.c.l.b16 %v786
  %v931 = vunpack.c.l.b16 %v787
  %v932 = vunpack.c.l.b16 %v788
  %v933 = vunpack.c.l.b16 %v789
  %v934 = vunpack.c.l.b16 %v790
  %v935 = vunpack.c.l.b16 %v791
  %v936 = vunpack.c.l.b16 %v792
  %v937 = vunpack.c.l.b16 %v793
  %v938 = vunpack.c.l.b16 %v794
  %v939 = vunpack.c.l.b16 %v795
  %v940 = vunpack.c.l.b16 %v796
  %v941 = vunpack.c.l.b16 %v797
  %v942 = vunpack.c.l.b16 %v798
  %v943 = vunpack.c.l.b16 %v799
  %v944 = vunpack.c.l.b16 %v800
  %v945 = vunpack.c.l.b16 %v801
  %v946 = vunpack.c.l.b16 %v802
  %v947 = vunpack.c.l.b16 %v803
  %v948 = vunpack.c.l.b16 %v804
  %v949 = vunpack.c.l.b16 %v805
  %v950 = vunpack.c.l.b16 %v806
  %v951 = vunpack.c.l.b16 %v807
  %v952 = vunpack.c.l.b16 %v808
  %v953 = vunpack.c.l.b16 %v809
  %v954 = vunpack.c.l.b16 %v810
  %v955 = vunpack.c.l.b16 %v811
  %v956 = vunpack.c.l.b16 %v812
  %v957 = vunpack.c.l.b16 %v813
  %v958 = vunpack.c.l.b16 %v814
  %v959 = vunpack.c.l.b16 %v815
  %v960 = vunpack.c.l.b16 %v816
  %v961 = vunpack.c.l.b16 %v817
  %v962 = vunpack.c.l.b16 %v818
  %v963 = vunpack.c.l.b16 %v819
  %v964 = vunpack.c.l.b16 %v820
  %v965 = vunpack.c.l.b16 %v821
  %v966 = vunpack.c.l.b16 %v822
  %v967 = vunpack.c.l.b16 %v823
  %v968 = vunpack.c.l.b16 %v824
  %v969 = vunpack.c.l.b16 %v825
  %v970 = vunpack.c.l.b16 %v826
  %v971 = vunpack.c.l.b16 %v827
  %v972 = vunpack.c.l.b16 %v828
  %v973 = vunpack.c.l.b16 %v829
  %v974 = vunpack.c.l.b16 %v830
  %v975 = vunpack.c.l.b16 %v831
  %v976 = vunpack.c.l.b16 %v832
  %v977 = vunpack.c.l.b16 %v833
  %v978 = vunpack.c.l.b16 %v834
  %v979 = vunpack.c.l.b16 %v835
  %v980 = vunpack.c.l.b16 %v836
  %v981 = vunpack.c.l.b16 %v837
  %v982 = vunpack.c.l.b16 %v838
  %v983 = vunpack.c.l.b16 %v839
  %v984 = vunpack.c.l.b16 %v840
  %v985 = vunpack.c.l.b16 %v841
  %v986 = vunpack.c.l.b16 %v842
  %v987 = vunpack.c.l.b16 %v843
  %v988 = vunpack.c.l.b16 %v844
  %v989 = vpack.c.b16 %v926, %v925
  %v990 = vpack.c.b16 %v928, %v927
  %v991 = vpack.c.b16 %v930, %v929
  %v992 = vpack.c.b16 %v932, %v931
  %v993 = vpack.c.b16 %v934, %v933
  %v994 = vpack.c.b16 %v936, %v935
  %v995 = vpack.c.b16 %v938, %v937
  %v996 = vpack.c.b16 %v940, %v939
  %v997 = vpack.c.b16 %v942, %v941
  %v998 = vpack.c.b16 %v944, %v943
  %v999 = vpack.c.b16 %v946, %v945
  %v1000 = vpack.c.b16 %v948, %v947
  %v1001 = vpack.c.b16 %v950, %v949
  %v1002 = vpack.c.b16 %v952, %v951
  %v1003 = vpack.c.b16 %v954, %v953
  %v1004 = vpack.c.b16 %v956, %v955
  %v1005 = vpack.c.b16 %v958, %v957
  %v1006 = vpack.c.b16 %v960, %v959
  %v1007 = vpack.c.b16 %v962, %v961
  %v1008 = vpack.c.b16 %v964, %v963
  %v1009 = vpack.c.b16 %v966, %v965
  %v1010 = vpack.c.b16 %v968, %v967
  %v1011 = vpack.c.b16 %v970, %v969
  %v1012 = vpack.c.b16 %v972, %v971
  %v1013 = vpack.c.b16 %v974, %v973
  %v1014 = vpack.c.b16 %v976, %v975
  %v1015 = vpack.c.b16 %v978, %v977
  %v1016 = vpack.c.b16 %v980, %v979
  %v1017 = vpack.c.b16 %v982, %v981
  %v1018 = vpack.c.b16 %v984, %v983
  %v1019 = vpack.c.b16 %v986, %v985
  %v1020 = vpack.c.b16 %v988, %v987
  %v1069 = vunpack.c.l.b16 %v845
  %v1070 = vunpack.c.l.b16 %v846
  %v1071 = vunpack.c.l.b16 %v847
  %v1072 = vunpack.c.l.b16 %v848
  %v1073 = vunpack.c.l.b16 %v849
  %v1074 = vunpack.c.l.b16 %v850
  %v1075 = vunpack.c.l.b16 %v851
  %v1076 = vunpack.c.l.b16 %v852
  %v1077 = vunpack.c.l.b16 %v853
  %v1078 = vunpack.c.l.b16 %v854
  %v1079 = vunpack.c.l.b16 %v855
  %v1080 = vunpack.c.l.b16 %v856
  %v1081 = vunpack.c.l.b16 %v857
  %v1082 = vunpack.c.l.b16 %v858
  %v1083 = vunpack.c.l.b16 %v859
  %v1084 = vunpack.c.l.b16 %v860
  %v1085 = vpack.c.b16 %v1070, %v1069
  %v1086 = vpack.c.b16 %v1072, %v1071
  %v1087 = vpack.c.b16 %v1074, %v1073
  %v1088 = vpack.c.b16 %v1076, %v1075
  %v1089 = vpack.c.b16 %v1078, %v1077
  %v1090 = vpack.c.b16 %v1080, %v1079
  %v1091 = vpack.c.b16 %v1082, %v1081
  %v1092 = vpack.c.b16 %v1084, %v1083
  %1101 = vmatprep.subr.bf16.mxu0 0
  %1102 = vmatpush1.bf16.msra.mxu0 %v1092
  %1103 = vmatprep.subr.bf16.mxu0 0
  %1104 = vmatpush1.bf16.msra.mxu0 %v1091
  %1105 = vmatprep.subr.bf16.mxu0 0
  %1106 = vmatpush1.bf16.msra.mxu0 %v1090
  %1107 = vmatprep.subr.bf16.mxu0 0
  %1108 = vmatpush1.bf16.msra.mxu0 %v1089
  %1109 = vmatprep.subr.bf16.mxu0 0
  %1110 = vmatpush1.bf16.msra.mxu0 %v1088
  %1111 = vmatprep.subr.bf16.mxu0 0
  %1112 = vmatpush1.bf16.msra.mxu0 %v1087
  %1113 = vmatprep.subr.bf16.mxu0 0
  %1114 = vmatpush1.bf16.msra.mxu0 %v1086
  %1115 = vmatprep.subr.bf16.mxu0 0
  %1116 = vmatpush1.bf16.msra.mxu0 %v1085
  %1117 = vmatprep.subr.bf16.mxu0 0
  %1118 = vmatpush2.bf16.msra.mxu0 0
  %1119 = vmatprep.subr.bf16.mxu0 0
  %1120 = vmatpush2.bf16.msra.mxu0 0
  %1121 = vmatprep.subr.bf16.mxu0 0
  %1122 = vmatpush2.bf16.msra.mxu0 0
  %1123 = vmatprep.subr.bf16.mxu0 0
  %1124 = vmatpush2.bf16.msra.mxu0 0
  %1125 = vmatprep.subr.bf16.mxu0 0
  %1126 = vmatpush2.bf16.msra.mxu0 0
  %1127 = vmatprep.subr.bf16.mxu0 0
  %1128 = vmatpush2.bf16.msra.mxu0 0
  %1129 = vmatprep.subr.bf16.mxu0 0
  %1130 = vmatpush2.bf16.msra.mxu0 0
  %1131 = vmatprep.subr.bf16.mxu0 0
  %1132 = vmatpush2.bf16.msra.mxu0 0
  %1133 = vmatprep.mubr.bf16.mxu0 0
  %1134 = vmatmul.mubr.bf16.gmra.mxu0 %v989
  %v1135 = vpop.f32.mrf.mxu0
  %v1136 = vadd.f32 0.0, %v1135
  %v1137 = vpop.f32.mrf.mxu0
  %v1138 = vpop.f32.mrf.mxu0
  %v1139 = vadd.f32 0.0, %v1138
  %v1140 = vpop.f32.mrf.mxu0
  %1141 = vmatprep.mubr.bf16.mxu0 0
  %1142 = vmatmul.mubr.bf16.gmra.mxu0 %v990
  %v1143 = vpop.f32.mrf.mxu0
  %v1144 = vadd.f32 0.0, %v1143
  %v1145 = vpop.f32.mrf.mxu0
  %v1146 = vpop.f32.mrf.mxu0
  %v1147 = vadd.f32 0.0, %v1146
  %v1148 = vpop.f32.mrf.mxu0
  %1149 = vmatprep.mubr.bf16.mxu0 0
  %1150 = vmatmul.mubr.bf16.gmra.mxu0 %v991
  %v1151 = vpop.f32.mrf.mxu0
  %v1152 = vadd.f32 0.0, %v1151
  %v1153 = vpop.f32.mrf.mxu0
  %v1154 = vpop.f32.mrf.mxu0
  %v1155 = vadd.f32 0.0, %v1154
  %v1156 = vpop.f32.mrf.mxu0
  %1157 = vmatprep.mubr.bf16.mxu0 0
  %1158 = vmatmul.mubr.bf16.gmra.mxu0 %v992
  %v1159 = vpop.f32.mrf.mxu0
  %v1160 = vadd.f32 0.0, %v1159
  %v1161 = vpop.f32.mrf.mxu0
  %v1162 = vpop.f32.mrf.mxu0
  %v1163 = vadd.f32 0.0, %v1162
  %v1164 = vpop.f32.mrf.mxu0
  %1165 = vmatprep.mubr.bf16.mxu0 0
  %1166 = vmatmul.mubr.bf16.gmra.mxu0 %v993
  %v1167 = vpop.f32.mrf.mxu0
  %v1168 = vadd.f32 0.0, %v1167
  %v1169 = vpop.f32.mrf.mxu0
  %v1170 = vpop.f32.mrf.mxu0
  %v1171 = vadd.f32 0.0, %v1170
  %v1172 = vpop.f32.mrf.mxu0
  %1173 = vmatprep.mubr.bf16.mxu0 0
  %1174 = vmatmul.mubr.bf16.gmra.mxu0 %v994
  %v1175 = vpop.f32.mrf.mxu0
  %v1176 = vadd.f32 0.0, %v1175
  %v1177 = vpop.f32.mrf.mxu0
  %v1178 = vpop.f32.mrf.mxu0
  %v1179 = vadd.f32 0.0, %v1178
  %v1180 = vpop.f32.mrf.mxu0
  %1181 = vmatprep.mubr.bf16.mxu0 0
  %1182 = vmatmul.mubr.bf16.gmra.mxu0 %v995
  %v1183 = vpop.f32.mrf.mxu0
  %v1184 = vadd.f32 0.0, %v1183
  %v1185 = vpop.f32.mrf.mxu0
  %v1186 = vpop.f32.mrf.mxu0
  %v1187 = vadd.f32 0.0, %v1186
  %v1188 = vpop.f32.mrf.mxu0
  %1189 = vmatprep.mubr.bf16.mxu0 0
  %1190 = vmatmul.mubr.bf16.gmra.mxu0 %v996
  %v1191 = vpop.f32.mrf.mxu0
  %v1192 = vadd.f32 0.0, %v1191
  %v1193 = vpop.f32.mrf.mxu0
  %v1194 = vpop.f32.mrf.mxu0
  %v1195 = vadd.f32 0.0, %v1194
  %v1196 = vpop.f32.mrf.mxu0
  %1197 = vmatprep.mubr.bf16.mxu0 0
  %1198 = vmatmul.mubr.bf16.gmra.mxu0 %v997
  %v1199 = vpop.f32.mrf.mxu0
  %v1200 = vadd.f32 0.0, %v1199
  %v1201 = vpop.f32.mrf.mxu0
  %v1202 = vpop.f32.mrf.mxu0
  %v1203 = vadd.f32 0.0, %v1202
  %v1204 = vpop.f32.mrf.mxu0
  %1205 = vmatprep.mubr.bf16.mxu0 0
  %1206 = vmatmul.mubr.bf16.gmra.mxu0 %v998
  %v1207 = vpop.f32.mrf.mxu0
  %v1208 = vadd.f32 0.0, %v1207
  %v1209 = vpop.f32.mrf.mxu0
  %v1210 = vpop.f32.mrf.mxu0
  %v1211 = vadd.f32 0.0, %v1210
  %v1212 = vpop.f32.mrf.mxu0
  %1213 = vmatprep.mubr.bf16.mxu0 0
  %1214 = vmatmul.mubr.bf16.gmra.mxu0 %v999
  %v1215 = vpop.f32.mrf.mxu0
  %v1216 = vadd.f32 0.0, %v1215
  %v1217 = vpop.f32.mrf.mxu0
  %v1218 = vpop.f32.mrf.mxu0
  %v1219 = vadd.f32 0.0, %v1218
  %v1220 = vpop.f32.mrf.mxu0
  %1221 = vmatprep.mubr.bf16.mxu0 0
  %1222 = vmatmul.mubr.bf16.gmra.mxu0 %v1000
  %v1223 = vpop.f32.mrf.mxu0
  %v1224 = vadd.f32 0.0, %v1223
  %v1225 = vpop.f32.mrf.mxu0
  %v1226 = vpop.f32.mrf.mxu0
  %v1227 = vadd.f32 0.0, %v1226
  %v1228 = vpop.f32.mrf.mxu0
  %1229 = vmatprep.mubr.bf16.mxu0 0
  %1230 = vmatmul.mubr.bf16.gmra.mxu0 %v1001
  %v1231 = vpop.f32.mrf.mxu0
  %v1232 = vadd.f32 0.0, %v1231
  %v1233 = vpop.f32.mrf.mxu0
  %v1234 = vpop.f32.mrf.mxu0
  %v1235 = vadd.f32 0.0, %v1234
  %v1236 = vpop.f32.mrf.mxu0
  %1237 = vmatprep.mubr.bf16.mxu0 0
  %1238 = vmatmul.mubr.bf16.gmra.mxu0 %v1002
  %v1239 = vpop.f32.mrf.mxu0
  %v1240 = vadd.f32 0.0, %v1239
  %v1241 = vpop.f32.mrf.mxu0
  %v1242 = vpop.f32.mrf.mxu0
  %v1243 = vadd.f32 0.0, %v1242
  %v1244 = vpop.f32.mrf.mxu0
  %1245 = vmatprep.mubr.bf16.mxu0 0
  %1246 = vmatmul.mubr.bf16.gmra.mxu0 %v1003
  %v1247 = vpop.f32.mrf.mxu0
  %v1248 = vadd.f32 0.0, %v1247
  %v1249 = vpop.f32.mrf.mxu0
  %v1250 = vpop.f32.mrf.mxu0
  %v1251 = vadd.f32 0.0, %v1250
  %v1252 = vpop.f32.mrf.mxu0
  %1253 = vmatprep.mubr.bf16.mxu0 0
  %1254 = vmatmul.mubr.bf16.gmra.mxu0 %v1004
  %v1255 = vpop.f32.mrf.mxu0
  %v1256 = vadd.f32 0.0, %v1255
  %v1257 = vpop.f32.mrf.mxu0
  %v1258 = vpop.f32.mrf.mxu0
  %v1259 = vadd.f32 0.0, %v1258
  %v1260 = vpop.f32.mrf.mxu0
  %1261 = vmatprep.mubr.bf16.mxu0 0
  %1262 = vmatmul.mubr.bf16.gmra.mxu0 %v1005
  %v1263 = vpop.f32.mrf.mxu0
  %v1264 = vadd.f32 0.0, %v1263
  %v1265 = vpop.f32.mrf.mxu0
  %v1266 = vpop.f32.mrf.mxu0
  %v1267 = vadd.f32 0.0, %v1266
  %v1268 = vpop.f32.mrf.mxu0
  %1269 = vmatprep.mubr.bf16.mxu0 0
  %1270 = vmatmul.mubr.bf16.gmra.mxu0 %v1006
  %v1271 = vpop.f32.mrf.mxu0
  %v1272 = vadd.f32 0.0, %v1271
  %v1273 = vpop.f32.mrf.mxu0
  %v1274 = vpop.f32.mrf.mxu0
  %v1275 = vadd.f32 0.0, %v1274
  %v1276 = vpop.f32.mrf.mxu0
  %1277 = vmatprep.mubr.bf16.mxu0 0
  %1278 = vmatmul.mubr.bf16.gmra.mxu0 %v1007
  %v1279 = vpop.f32.mrf.mxu0
  %v1280 = vadd.f32 0.0, %v1279
  %v1281 = vpop.f32.mrf.mxu0
  %v1282 = vpop.f32.mrf.mxu0
  %v1283 = vadd.f32 0.0, %v1282
  %v1284 = vpop.f32.mrf.mxu0
  %1285 = vmatprep.mubr.bf16.mxu0 0
  %1286 = vmatmul.mubr.bf16.gmra.mxu0 %v1008
  %v1287 = vpop.f32.mrf.mxu0
  %v1288 = vadd.f32 0.0, %v1287
  %v1289 = vpop.f32.mrf.mxu0
  %v1290 = vpop.f32.mrf.mxu0
  %v1291 = vadd.f32 0.0, %v1290
  %v1292 = vpop.f32.mrf.mxu0
  %1293 = vmatprep.mubr.bf16.mxu0 0
  %1294 = vmatmul.mubr.bf16.gmra.mxu0 %v1009
  %v1295 = vpop.f32.mrf.mxu0
  %v1296 = vadd.f32 0.0, %v1295
  %v1297 = vpop.f32.mrf.mxu0
  %v1298 = vpop.f32.mrf.mxu0
  %v1299 = vadd.f32 0.0, %v1298
  %v1300 = vpop.f32.mrf.mxu0
  %1301 = vmatprep.mubr.bf16.mxu0 0
  %1302 = vmatmul.mubr.bf16.gmra.mxu0 %v1010
  %v1303 = vpop.f32.mrf.mxu0
  %v1304 = vadd.f32 0.0, %v1303
  %v1305 = vpop.f32.mrf.mxu0
  %v1306 = vpop.f32.mrf.mxu0
  %v1307 = vadd.f32 0.0, %v1306
  %v1308 = vpop.f32.mrf.mxu0
  %1309 = vmatprep.mubr.bf16.mxu0 0
  %1310 = vmatmul.mubr.bf16.gmra.mxu0 %v1011
  %v1311 = vpop.f32.mrf.mxu0
  %v1312 = vadd.f32 0.0, %v1311
  %v1313 = vpop.f32.mrf.mxu0
  %v1314 = vpop.f32.mrf.mxu0
  %v1315 = vadd.f32 0.0, %v1314
  %v1316 = vpop.f32.mrf.mxu0
  %1317 = vmatprep.mubr.bf16.mxu0 0
  %1318 = vmatmul.mubr.bf16.gmra.mxu0 %v1012
  %v1319 = vpop.f32.mrf.mxu0
  %v1320 = vadd.f32 0.0, %v1319
  %v1321 = vpop.f32.mrf.mxu0
  %v1322 = vpop.f32.mrf.mxu0
  %v1323 = vadd.f32 0.0, %v1322
  %v1324 = vpop.f32.mrf.mxu0
  %1325 = vmatprep.mubr.bf16.mxu0 0
  %1326 = vmatmul.mubr.bf16.gmra.mxu0 %v1013
  %v1327 = vpop.f32.mrf.mxu0
  %v1328 = vadd.f32 0.0, %v1327
  %v1329 = vpop.f32.mrf.mxu0
  %v1330 = vpop.f32.mrf.mxu0
  %v1331 = vadd.f32 0.0, %v1330
  %v1332 = vpop.f32.mrf.mxu0
  %1333 = vmatprep.mubr.bf16.mxu0 0
  %1334 = vmatmul.mubr.bf16.gmra.mxu0 %v1014
  %v1335 = vpop.f32.mrf.mxu0
  %v1336 = vadd.f32 0.0, %v1335
  %v1337 = vpop.f32.mrf.mxu0
  %v1338 = vpop.f32.mrf.mxu0
  %v1339 = vadd.f32 0.0, %v1338
  %v1340 = vpop.f32.mrf.mxu0
  %1341 = vmatprep.mubr.bf16.mxu0 0
  %1342 = vmatmul.mubr.bf16.gmra.mxu0 %v1015
  %v1343 = vpop.f32.mrf.mxu0
  %v1344 = vadd.f32 0.0, %v1343
  %v1345 = vpop.f32.mrf.mxu0
  %v1346 = vpop.f32.mrf.mxu0
  %v1347 = vadd.f32 0.0, %v1346
  %v1348 = vpop.f32.mrf.mxu0
  %1349 = vmatprep.mubr.bf16.mxu0 0
  %1350 = vmatmul.mubr.bf16.gmra.mxu0 %v1016
  %v1351 = vpop.f32.mrf.mxu0
  %v1352 = vadd.f32 0.0, %v1351
  %v1353 = vpop.f32.mrf.mxu0
  %v1354 = vpop.f32.mrf.mxu0
  %v1355 = vadd.f32 0.0, %v1354
  %v1356 = vpop.f32.mrf.mxu0
  %1357 = vmatprep.mubr.bf16.mxu0 0
  %1358 = vmatmul.mubr.bf16.gmra.mxu0 %v1017
  %v1359 = vpop.f32.mrf.mxu0
  %v1360 = vadd.f32 0.0, %v1359
  %v1361 = vpop.f32.mrf.mxu0
  %v1362 = vpop.f32.mrf.mxu0
  %v1363 = vadd.f32 0.0, %v1362
  %v1364 = vpop.f32.mrf.mxu0
  %1365 = vmatprep.mubr.bf16.mxu0 0
  %1366 = vmatmul.mubr.bf16.gmra.mxu0 %v1018
  %v1367 = vpop.f32.mrf.mxu0
  %v1368 = vadd.f32 0.0, %v1367
  %v1369 = vpop.f32.mrf.mxu0
  %v1370 = vpop.f32.mrf.mxu0
  %v1371 = vadd.f32 0.0, %v1370
  %v1372 = vpop.f32.mrf.mxu0
  %1373 = vmatprep.mubr.bf16.mxu0 0
  %1374 = vmatmul.mubr.bf16.gmra.mxu0 %v1019
  %v1375 = vpop.f32.mrf.mxu0
  %v1376 = vadd.f32 0.0, %v1375
  %v1377 = vpop.f32.mrf.mxu0
  %v1378 = vpop.f32.mrf.mxu0
  %v1379 = vadd.f32 0.0, %v1378
  %v1380 = vpop.f32.mrf.mxu0
  %1381 = vmatprep.mubr.bf16.mxu0 0
  %1382 = vmatmul.mubr.bf16.gmra.mxu0 %v1020
  %v1383 = vpop.f32.mrf.mxu0
  %v1384 = vadd.f32 0.0, %v1383
  %v1385 = vpop.f32.mrf.mxu0
  %v1386 = vpop.f32.mrf.mxu0
  %v1387 = vadd.f32 0.0, %v1386
  %v1388 = vpop.f32.mrf.mxu0
  %1389 = vdwg.mxu0
  %v1390 = vld [vmem:[%s6] sm:$0x1]
  %v1392 = vlaneseq
  %v1393 = vshrl.u32 %v1392, 7
  %v1394 = vsub.s32 0, %v1393
  %v1395 = vrot.slane %v1390, %v1394
  %v1397 = vmul.f32 %v1136, %v1395
  %v1398 = vmul.f32 %v1139, %v1395
  %v1399 = vmul.f32 %v1144, %v1395
  %v1400 = vmul.f32 %v1147, %v1395
  %v1401 = vmul.f32 %v1152, %v1395
  %v1402 = vmul.f32 %v1155, %v1395
  %v1403 = vmul.f32 %v1160, %v1395
  %v1404 = vmul.f32 %v1163, %v1395
  %v1405 = vmul.f32 %v1168, %v1395
  %v1406 = vmul.f32 %v1171, %v1395
  %v1407 = vmul.f32 %v1176, %v1395
  %v1408 = vmul.f32 %v1179, %v1395
  %v1409 = vmul.f32 %v1184, %v1395
  %v1410 = vmul.f32 %v1187, %v1395
  %v1411 = vmul.f32 %v1192, %v1395
  %v1412 = vmul.f32 %v1195, %v1395
  %v1413 = vmul.f32 %v1200, %v1395
  %v1414 = vmul.f32 %v1203, %v1395
  %v1415 = vmul.f32 %v1208, %v1395
  %v1416 = vmul.f32 %v1211, %v1395
  %v1417 = vmul.f32 %v1216, %v1395
  %v1418 = vmul.f32 %v1219, %v1395
  %v1419 = vmul.f32 %v1224, %v1395
  %v1420 = vmul.f32 %v1227, %v1395
  %v1421 = vmul.f32 %v1232, %v1395
  %v1422 = vmul.f32 %v1235, %v1395
  %v1423 = vmul.f32 %v1240, %v1395
  %v1424 = vmul.f32 %v1243, %v1395
  %v1425 = vmul.f32 %v1248, %v1395
  %v1426 = vmul.f32 %v1251, %v1395
  %v1427 = vmul.f32 %v1256, %v1395
  %v1428 = vmul.f32 %v1259, %v1395
  %v1429 = vmul.f32 %v1264, %v1395
  %v1430 = vmul.f32 %v1267, %v1395
  %v1431 = vmul.f32 %v1272, %v1395
  %v1432 = vmul.f32 %v1275, %v1395
  %v1433 = vmul.f32 %v1280, %v1395
  %v1434 = vmul.f32 %v1283, %v1395
  %v1435 = vmul.f32 %v1288, %v1395
  %v1436 = vmul.f32 %v1291, %v1395
  %v1437 = vmul.f32 %v1296, %v1395
  %v1438 = vmul.f32 %v1299, %v1395
  %v1439 = vmul.f32 %v1304, %v1395
  %v1440 = vmul.f32 %v1307, %v1395
  %v1441 = vmul.f32 %v1312, %v1395
  %v1442 = vmul.f32 %v1315, %v1395
  %v1443 = vmul.f32 %v1320, %v1395
  %v1444 = vmul.f32 %v1323, %v1395
  %v1445 = vmul.f32 %v1328, %v1395
  %v1446 = vmul.f32 %v1331, %v1395
  %v1447 = vmul.f32 %v1336, %v1395
  %v1448 = vmul.f32 %v1339, %v1395
  %v1449 = vmul.f32 %v1344, %v1395
  %v1450 = vmul.f32 %v1347, %v1395
  %v1451 = vmul.f32 %v1352, %v1395
  %v1452 = vmul.f32 %v1355, %v1395
  %v1453 = vmul.f32 %v1360, %v1395
  %v1454 = vmul.f32 %v1363, %v1395
  %v1455 = vmul.f32 %v1368, %v1395
  %v1456 = vmul.f32 %v1371, %v1395
  %v1457 = vmul.f32 %v1376, %v1395
  %v1458 = vmul.f32 %v1379, %v1395
  %v1459 = vmul.f32 %v1384, %v1395
  %v1460 = vmul.f32 %v1387, %v1395
  %v1461 = vld [vmem:[%s7] sm:$0x1]
  %v1463 = vlaneseq
  %v1464 = vshrl.u32 %v1463, 7
  %v1465 = vsub.s32 0, %v1464
  %v1466 = vrot.slane %v1461, %v1465
  %v1468 = vadd.f32 %v1397, %v1466
  %v1469 = vadd.f32 %v1398, %v1466
  %v1470 = vadd.f32 %v1399, %v1466
  %v1471 = vadd.f32 %v1400, %v1466
  %v1472 = vadd.f32 %v1401, %v1466
  %v1473 = vadd.f32 %v1402, %v1466
  %v1474 = vadd.f32 %v1403, %v1466
  %v1475 = vadd.f32 %v1404, %v1466
  %v1476 = vadd.f32 %v1405, %v1466
  %v1477 = vadd.f32 %v1406, %v1466
  %v1478 = vadd.f32 %v1407, %v1466
  %v1479 = vadd.f32 %v1408, %v1466
  %v1480 = vadd.f32 %v1409, %v1466
  %v1481 = vadd.f32 %v1410, %v1466
  %v1482 = vadd.f32 %v1411, %v1466
  %v1483 = vadd.f32 %v1412, %v1466
  %v1484 = vadd.f32 %v1413, %v1466
  %v1485 = vadd.f32 %v1414, %v1466
  %v1486 = vadd.f32 %v1415, %v1466
  %v1487 = vadd.f32 %v1416, %v1466
  %v1488 = vadd.f32 %v1417, %v1466
  %v1489 = vadd.f32 %v1418, %v1466
  %v1490 = vadd.f32 %v1419, %v1466
  %v1491 = vadd.f32 %v1420, %v1466
  %v1492 = vadd.f32 %v1421, %v1466
  %v1493 = vadd.f32 %v1422, %v1466
  %v1494 = vadd.f32 %v1423, %v1466
  %v1495 = vadd.f32 %v1424, %v1466
  %v1496 = vadd.f32 %v1425, %v1466
  %v1497 = vadd.f32 %v1426, %v1466
  %v1498 = vadd.f32 %v1427, %v1466
  %v1499 = vadd.f32 %v1428, %v1466
  %v1500 = vadd.f32 %v1429, %v1466
  %v1501 = vadd.f32 %v1430, %v1466
  %v1502 = vadd.f32 %v1431, %v1466
  %v1503 = vadd.f32 %v1432, %v1466
  %v1504 = vadd.f32 %v1433, %v1466
  %v1505 = vadd.f32 %v1434, %v1466
  %v1506 = vadd.f32 %v1435, %v1466
  %v1507 = vadd.f32 %v1436, %v1466
  %v1508 = vadd.f32 %v1437, %v1466
  %v1509 = vadd.f32 %v1438, %v1466
  %v1510 = vadd.f32 %v1439, %v1466
  %v1511 = vadd.f32 %v1440, %v1466
  %v1512 = vadd.f32 %v1441, %v1466
  %v1513 = vadd.f32 %v1442, %v1466
  %v1514 = vadd.f32 %v1443, %v1466
  %v1515 = vadd.f32 %v1444, %v1466
  %v1516 = vadd.f32 %v1445, %v1466
  %v1517 = vadd.f32 %v1446, %v1466
  %v1518 = vadd.f32 %v1447, %v1466
  %v1519 = vadd.f32 %v1448, %v1466
  %v1520 = vadd.f32 %v1449, %v1466
  %v1521 = vadd.f32 %v1450, %v1466
  %v1522 = vadd.f32 %v1451, %v1466
  %v1523 = vadd.f32 %v1452, %v1466
  %v1524 = vadd.f32 %v1453, %v1466
  %v1525 = vadd.f32 %v1454, %v1466
  %v1526 = vadd.f32 %v1455, %v1466
  %v1527 = vadd.f32 %v1456, %v1466
  %v1528 = vadd.f32 %v1457, %v1466
  %v1529 = vadd.f32 %v1458, %v1466
  %v1530 = vadd.f32 %v1459, %v1466
  %v1531 = vadd.f32 %v1460, %v1466
  %v1532 = vadd.f32 %v717, %v1468
  %v1533 = vadd.f32 %v718, %v1469
  %v1534 = vadd.f32 %v719, %v1470
  %v1535 = vadd.f32 %v720, %v1471
  %v1536 = vadd.f32 %v721, %v1472
  %v1537 = vadd.f32 %v722, %v1473
  %v1538 = vadd.f32 %v723, %v1474
  %v1539 = vadd.f32 %v724, %v1475
  %v1540 = vadd.f32 %v725, %v1476
  %v1541 = vadd.f32 %v726, %v1477
  %v1542 = vadd.f32 %v727, %v1478
  %v1543 = vadd.f32 %v728, %v1479
  %v1544 = vadd.f32 %v729, %v1480
  %v1545 = vadd.f32 %v730, %v1481
  %v1546 = vadd.f32 %v731, %v1482
  %v1547 = vadd.f32 %v732, %v1483
  %v1548 = vadd.f32 %v733, %v1484
  %v1549 = vadd.f32 %v734, %v1485
  %v1550 = vadd.f32 %v735, %v1486
  %v1551 = vadd.f32 %v736, %v1487
  %v1552 = vadd.f32 %v737, %v1488
  %v1553 = vadd.f32 %v738, %v1489
  %v1554 = vadd.f32 %v739, %v1490
  %v1555 = vadd.f32 %v740, %v1491
  %v1556 = vadd.f32 %v741, %v1492
  %v1557 = vadd.f32 %v742, %v1493
  %v1558 = vadd.f32 %v743, %v1494
  %v1559 = vadd.f32 %v744, %v1495
  %v1560 = vadd.f32 %v745, %v1496
  %v1561 = vadd.f32 %v746, %v1497
  %v1562 = vadd.f32 %v747, %v1498
  %v1563 = vadd.f32 %v748, %v1499
  %v1564 = vadd.f32 %v749, %v1500
  %v1565 = vadd.f32 %v750, %v1501
  %v1566 = vadd.f32 %v751, %v1502
  %v1567 = vadd.f32 %v752, %v1503
  %v1568 = vadd.f32 %v753, %v1504
  %v1569 = vadd.f32 %v754, %v1505
  %v1570 = vadd.f32 %v755, %v1506
  %v1571 = vadd.f32 %v756, %v1507
  %v1572 = vadd.f32 %v757, %v1508
  %v1573 = vadd.f32 %v758, %v1509
  %v1574 = vadd.f32 %v759, %v1510
  %v1575 = vadd.f32 %v760, %v1511
  %v1576 = vadd.f32 %v761, %v1512
  %v1577 = vadd.f32 %v762, %v1513
  %v1578 = vadd.f32 %v763, %v1514
  %v1579 = vadd.f32 %v764, %v1515
  %v1580 = vadd.f32 %v765, %v1516
  %v1581 = vadd.f32 %v766, %v1517
  %v1582 = vadd.f32 %v767, %v1518
  %v1583 = vadd.f32 %v768, %v1519
  %v1584 = vadd.f32 %v769, %v1520
  %v1585 = vadd.f32 %v770, %v1521
  %v1586 = vadd.f32 %v771, %v1522
  %v1587 = vadd.f32 %v772, %v1523
  %v1588 = vadd.f32 %v773, %v1524
  %v1589 = vadd.f32 %v774, %v1525
  %v1590 = vadd.f32 %v775, %v1526
  %v1591 = vadd.f32 %v776, %v1527
  %v1592 = vadd.f32 %v777, %v1528
  %v1593 = vadd.f32 %v778, %v1529
  %v1594 = vadd.f32 %v779, %v1530
  %v1595 = vadd.f32 %v780, %v1531
  %v1596 = vmax.f32 %v1532, 0.0
  %v1597 = vmax.f32 %v1533, 0.0
  %v1598 = vmax.f32 %v1534, 0.0
  %v1599 = vmax.f32 %v1535, 0.0
  %v1600 = vmax.f32 %v1536, 0.0
  %v1601 = vmax.f32 %v1537, 0.0
  %v1602 = vmax.f32 %v1538, 0.0
  %v1603 = vmax.f32 %v1539, 0.0
  %v1604 = vmax.f32 %v1540, 0.0
  %v1605 = vmax.f32 %v1541, 0.0
  %v1606 = vmax.f32 %v1542, 0.0
  %v1607 = vmax.f32 %v1543, 0.0
  %v1608 = vmax.f32 %v1544, 0.0
  %v1609 = vmax.f32 %v1545, 0.0
  %v1610 = vmax.f32 %v1546, 0.0
  %v1611 = vmax.f32 %v1547, 0.0
  %v1612 = vmax.f32 %v1548, 0.0
  %v1613 = vmax.f32 %v1549, 0.0
  %v1614 = vmax.f32 %v1550, 0.0
  %v1615 = vmax.f32 %v1551, 0.0
  %v1616 = vmax.f32 %v1552, 0.0
  %v1617 = vmax.f32 %v1553, 0.0
  %v1618 = vmax.f32 %v1554, 0.0
  %v1619 = vmax.f32 %v1555, 0.0
  %v1620 = vmax.f32 %v1556, 0.0
  %v1621 = vmax.f32 %v1557, 0.0
  %v1622 = vmax.f32 %v1558, 0.0
  %v1623 = vmax.f32 %v1559, 0.0
  %v1624 = vmax.f32 %v1560, 0.0
  %v1625 = vmax.f32 %v1561, 0.0
  %v1626 = vmax.f32 %v1562, 0.0
  %v1627 = vmax.f32 %v1563, 0.0
  %v1628 = vmax.f32 %v1564, 0.0
  %v1629 = vmax.f32 %v1565, 0.0
  %v1630 = vmax.f32 %v1566, 0.0
  %v1631 = vmax.f32 %v1567, 0.0
  %v1632 = vmax.f32 %v1568, 0.0
  %v1633 = vmax.f32 %v1569, 0.0
  %v1634 = vmax.f32 %v1570, 0.0
  %v1635 = vmax.f32 %v1571, 0.0
  %v1636 = vmax.f32 %v1572, 0.0
  %v1637 = vmax.f32 %v1573, 0.0
  %v1638 = vmax.f32 %v1574, 0.0
  %v1639 = vmax.f32 %v1575, 0.0
  %v1640 = vmax.f32 %v1576, 0.0
  %v1641 = vmax.f32 %v1577, 0.0
  %v1642 = vmax.f32 %v1578, 0.0
  %v1643 = vmax.f32 %v1579, 0.0
  %v1644 = vmax.f32 %v1580, 0.0
  %v1645 = vmax.f32 %v1581, 0.0
  %v1646 = vmax.f32 %v1582, 0.0
  %v1647 = vmax.f32 %v1583, 0.0
  %v1648 = vmax.f32 %v1584, 0.0
  %v1649 = vmax.f32 %v1585, 0.0
  %v1650 = vmax.f32 %v1586, 0.0
  %v1651 = vmax.f32 %v1587, 0.0
  %v1652 = vmax.f32 %v1588, 0.0
  %v1653 = vmax.f32 %v1589, 0.0
  %v1654 = vmax.f32 %v1590, 0.0
  %v1655 = vmax.f32 %v1591, 0.0
  %v1656 = vmax.f32 %v1592, 0.0
  %v1657 = vmax.f32 %v1593, 0.0
  %v1658 = vmax.f32 %v1594, 0.0
  %v1659 = vmax.f32 %v1595, 0.0
  %v1660 = vpack.c.bf16 %v1597, %v1596
  %v1661 = vpack.c.bf16 %v1599, %v1598
  %v1662 = vpack.c.bf16 %v1601, %v1600
  %v1663 = vpack.c.bf16 %v1603, %v1602
  %v1664 = vpack.c.bf16 %v1605, %v1604
  %v1665 = vpack.c.bf16 %v1607, %v1606
  %v1666 = vpack.c.bf16 %v1609, %v1608
  %v1667 = vpack.c.bf16 %v1611, %v1610
  %v1668 = vpack.c.bf16 %v1613, %v1612
  %v1669 = vpack.c.bf16 %v1615, %v1614
  %v1670 = vpack.c.bf16 %v1617, %v1616
  %v1671 = vpack.c.bf16 %v1619, %v1618
  %v1672 = vpack.c.bf16 %v1621, %v1620
  %v1673 = vpack.c.bf16 %v1623, %v1622
  %v1674 = vpack.c.bf16 %v1625, %v1624
  %v1675 = vpack.c.bf16 %v1627, %v1626
  %v1676 = vpack.c.bf16 %v1629, %v1628
  %v1677 = vpack.c.bf16 %v1631, %v1630
  %v1678 = vpack.c.bf16 %v1633, %v1632
  %v1679 = vpack.c.bf16 %v1635, %v1634
  %v1680 = vpack.c.bf16 %v1637, %v1636
  %v1681 = vpack.c.bf16 %v1639, %v1638
  %v1682 = vpack.c.bf16 %v1641, %v1640
  %v1683 = vpack.c.bf16 %v1643, %v1642
  %v1684 = vpack.c.bf16 %v1645, %v1644
  %v1685 = vpack.c.bf16 %v1647, %v1646
  %v1686 = vpack.c.bf16 %v1649, %v1648
  %v1687 = vpack.c.bf16 %v1651, %v1650
  %v1688 = vpack.c.bf16 %v1653, %v1652
  %v1689 = vpack.c.bf16 %v1655, %v1654
  %v1690 = vpack.c.bf16 %v1657, %v1656
  %v1691 = vpack.c.bf16 %v1659, %v1658
  %v1724 = vunpack.c.l.b16 %v1660
  %v1725 = vunpack.c.h.b16 %v1660
  %v1726 = vunpack.c.l.b16 %v1661
  %v1727 = vunpack.c.h.b16 %v1661
  %v1728 = vunpack.c.l.b16 %v1662
  %v1729 = vunpack.c.h.b16 %v1662
  %v1730 = vunpack.c.l.b16 %v1663
  %v1731 = vunpack.c.h.b16 %v1663
  %v1732 = vunpack.c.l.b16 %v1664
  %v1733 = vunpack.c.h.b16 %v1664
  %v1734 = vunpack.c.l.b16 %v1665
  %v1735 = vunpack.c.h.b16 %v1665
  %v1736 = vunpack.c.l.b16 %v1666
  %v1737 = vunpack.c.h.b16 %v1666
  %v1738 = vunpack.c.l.b16 %v1667
  %v1739 = vunpack.c.h.b16 %v1667
  %v1740 = vunpack.c.l.b16 %v1668
  %v1741 = vunpack.c.h.b16 %v1668
  %v1742 = vunpack.c.l.b16 %v1669
  %v1743 = vunpack.c.h.b16 %v1669
  %v1744 = vunpack.c.l.b16 %v1670
  %v1745 = vunpack.c.h.b16 %v1670
  %v1746 = vunpack.c.l.b16 %v1671
  %v1747 = vunpack.c.h.b16 %v1671
  %v1748 = vunpack.c.l.b16 %v1672
  %v1749 = vunpack.c.h.b16 %v1672
  %v1750 = vunpack.c.l.b16 %v1673
  %v1751 = vunpack.c.h.b16 %v1673
  %v1752 = vunpack.c.l.b16 %v1674
  %v1753 = vunpack.c.h.b16 %v1674
  %v1754 = vunpack.c.l.b16 %v1675
  %v1755 = vunpack.c.h.b16 %v1675
  %v1756 = vunpack.c.l.b16 %v1676
  %v1757 = vunpack.c.h.b16 %v1676
  %v1758 = vunpack.c.l.b16 %v1677
  %v1759 = vunpack.c.h.b16 %v1677
  %v1760 = vunpack.c.l.b16 %v1678
  %v1761 = vunpack.c.h.b16 %v1678
  %v1762 = vunpack.c.l.b16 %v1679
  %v1763 = vunpack.c.h.b16 %v1679
  %v1764 = vunpack.c.l.b16 %v1680
  %v1765 = vunpack.c.h.b16 %v1680
  %v1766 = vunpack.c.l.b16 %v1681
  %v1767 = vunpack.c.h.b16 %v1681
  %v1768 = vunpack.c.l.b16 %v1682
  %v1769 = vunpack.c.h.b16 %v1682
  %v1770 = vunpack.c.l.b16 %v1683
  %v1771 = vunpack.c.h.b16 %v1683
  %v1772 = vunpack.c.l.b16 %v1684
  %v1773 = vunpack.c.h.b16 %v1684
  %v1774 = vunpack.c.l.b16 %v1685
  %v1775 = vunpack.c.h.b16 %v1685
  %v1776 = vunpack.c.l.b16 %v1686
  %v1777 = vunpack.c.h.b16 %v1686
  %v1778 = vunpack.c.l.b16 %v1687
  %v1779 = vunpack.c.h.b16 %v1687
  %v1780 = vunpack.c.l.b16 %v1688
  %v1781 = vunpack.c.h.b16 %v1688
  %v1782 = vunpack.c.l.b16 %v1689
  %v1783 = vunpack.c.h.b16 %v1689
  %v1784 = vunpack.c.l.b16 %v1690
  %v1785 = vunpack.c.h.b16 %v1690
  %v1786 = vunpack.c.l.b16 %v1691
  %v1787 = vunpack.c.h.b16 %v1691
  %v1788 = vpack.c.b16 %v1724, %v1724
  %v1789 = vpack.c.b16 %v1725, %v1725
  %v1790 = vpack.c.b16 %v1726, %v1726
  %v1791 = vpack.c.b16 %v1727, %v1727
  %v1792 = vpack.c.b16 %v1728, %v1728
  %v1793 = vpack.c.b16 %v1729, %v1729
  %v1794 = vpack.c.b16 %v1730, %v1730
  %v1795 = vpack.c.b16 %v1731, %v1731
  %v1796 = vpack.c.b16 %v1732, %v1732
  %v1797 = vpack.c.b16 %v1733, %v1733
  %v1798 = vpack.c.b16 %v1734, %v1734
  %v1799 = vpack.c.b16 %v1735, %v1735
  %v1800 = vpack.c.b16 %v1736, %v1736
  %v1801 = vpack.c.b16 %v1737, %v1737
  %v1802 = vpack.c.b16 %v1738, %v1738
  %v1803 = vpack.c.b16 %v1739, %v1739
  %v1804 = vpack.c.b16 %v1740, %v1740
  %v1805 = vpack.c.b16 %v1741, %v1741
  %v1806 = vpack.c.b16 %v1742, %v1742
  %v1807 = vpack.c.b16 %v1743, %v1743
  %v1808 = vpack.c.b16 %v1744, %v1744
  %v1809 = vpack.c.b16 %v1745, %v1745
  %v1810 = vpack.c.b16 %v1746, %v1746
  %v1811 = vpack.c.b16 %v1747, %v1747
  %v1812 = vpack.c.b16 %v1748, %v1748
  %v1813 = vpack.c.b16 %v1749, %v1749
  %v1814 = vpack.c.b16 %v1750, %v1750
  %v1815 = vpack.c.b16 %v1751, %v1751
  %v1816 = vpack.c.b16 %v1752, %v1752
  %v1817 = vpack.c.b16 %v1753, %v1753
  %v1818 = vpack.c.b16 %v1754, %v1754
  %v1819 = vpack.c.b16 %v1755, %v1755
  %v1820 = vpack.c.b16 %v1756, %v1756
  %v1821 = vpack.c.b16 %v1757, %v1757
  %v1822 = vpack.c.b16 %v1758, %v1758
  %v1823 = vpack.c.b16 %v1759, %v1759
  %v1824 = vpack.c.b16 %v1760, %v1760
  %v1825 = vpack.c.b16 %v1761, %v1761
  %v1826 = vpack.c.b16 %v1762, %v1762
  %v1827 = vpack.c.b16 %v1763, %v1763
  %v1828 = vpack.c.b16 %v1764, %v1764
  %v1829 = vpack.c.b16 %v1765, %v1765
  %v1830 = vpack.c.b16 %v1766, %v1766
  %v1831 = vpack.c.b16 %v1767, %v1767
  %v1832 = vpack.c.b16 %v1768, %v1768
  %v1833 = vpack.c.b16 %v1769, %v1769
  %v1834 = vpack.c.b16 %v1770, %v1770
  %v1835 = vpack.c.b16 %v1771, %v1771
  %v1836 = vpack.c.b16 %v1772, %v1772
  %v1837 = vpack.c.b16 %v1773, %v1773
  %v1838 = vpack.c.b16 %v1774, %v1774
  %v1839 = vpack.c.b16 %v1775, %v1775
  %v1840 = vpack.c.b16 %v1776, %v1776
  %v1841 = vpack.c.b16 %v1777, %v1777
  %v1842 = vpack.c.b16 %v1778, %v1778
  %v1843 = vpack.c.b16 %v1779, %v1779
  %v1844 = vpack.c.b16 %v1780, %v1780
  %v1845 = vpack.c.b16 %v1781, %v1781
  %v1846 = vpack.c.b16 %v1782, %v1782
  %v1847 = vpack.c.b16 %v1783, %v1783
  %v1848 = vpack.c.b16 %v1784, %v1784
  %v1849 = vpack.c.b16 %v1785, %v1785
  %v1850 = vpack.c.b16 %v1786, %v1786
  %v1851 = vpack.c.b16 %v1787, %v1787
  %1916 = vst [vmem:[%s8] sm:$0xf] %v1788
  %1917 = vst [vmem:[%s8 + $0x4] sm:$0xf] %v1789
  %1918 = vst [vmem:[%s8 + $0x8] sm:$0xf] %v1790
  %1919 = vst [vmem:[%s8 + $0xc] sm:$0xf] %v1791
  %1920 = vst [vmem:[%s8 + $0x10] sm:$0xf] %v1792
  %1921 = vst [vmem:[%s8 + $0x14] sm:$0xf] %v1793
  %1922 = vst [vmem:[%s8 + $0x18] sm:$0xf] %v1794
  %1923 = vst [vmem:[%s8 + $0x1c] sm:$0xf] %v1795
  %1924 = vst [vmem:[%s8 + $0x20] sm:$0xf] %v1796
  %1925 = vst [vmem:[%s8 + $0x24] sm:$0xf] %v1797
  %1926 = vst [vmem:[%s8 + $0x28] sm:$0xf] %v1798
  %1927 = vst [vmem:[%s8 + $0x2c] sm:$0xf] %v1799
  %1928 = vst [vmem:[%s8 + $0x30] sm:$0xf] %v1800
  %1929 = vst [vmem:[%s8 + $0x34] sm:$0xf] %v1801
  %1930 = vst [vmem:[%s8 + $0x38] sm:$0xf] %v1802
  %1931 = vst [vmem:[%s8 + $0x3c] sm:$0xf] %v1803
  %1932 = vst [vmem:[%s8 + $0x40] sm:$0xf] %v1804
  %1933 = vst [vmem:[%s8 + $0x44] sm:$0xf] %v1805
  %1934 = vst [vmem:[%s8 + $0x48] sm:$0xf] %v1806
  %1935 = vst [vmem:[%s8 + $0x4c] sm:$0xf] %v1807
  %1936 = vst [vmem:[%s8 + $0x50] sm:$0xf] %v1808
  %1937 = vst [vmem:[%s8 + $0x54] sm:$0xf] %v1809
  %1938 = vst [vmem:[%s8 + $0x58] sm:$0xf] %v1810
  %1939 = vst [vmem:[%s8 + $0x5c] sm:$0xf] %v1811
  %1940 = vst [vmem:[%s8 + $0x60] sm:$0xf] %v1812
  %1941 = vst [vmem:[%s8 + $0x64] sm:$0xf] %v1813
  %1942 = vst [vmem:[%s8 + $0x68] sm:$0xf] %v1814
  %1943 = vst [vmem:[%s8 + $0x6c] sm:$0xf] %v1815
  %1944 = vst [vmem:[%s8 + $0x70] sm:$0xf] %v1816
  %1945 = vst [vmem:[%s8 + $0x74] sm:$0xf] %v1817
  %1946 = vst [vmem:[%s8 + $0x78] sm:$0xf] %v1818
  %1947 = vst [vmem:[%s8 + $0x7c] sm:$0xf] %v1819
  %1948 = vst [vmem:[%s8 + $0x80] sm:$0xf] %v1820
  %1949 = vst [vmem:[%s8 + $0x84] sm:$0xf] %v1821
  %1950 = vst [vmem:[%s8 + $0x88] sm:$0xf] %v1822
  %1951 = vst [vmem:[%s8 + $0x8c] sm:$0xf] %v1823
  %1952 = vst [vmem:[%s8 + $0x90] sm:$0xf] %v1824
  %1953 = vst [vmem:[%s8 + $0x94] sm:$0xf] %v1825
  %1954 = vst [vmem:[%s8 + $0x98] sm:$0xf] %v1826
  %1955 = vst [vmem:[%s8 + $0x9c] sm:$0xf] %v1827
  %1956 = vst [vmem:[%s8 + $0xa0] sm:$0xf] %v1828
  %1957 = vst [vmem:[%s8 + $0xa4] sm:$0xf] %v1829
  %1958 = vst [vmem:[%s8 + $0xa8] sm:$0xf] %v1830
  %1959 = vst [vmem:[%s8 + $0xac] sm:$0xf] %v1831
  %1960 = vst [vmem:[%s8 + $0xb0] sm:$0xf] %v1832
  %1961 = vst [vmem:[%s8 + $0xb4] sm:$0xf] %v1833
  %1962 = vst [vmem:[%s8 + $0xb8] sm:$0xf] %v1834
  %1963 = vst [vmem:[%s8 + $0xbc] sm:$0xf] %v1835
  %1964 = vst [vmem:[%s8 + $0xc0] sm:$0xf] %v1836
  %1965 = vst [vmem:[%s8 + $0xc4] sm:$0xf] %v1837
  %1966 = vst [vmem:[%s8 + $0xc8] sm:$0xf] %v1838
  %1967 = vst [vmem:[%s8 + $0xcc] sm:$0xf] %v1839
  %1968 = vst [vmem:[%s8 + $0xd0] sm:$0xf] %v1840
  %1969 = vst [vmem:[%s8 + $0xd4] sm:$0xf] %v1841
  %1970 = vst [vmem:[%s8 + $0xd8] sm:$0xf] %v1842
  %1971 = vst [vmem:[%s8 + $0xdc] sm:$0xf] %v1843
  %1972 = vst [vmem:[%s8 + $0xe0] sm:$0xf] %v1844
  %1973 = vst [vmem:[%s8 + $0xe4] sm:$0xf] %v1845
  %1974 = vst [vmem:[%s8 + $0xe8] sm:$0xf] %v1846
  %1975 = vst [vmem:[%s8 + $0xec] sm:$0xf] %v1847
  %1976 = vst [vmem:[%s8 + $0xf0] sm:$0xf] %v1848
  %1977 = vst [vmem:[%s8 + $0xf4] sm:$0xf] %v1849
  %1978 = vst [vmem:[%s8 + $0xf8] sm:$0xf] %v1850
  %1979 = vst [vmem:[%s8 + $0xfc] sm:$0xf] %v1851
  // Predicated region
  $region34: #{bottleneck_forward.3} parent=0 // pred_check
    _
  $region35: #{bottleneck_forward.3} parent=0 // pred_check_branch
    %1981 = sbr.rel (0) target = $region37
  $region36: #{bottleneck_forward.3} parent=0 // pred_region
    _
  $region37: #{bottleneck_forward.3} parent=0 // pred_fallthru
    _
  // Predicated region
  $region38: #{bottleneck_forward.3} parent=0 // pred_check
    _
  $region39: #{bottleneck_forward.3} parent=0 // pred_check_branch
    %1983 = sbr.rel (0) target = $region41
  $region40: #{bottleneck_forward.3} parent=0 // pred_region
    _
  $region41: #{bottleneck_forward.3} parent=0 // pred_fallthru
    _

// kernel: bottleneck_forward.2
$region0: #{bottleneck_forward.2}
  #allocation0 [shape = 'u32[]', space=smem, size = 0x4, offset = 0x4, fixed_abs, tag = 'smem constant byte address 0x4 - core index']
  #allocation1 [shape = 'u32[144,128]{1,0:T(1,128)}', space=vmem, size = 0x12000, scoped, tag = 'internal scratch']
  #allocation2 [shape = 'bf16[18,16,384]{2,1,0:T(8,128)(2,1)}', space=vmem, size = 0x36000, scoped, tag = 'scratch operand']
  %s0 = inlined_call_operand.vmem [shape: bf16[2,16,16,128], index: 0, kind: input, shape index: {}]
  %s1 = inlined_call_operand.vmem [shape: bf16[128,128], index: 1, kind: input, shape index: {}]
  %s2 = inlined_call_operand.vmem [shape: f32[1,128], index: 2, kind: input, shape index: {}]
  %s3 = inlined_call_operand.vmem [shape: f32[1,128], index: 3, kind: input, shape index: {}]
  %s4 = inlined_call_operand.vmem [shape: bf16[3,384,128], index: 4, kind: input, shape index: {}]
  %s5 = inlined_call_operand.vmem [shape: f32[1,128], index: 5, kind: input, shape index: {}]
  %s6 = inlined_call_operand.vmem [shape: f32[1,128], index: 6, kind: input, shape index: {}]
  %s7 = inlined_call_operand.vmem [shape: bf16[2,16,16,128], index: 7, kind: output, shape index: {}]
  %s8 = sld [smem:[#allocation0]]
  $region61: #{bottleneck_forward.2} parent=0
    _
  %s10 = ssub.s32 1, %s8
  %s11 = scalar_select 0, %s10, %s8
  loop: start=0, step=1, limit=4
  $region2: #{bottleneck_forward.2} parent=0 // loop_pre_header
    _
  $region3: #{bottleneck_forward.2} parent=0 // loop_header
    %s13 = sphi 0, %s17
    %p14 = scmp.ge.s32.totalorder %s13, 4
    %s23 = sphi 0, %s25
    %s26 = sphi 0, %s23
    %s27 = sphi 0, %s26
    %s43 = sphi 0, %s27
    %s47 = sphi 0, %s47
    %s49 = sphi 0, %s47
    %s50 = sphi 0, %s49
    %s64 = sphi 0, %s50
    %s68 = sphi 0, %s68
    %s70 = sphi 0, %s68
    %s71 = sphi 0, %s70
    %s85 = sphi 0, %s71
    %s89 = sphi 0, %s89
    %s91 = sphi 0, %s89
    %s92 = sphi 0, %s91
    %s106 = sphi 0, %s92
    %s110 = sphi 0, %s110
    %s112 = sphi 0, %s110
    %s113 = sphi 0, %s112
    %s127 = sphi 0, %s113
    %s131 = sphi 0, %s131
    %s133 = sphi 0, %s131
    %s134 = sphi 0, %s133
    %s148 = sphi 0, %s134
    %s152 = sphi 0, %s152
    %s154 = sphi 0, %s152
    %s155 = sphi 0, %s154
    %s169 = sphi 0, %s155
    %s175 = sphi 0, %s177
    %s178 = sphi 0, %s175
    %s179 = sphi 0, %s178
    %s195 = sphi 0, %s179
  $region4: #{bottleneck_forward.2} parent=0 // loop_header_branch
    %16 = sbr.rel (%p14) target = $region8
  $region5: #{bottleneck_forward.2} parent=0 // loop_body
    %s18 = ssub.s32 %s13, 1
    %s19 = ssub.s32 %s13, 2
    %s20 = sadd.s32 %s13, 1
    %s21 = ssub.s32 %s13, %s20
    %p22 = scmp.eq.s32.totalorder %s21, 0
    %s24 = sadd.s32 %s23, 1
    %s25 = scalar_select %p22, %s23, %s24
    %p28 = pneg %p22
    %p29 = scmp.eq.s32.totalorder %s13, 1
    %p30 = por %p28, %p29
    %p31 = scmp.ne.s32.totalorder %s23, %s26
    %p32 = scmp.eq.s32.totalorder %s13, 0
    %p33 = por %p31, %p32
    %p34 = scmp.ne.s32.totalorder %s23, %s26
    %p35 = scmp.eq.s32.totalorder %s18, 1
    %p36 = por %p34, %p35
    %p37 = scmp.ne.s32.totalorder %s26, %s27
    %p38 = scmp.eq.s32.totalorder %s18, 0
    %p39 = por %p37, %p38
    %p40 = scmp.ne.s32.totalorder %s26, %s27
    %p41 = scmp.eq.s32.totalorder %s19, 1
    %p42 = por %p40, %p41
    %p44 = scmp.ne.s32.totalorder %s27, %s43
    %p45 = scmp.eq.s32.totalorder %s19, 0
    %p46 = por %p44, %p45
    %s48 = sadd.s32 %s47, 1
    %p51 = scmp.eq.s32.totalorder %s13, 1
    %p52 = scmp.ne.s32.totalorder %s47, %s49
    %p53 = scmp.eq.s32.totalorder %s13, 0
    %p54 = por %p52, %p53
    %p55 = scmp.ne.s32.totalorder %s47, %s49
    %p56 = scmp.eq.s32.totalorder %s18, 1
    %p57 = por %p55, %p56
    %p58 = scmp.ne.s32.totalorder %s49, %s50
    %p59 = scmp.eq.s32.totalorder %s18, 0
    %p60 = por %p58, %p59
    %p61 = scmp.ne.s32.totalorder %s49, %s50
    %p62 = scmp.eq.s32.totalorder %s19, 1
    %p63 = por %p61, %p62
    %p65 = scmp.ne.s32.totalorder %s50, %s64
    %p66 = scmp.eq.s32.totalorder %s19, 0
    %p67 = por %p65, %p66
    %s69 = sadd.s32 %s68, 1
    %p72 = scmp.eq.s32.totalorder %s13, 1
    %p73 = scmp.ne.s32.totalorder %s68, %s70
    %p74 = scmp.eq.s32.totalorder %s13, 0
    %p75 = por %p73, %p74
    %p76 = scmp.ne.s32.totalorder %s68, %s70
    %p77 = scmp.eq.s32.totalorder %s18, 1
    %p78 = por %p76, %p77
    %p79 = scmp.ne.s32.totalorder %s70, %s71
    %p80 = scmp.eq.s32.totalorder %s18, 0
    %p81 = por %p79, %p80
    %p82 = scmp.ne.s32.totalorder %s70, %s71
    %p83 = scmp.eq.s32.totalorder %s19, 1
    %p84 = por %p82, %p83
    %p86 = scmp.ne.s32.totalorder %s71, %s85
    %p87 = scmp.eq.s32.totalorder %s19, 0
    %p88 = por %p86, %p87
    %s90 = sadd.s32 %s89, 1
    %p93 = scmp.eq.s32.totalorder %s13, 1
    %p94 = scmp.ne.s32.totalorder %s89, %s91
    %p95 = scmp.eq.s32.totalorder %s13, 0
    %p96 = por %p94, %p95
    %p97 = scmp.ne.s32.totalorder %s89, %s91
    %p98 = scmp.eq.s32.totalorder %s18, 1
    %p99 = por %p97, %p98
    %p100 = scmp.ne.s32.totalorder %s91, %s92
    %p101 = scmp.eq.s32.totalorder %s18, 0
    %p102 = por %p100, %p101
    %p103 = scmp.ne.s32.totalorder %s91, %s92
    %p104 = scmp.eq.s32.totalorder %s19, 1
    %p105 = por %p103, %p104
    %p107 = scmp.ne.s32.totalorder %s92, %s106
    %p108 = scmp.eq.s32.totalorder %s19, 0
    %p109 = por %p107, %p108
    %s111 = sadd.s32 %s110, 1
    %p114 = scmp.eq.s32.totalorder %s13, 1
    %p115 = scmp.ne.s32.totalorder %s110, %s112
    %p116 = scmp.eq.s32.totalorder %s13, 0
    %p117 = por %p115, %p116
    %p118 = scmp.ne.s32.totalorder %s110, %s112
    %p119 = scmp.eq.s32.totalorder %s18, 1
    %p120 = por %p118, %p119
    %p121 = scmp.ne.s32.totalorder %s112, %s113
    %p122 = scmp.eq.s32.totalorder %s18, 0
    %p123 = por %p121, %p122
    %p124 = scmp.ne.s32.totalorder %s112, %s113
    %p125 = scmp.eq.s32.totalorder %s19, 1
    %p126 = por %p124, %p125
    %p128 = scmp.ne.s32.totalorder %s113, %s127
    %p129 = scmp.eq.s32.totalorder %s19, 0
    %p130 = por %p128, %p129
    %s132 = sadd.s32 %s131, 1
    %p135 = scmp.eq.s32.totalorder %s13, 1
    %p136 = scmp.ne.s32.totalorder %s131, %s133
    %p137 = scmp.eq.s32.totalorder %s13, 0
    %p138 = por %p136, %p137
    %p139 = scmp.ne.s32.totalorder %s131, %s133
    %p140 = scmp.eq.s32.totalorder %s18, 1
    %p141 = por %p139, %p140
    %p142 = scmp.ne.s32.totalorder %s133, %s134
    %p143 = scmp.eq.s32.totalorder %s18, 0
    %p144 = por %p142, %p143
    %p145 = scmp.ne.s32.totalorder %s133, %s134
    %p146 = scmp.eq.s32.totalorder %s19, 1
    %p147 = por %p145, %p146
    %p149 = scmp.ne.s32.totalorder %s134, %s148
    %p150 = scmp.eq.s32.totalorder %s19, 0
    %p151 = por %p149, %p150
    %s153 = sadd.s32 %s152, 1
    %p156 = scmp.eq.s32.totalorder %s13, 1
    %p157 = scmp.ne.s32.totalorder %s152, %s154
    %p158 = scmp.eq.s32.totalorder %s13, 0
    %p159 = por %p157, %p158
    %p160 = scmp.ne.s32.totalorder %s152, %s154
    %p161 = scmp.eq.s32.totalorder %s18, 1
    %p162 = por %p160, %p161
    %p163 = scmp.ne.s32.totalorder %s154, %s155
    %p164 = scmp.eq.s32.totalorder %s18, 0
    %p165 = por %p163, %p164
    %p166 = scmp.ne.s32.totalorder %s154, %s155
    %p167 = scmp.eq.s32.totalorder %s19, 1
    %p168 = por %p166, %p167
    %p170 = scmp.ne.s32.totalorder %s155, %s169
    %p171 = scmp.eq.s32.totalorder %s19, 0
    %p172 = por %p170, %p171
    %s173 = ssub.s32 %s13, %s20
    %p174 = scmp.eq.s32.totalorder %s173, 0
    %s176 = sadd.s32 %s175, 1
    %s177 = scalar_select %p174, %s175, %s176
    %p180 = pneg %p174
    %p181 = scmp.eq.s32.totalorder %s13, 1
    %p182 = por %p180, %p181
    %p183 = scmp.ne.s32.totalorder %s175, %s178
    %p184 = scmp.eq.s32.totalorder %s13, 0
    %p185 = por %p183, %p184
    %p186 = scmp.ne.s32.totalorder %s175, %s178
    %p187 = scmp.eq.s32.totalorder %s18, 1
    %p188 = por %p186, %p187
    %p189 = scmp.ne.s32.totalorder %s178, %s179
    %p190 = scmp.eq.s32.totalorder %s18, 0
    %p191 = por %p189, %p190
    %p192 = scmp.ne.s32.totalorder %s178, %s179
    %p193 = scmp.eq.s32.totalorder %s19, 1
    %p194 = por %p192, %p193
    %p196 = scmp.ne.s32.totalorder %s179, %s195
    %p197 = scmp.eq.s32.totalorder %s19, 0
    %p198 = por %p196, %p197
    %p199 = scmp.le.s32.totalorder 1, %s13
    %p200 = scmp.lt.s32.totalorder %s13, 3
    %p201 = pnand %p199, %p200
    %p202 = pneg %p201
    // Predicated region
    $region9: #{bottleneck_forward.2} parent=5 // pred_check
      _
    $region10: #{bottleneck_forward.2} parent=5 // pred_check_branch
      %204 = sbr.rel (%p201) target = $region12
    $region11: #{bottleneck_forward.2} parent=5 // pred_region
      %s205 = ssub.s32 %s13, 1
      // Predicated region
      $region13: #{bottleneck_forward.2} parent=11 // pred_check
        %p206 = pneg %p60
      $region14: #{bottleneck_forward.2} parent=11 // pred_check_branch
        %208 = sbr.rel (%p206) target = $region16
      $region15: #{bottleneck_forward.2} parent=11 // pred_region
        _
      $region16: #{bottleneck_forward.2} parent=11 // pred_fallthru
        _
      // Predicated region
      $region17: #{bottleneck_forward.2} parent=11 // pred_check
        %p209 = pneg %p81
      $region18: #{bottleneck_forward.2} parent=11 // pred_check_branch
        %211 = sbr.rel (%p209) target = $region20
      $region19: #{bottleneck_forward.2} parent=11 // pred_region
        _
      $region20: #{bottleneck_forward.2} parent=11 // pred_fallthru
        _
      // Predicated region
      $region21: #{bottleneck_forward.2} parent=11 // pred_check
        %p212 = pneg %p102
      $region22: #{bottleneck_forward.2} parent=11 // pred_check_branch
        %214 = sbr.rel (%p212) target = $region24
      $region23: #{bottleneck_forward.2} parent=11 // pred_region
        _
      $region24: #{bottleneck_forward.2} parent=11 // pred_fallthru
        _
      // Predicated region
      $region25: #{bottleneck_forward.2} parent=11 // pred_check
        %p215 = pneg %p123
      $region26: #{bottleneck_forward.2} parent=11 // pred_check_branch
        %217 = sbr.rel (%p215) target = $region28
      $region27: #{bottleneck_forward.2} parent=11 // pred_region
        _
      $region28: #{bottleneck_forward.2} parent=11 // pred_fallthru
        _
      // Predicated region
      $region29: #{bottleneck_forward.2} parent=11 // pred_check
        %p218 = pneg %p144
      $region30: #{bottleneck_forward.2} parent=11 // pred_check_branch
        %220 = sbr.rel (%p218) target = $region32
      $region31: #{bottleneck_forward.2} parent=11 // pred_region
        _
      $region32: #{bottleneck_forward.2} parent=11 // pred_fallthru
        _
      // Predicated region
      $region33: #{bottleneck_forward.2} parent=11 // pred_check
        %p221 = pneg %p165
      $region34: #{bottleneck_forward.2} parent=11 // pred_check_branch
        %223 = sbr.rel (%p221) target = $region36
      $region35: #{bottleneck_forward.2} parent=11 // pred_region
        _
      $region36: #{bottleneck_forward.2} parent=11 // pred_fallthru
        _
    $region12: #{bottleneck_forward.2} parent=5 // pred_fallthru
      _
    %p224 = scmp.lt.s32.totalorder %s13, 2
    // Predicated region
    $region37: #{bottleneck_forward.2} parent=5 // pred_check
      %p225 = pneg %p224
    $region38: #{bottleneck_forward.2} parent=5 // pred_check_branch
      %227 = sbr.rel (%p225) target = $region40
    $region39: #{bottleneck_forward.2} parent=5 // pred_region
      // Predicated region
      $region41: #{bottleneck_forward.2} parent=39 // pred_check
        %p228 = pneg %p33
      $region42: #{bottleneck_forward.2} parent=39 // pred_check_branch
        %230 = sbr.rel (%p228) target = $region44
      $region43: #{bottleneck_forward.2} parent=39 // pred_region
        %p231 = scmp.lt.s32.totalorder %s13, 1
        %s232 = scalar_select %p231, %s13, 1
        %s233 = smul.addr %s232, 32
        %s234 = smul.addr %s233, 4
        %s235 = scalar_lea.vmem %s0, %s234
      $region44: #{bottleneck_forward.2} parent=39 // pred_fallthru
        _
    $region40: #{bottleneck_forward.2} parent=5 // pred_fallthru
      _
    %p236 = scmp.le.s32.totalorder 1, %s13
    %p237 = scmp.lt.s32.totalorder %s13, 3
    %p238 = pnand %p236, %p237
    %p239 = pneg %p238
    // Predicated region
    $region45: #{bottleneck_forward.2} parent=5 // pred_check
      _
    $region46: #{bottleneck_forward.2} parent=5 // pred_check_branch
      %241 = sbr.rel (%p238) target = $region48
    $region47: #{bottleneck_forward.2} parent=5 // pred_region
      %s242 = ssub.s32 %s13, 1
      %p243 = scmp.lt.s32.totalorder %s18, 1
      %s244 = scalar_select %p243, %s18, 1
      %s245 = smul.addr %s244, 32
      %s246 = smul.addr %s245, 4
      %s247 = scalar_lea.vmem %s0, %s246
      %p248 = pneg %p39
      %p249 = pneg %p36
      %p250 = pneg %p60
      %p251 = pneg %p57
      %p252 = pneg %p81
      %p253 = pneg %p78
      %p254 = pneg %p102
      %p255 = pneg %p99
      %p256 = pneg %p123
      %p257 = pneg %p120
      %p258 = pneg %p144
      %p259 = pneg %p141
      %p260 = pneg %p165
      %p261 = pneg %p162
      %p262 = pneg %p191
      %p263 = pneg %p188
      %p264 = scmp.lt.s32.totalorder %s18, 1
      %s265 = scalar_select %p264, %s18, 1
      %s266 = smul.addr %s265, 32
      %s267 = smul.addr %s266, 4
      %s268 = scalar_lea.vmem %s7, %s267
      %p269 = scmp.lt.s32.totalorder %s18, 1
      %s270 = scalar_select %p269, %s18, 1
      %s271 = smul.addr %s270, 32
      %s272 = smul.addr %s271, 4
      %s273 = scalar_lea.vmem %s0, %s272
      %p274 = scmp.lt.s32.totalorder %s18, 1
      %s275 = scalar_select %p274, %s18, 1
      %s276 = smul.addr %s275, 32
      %s277 = smul.addr %s276, 4
      %s278 = scalar_lea.vmem %s7, %s277
      %v280 = vld [vmem:[%s273] sm:$0xf]
      %v281 = vld [vmem:[%s273 + $0x4] sm:$0xf]
      %v282 = vld [vmem:[%s273 + $0x8] sm:$0xf]
      %v283 = vld [vmem:[%s273 + $0xc] sm:$0xf]
      %v284 = vld [vmem:[%s273 + $0x10] sm:$0xf]
      %v285 = vld [vmem:[%s273 + $0x14] sm:$0xf]
      %v286 = vld [vmem:[%s273 + $0x18] sm:$0xf]
      %v287 = vld [vmem:[%s273 + $0x1c] sm:$0xf]
      %v288 = vld [vmem:[%s273 + $0x20] sm:$0xf]
      %v289 = vld [vmem:[%s273 + $0x24] sm:$0xf]
      %v290 = vld [vmem:[%s273 + $0x28] sm:$0xf]
      %v291 = vld [vmem:[%s273 + $0x2c] sm:$0xf]
      %v292 = vld [vmem:[%s273 + $0x30] sm:$0xf]
      %v293 = vld [vmem:[%s273 + $0x34] sm:$0xf]
      %v294 = vld [vmem:[%s273 + $0x38] sm:$0xf]
      %v295 = vld [vmem:[%s273 + $0x3c] sm:$0xf]
      %v296 = vld [vmem:[%s273 + $0x40] sm:$0xf]
      %v297 = vld [vmem:[%s273 + $0x44] sm:$0xf]
      %v298 = vld [vmem:[%s273 + $0x48] sm:$0xf]
      %v299 = vld [vmem:[%s273 + $0x4c] sm:$0xf]
      %v300 = vld [vmem:[%s273 + $0x50] sm:$0xf]
      %v301 = vld [vmem:[%s273 + $0x54] sm:$0xf]
      %v302 = vld [vmem:[%s273 + $0x58] sm:$0xf]
      %v303 = vld [vmem:[%s273 + $0x5c] sm:$0xf]
      %v304 = vld [vmem:[%s273 + $0x60] sm:$0xf]
      %v305 = vld [vmem:[%s273 + $0x64] sm:$0xf]
      %v306 = vld [vmem:[%s273 + $0x68] sm:$0xf]
      %v307 = vld [vmem:[%s273 + $0x6c] sm:$0xf]
      %v308 = vld [vmem:[%s273 + $0x70] sm:$0xf]
      %v309 = vld [vmem:[%s273 + $0x74] sm:$0xf]
      %v310 = vld [vmem:[%s273 + $0x78] sm:$0xf]
      %v311 = vld [vmem:[%s273 + $0x7c] sm:$0xf]
      %v312 = vld [vmem:[%s1] sm:$0xf]
      %v313 = vld [vmem:[%s1 + $0x4] sm:$0xf]
      %v314 = vld [vmem:[%s1 + $0x8] sm:$0xf]
      %v315 = vld [vmem:[%s1 + $0xc] sm:$0xf]
      %v316 = vld [vmem:[%s1 + $0x10] sm:$0xf]
      %v317 = vld [vmem:[%s1 + $0x14] sm:$0xf]
      %v318 = vld [vmem:[%s1 + $0x18] sm:$0xf]
      %v319 = vld [vmem:[%s1 + $0x1c] sm:$0xf]
      %v320 = vld [vmem:[%s1 + $0x20] sm:$0xf]
      %v321 = vld [vmem:[%s1 + $0x24] sm:$0xf]
      %v322 = vld [vmem:[%s1 + $0x28] sm:$0xf]
      %v323 = vld [vmem:[%s1 + $0x2c] sm:$0xf]
      %v324 = vld [vmem:[%s1 + $0x30] sm:$0xf]
      %v325 = vld [vmem:[%s1 + $0x34] sm:$0xf]
      %v326 = vld [vmem:[%s1 + $0x38] sm:$0xf]
      %v327 = vld [vmem:[%s1 + $0x3c] sm:$0xf]
      %v360 = vunpack.c.l.b16 %v280
      %v361 = vunpack.c.l.b16 %v281
      %v362 = vunpack.c.l.b16 %v282
      %v363 = vunpack.c.l.b16 %v283
      %v364 = vunpack.c.l.b16 %v284
      %v365 = vunpack.c.l.b16 %v285
      %v366 = vunpack.c.l.b16 %v286
      %v367 = vunpack.c.l.b16 %v287
      %v368 = vunpack.c.l.b16 %v288
      %v369 = vunpack.c.l.b16 %v289
      %v370 = vunpack.c.l.b16 %v290
      %v371 = vunpack.c.l.b16 %v291
      %v372 = vunpack.c.l.b16 %v292
      %v373 = vunpack.c.l.b16 %v293
      %v374 = vunpack.c.l.b16 %v294
      %v375 = vunpack.c.l.b16 %v295
      %v376 = vunpack.c.l.b16 %v296
      %v377 = vunpack.c.l.b16 %v297
      %v378 = vunpack.c.l.b16 %v298
      %v379 = vunpack.c.l.b16 %v299
      %v380 = vunpack.c.l.b16 %v300
      %v381 = vunpack.c.l.b16 %v301
      %v382 = vunpack.c.l.b16 %v302
      %v383 = vunpack.c.l.b16 %v303
      %v384 = vunpack.c.l.b16 %v304
      %v385 = vunpack.c.l.b16 %v305
      %v386 = vunpack.c.l.b16 %v306
      %v387 = vunpack.c.l.b16 %v307
      %v388 = vunpack.c.l.b16 %v308
      %v389 = vunpack.c.l.b16 %v309
      %v390 = vunpack.c.l.b16 %v310
      %v391 = vunpack.c.l.b16 %v311
      %v392 = vpack.c.b16 %v361, %v360
      %v393 = vpack.c.b16 %v363, %v362
      %v394 = vpack.c.b16 %v365, %v364
      %v395 = vpack.c.b16 %v367, %v366
      %v396 = vpack.c.b16 %v369, %v368
      %v397 = vpack.c.b16 %v371, %v370
      %v398 = vpack.c.b16 %v373, %v372
      %v399 = vpack.c.b16 %v375, %v374
      %v400 = vpack.c.b16 %v377, %v376
      %v401 = vpack.c.b16 %v379, %v378
      %v402 = vpack.c.b16 %v381, %v380
      %v403 = vpack.c.b16 %v383, %v382
      %v404 = vpack.c.b16 %v385, %v384
      %v405 = vpack.c.b16 %v387, %v386
      %v406 = vpack.c.b16 %v389, %v388
      %v407 = vpack.c.b16 %v391, %v390
      %v440 = vunpack.c.l.b16 %v312
      %v441 = vunpack.c.l.b16 %v313
      %v442 = vunpack.c.l.b16 %v314
      %v443 = vunpack.c.l.b16 %v315
      %v444 = vunpack.c.l.b16 %v316
      %v445 = vunpack.c.l.b16 %v317
      %v446 = vunpack.c.l.b16 %v318
      %v447 = vunpack.c.l.b16 %v319
      %v448 = vunpack.c.l.b16 %v320
      %v449 = vunpack.c.l.b16 %v321
      %v450 = vunpack.c.l.b16 %v322
      %v451 = vunpack.c.l.b16 %v323
      %v452 = vunpack.c.l.b16 %v324
      %v453 = vunpack.c.l.b16 %v325
      %v454 = vunpack.c.l.b16 %v326
      %v455 = vunpack.c.l.b16 %v327
      %v456 = vpack.c.b16 %v441, %v440
      %v457 = vpack.c.b16 %v443, %v442
      %v458 = vpack.c.b16 %v445, %v444
      %v459 = vpack.c.b16 %v447, %v446
      %v460 = vpack.c.b16 %v449, %v448
      %v461 = vpack.c.b16 %v451, %v450
      %v462 = vpack.c.b16 %v453, %v452
      %v463 = vpack.c.b16 %v455, %v454
      %472 = vmatprep.subr.bf16.mxu0 0
      %473 = vmatpush1.bf16.msra.mxu0 %v463
      %474 = vmatprep.subr.bf16.mxu0 0
      %475 = vmatpush1.bf16.msra.mxu0 %v462
      %476 = vmatprep.subr.bf16.mxu0 0
      %477 = vmatpush1.bf16.msra.mxu0 %v461
      %478 = vmatprep.subr.bf16.mxu0 0
      %479 = vmatpush1.bf16.msra.mxu0 %v460
      %480 = vmatprep.subr.bf16.mxu0 0
      %481 = vmatpush1.bf16.msra.mxu0 %v459
      %482 = vmatprep.subr.bf16.mxu0 0
      %483 = vmatpush1.bf16.msra.mxu0 %v458
      %484 = vmatprep.subr.bf16.mxu0 0
      %485 = vmatpush1.bf16.msra.mxu0 %v457
      %486 = vmatprep.subr.bf16.mxu0 0
      %487 = vmatpush1.bf16.msra.mxu0 %v456
      %488 = vmatprep.subr.bf16.mxu0 0
      %489 = vmatpush2.bf16.msra.mxu0 0
      %490 = vmatprep.subr.bf16.mxu0 0
      %491 = vmatpush2.bf16.msra.mxu0 0
      %492 = vmatprep.subr.bf16.mxu0 0
      %493 = vmatpush2.bf16.msra.mxu0 0
      %494 = vmatprep.subr.bf16.mxu0 0
      %495 = vmatpush2.bf16.msra.mxu0 0
      %496 = vmatprep.subr.bf16.mxu0 0
      %497 = vmatpush2.bf16.msra.mxu0 0
      %498 = vmatprep.subr.bf16.mxu0 0
      %499 = vmatpush2.bf16.msra.mxu0 0
      %500 = vmatprep.subr.bf16.mxu0 0
      %501 = vmatpush2.bf16.msra.mxu0 0
      %502 = vmatprep.subr.bf16.mxu0 0
      %503 = vmatpush2.bf16.msra.mxu0 0
      %504 = vmatprep.mubr.bf16.mxu0 0
      %505 = vmatmul.mubr.bf16.gmra.mxu0 %v392
      %v506 = vpop.f32.mrf.mxu0
      %v507 = vadd.f32 0.0, %v506
      %v508 = vpop.f32.mrf.mxu0
      %v509 = vpop.f32.mrf.mxu0
      %v510 = vadd.f32 0.0, %v509
      %v511 = vpop.f32.mrf.mxu0
      %512 = vmatprep.mubr.bf16.mxu0 0
      %513 = vmatmul.mubr.bf16.gmra.mxu0 %v393
      %v514 = vpop.f32.mrf.mxu0
      %v515 = vadd.f32 0.0, %v514
      %v516 = vpop.f32.mrf.mxu0
      %v517 = vpop.f32.mrf.mxu0
      %v518 = vadd.f32 0.0, %v517
      %v519 = vpop.f32.mrf.mxu0
      %520 = vmatprep.mubr.bf16.mxu0 0
      %521 = vmatmul.mubr.bf16.gmra.mxu0 %v394
      %v522 = vpop.f32.mrf.mxu0
      %v523 = vadd.f32 0.0, %v522
      %v524 = vpop.f32.mrf.mxu0
      %v525 = vpop.f32.mrf.mxu0
      %v526 = vadd.f32 0.0, %v525
      %v527 = vpop.f32.mrf.mxu0
      %528 = vmatprep.mubr.bf16.mxu0 0
      %529 = vmatmul.mubr.bf16.gmra.mxu0 %v395
      %v530 = vpop.f32.mrf.mxu0
      %v531 = vadd.f32 0.0, %v530
      %v532 = vpop.f32.mrf.mxu0
      %v533 = vpop.f32.mrf.mxu0
      %v534 = vadd.f32 0.0, %v533
      %v535 = vpop.f32.mrf.mxu0
      %536 = vmatprep.mubr.bf16.mxu0 0
      %537 = vmatmul.mubr.bf16.gmra.mxu0 %v396
      %v538 = vpop.f32.mrf.mxu0
      %v539 = vadd.f32 0.0, %v538
      %v540 = vpop.f32.mrf.mxu0
      %v541 = vpop.f32.mrf.mxu0
      %v542 = vadd.f32 0.0, %v541
      %v543 = vpop.f32.mrf.mxu0
      %544 = vmatprep.mubr.bf16.mxu0 0
      %545 = vmatmul.mubr.bf16.gmra.mxu0 %v397
      %v546 = vpop.f32.mrf.mxu0
      %v547 = vadd.f32 0.0, %v546
      %v548 = vpop.f32.mrf.mxu0
      %v549 = vpop.f32.mrf.mxu0
      %v550 = vadd.f32 0.0, %v549
      %v551 = vpop.f32.mrf.mxu0
      %552 = vmatprep.mubr.bf16.mxu0 0
      %553 = vmatmul.mubr.bf16.gmra.mxu0 %v398
      %v554 = vpop.f32.mrf.mxu0
      %v555 = vadd.f32 0.0, %v554
      %v556 = vpop.f32.mrf.mxu0
      %v557 = vpop.f32.mrf.mxu0
      %v558 = vadd.f32 0.0, %v557
      %v559 = vpop.f32.mrf.mxu0
      %560 = vmatprep.mubr.bf16.mxu0 0
      %561 = vmatmul.mubr.bf16.gmra.mxu0 %v399
      %v562 = vpop.f32.mrf.mxu0
      %v563 = vadd.f32 0.0, %v562
      %v564 = vpop.f32.mrf.mxu0
      %v565 = vpop.f32.mrf.mxu0
      %v566 = vadd.f32 0.0, %v565
      %v567 = vpop.f32.mrf.mxu0
      %568 = vmatprep.mubr.bf16.mxu0 0
      %569 = vmatmul.mubr.bf16.gmra.mxu0 %v400
      %v570 = vpop.f32.mrf.mxu0
      %v571 = vadd.f32 0.0, %v570
      %v572 = vpop.f32.mrf.mxu0
      %v573 = vpop.f32.mrf.mxu0
      %v574 = vadd.f32 0.0, %v573
      %v575 = vpop.f32.mrf.mxu0
      %576 = vmatprep.mubr.bf16.mxu0 0
      %577 = vmatmul.mubr.bf16.gmra.mxu0 %v401
      %v578 = vpop.f32.mrf.mxu0
      %v579 = vadd.f32 0.0, %v578
      %v580 = vpop.f32.mrf.mxu0
      %v581 = vpop.f32.mrf.mxu0
      %v582 = vadd.f32 0.0, %v581
      %v583 = vpop.f32.mrf.mxu0
      %584 = vmatprep.mubr.bf16.mxu0 0
      %585 = vmatmul.mubr.bf16.gmra.mxu0 %v402
      %v586 = vpop.f32.mrf.mxu0
      %v587 = vadd.f32 0.0, %v586
      %v588 = vpop.f32.mrf.mxu0
      %v589 = vpop.f32.mrf.mxu0
      %v590 = vadd.f32 0.0, %v589
      %v591 = vpop.f32.mrf.mxu0
      %592 = vmatprep.mubr.bf16.mxu0 0
      %593 = vmatmul.mubr.bf16.gmra.mxu0 %v403
      %v594 = vpop.f32.mrf.mxu0
      %v595 = vadd.f32 0.0, %v594
      %v596 = vpop.f32.mrf.mxu0
      %v597 = vpop.f32.mrf.mxu0
      %v598 = vadd.f32 0.0, %v597
      %v599 = vpop.f32.mrf.mxu0
      %600 = vmatprep.mubr.bf16.mxu0 0
      %601 = vmatmul.mubr.bf16.gmra.mxu0 %v404
      %v602 = vpop.f32.mrf.mxu0
      %v603 = vadd.f32 0.0, %v602
      %v604 = vpop.f32.mrf.mxu0
      %v605 = vpop.f32.mrf.mxu0
      %v606 = vadd.f32 0.0, %v605
      %v607 = vpop.f32.mrf.mxu0
      %608 = vmatprep.mubr.bf16.mxu0 0
      %609 = vmatmul.mubr.bf16.gmra.mxu0 %v405
      %v610 = vpop.f32.mrf.mxu0
      %v611 = vadd.f32 0.0, %v610
      %v612 = vpop.f32.mrf.mxu0
      %v613 = vpop.f32.mrf.mxu0
      %v614 = vadd.f32 0.0, %v613
      %v615 = vpop.f32.mrf.mxu0
      %616 = vmatprep.mubr.bf16.mxu0 0
      %617 = vmatmul.mubr.bf16.gmra.mxu0 %v406
      %v618 = vpop.f32.mrf.mxu0
      %v619 = vadd.f32 0.0, %v618
      %v620 = vpop.f32.mrf.mxu0
      %v621 = vpop.f32.mrf.mxu0
      %v622 = vadd.f32 0.0, %v621
      %v623 = vpop.f32.mrf.mxu0
      %624 = vmatprep.mubr.bf16.mxu0 0
      %625 = vmatmul.mubr.bf16.gmra.mxu0 %v407
      %v626 = vpop.f32.mrf.mxu0
      %v627 = vadd.f32 0.0, %v626
      %v628 = vpop.f32.mrf.mxu0
      %v629 = vpop.f32.mrf.mxu0
      %v630 = vadd.f32 0.0, %v629
      %v631 = vpop.f32.mrf.mxu0
      %632 = vdwg.mxu0
      %v633 = vld [vmem:[%s2] sm:$0x1]
      %v635 = vlaneseq
      %v636 = vshrl.u32 %v635, 7
      %v637 = vsub.s32 0, %v636
      %v638 = vrot.slane %v633, %v637
      %v640 = vmul.f32 %v507, %v638
      %v641 = vmul.f32 %v510, %v638
      %v642 = vmul.f32 %v515, %v638
      %v643 = vmul.f32 %v518, %v638
      %v644 = vmul.f32 %v523, %v638
      %v645 = vmul.f32 %v526, %v638
      %v646 = vmul.f32 %v531, %v638
      %v647 = vmul.f32 %v534, %v638
      %v648 = vmul.f32 %v539, %v638
      %v649 = vmul.f32 %v542, %v638
      %v650 = vmul.f32 %v547, %v638
      %v651 = vmul.f32 %v550, %v638
      %v652 = vmul.f32 %v555, %v638
      %v653 = vmul.f32 %v558, %v638
      %v654 = vmul.f32 %v563, %v638
      %v655 = vmul.f32 %v566, %v638
      %v656 = vmul.f32 %v571, %v638
      %v657 = vmul.f32 %v574, %v638
      %v658 = vmul.f32 %v579, %v638
      %v659 = vmul.f32 %v582, %v638
      %v660 = vmul.f32 %v587, %v638
      %v661 = vmul.f32 %v590, %v638
      %v662 = vmul.f32 %v595, %v638
      %v663 = vmul.f32 %v598, %v638
      %v664 = vmul.f32 %v603, %v638
      %v665 = vmul.f32 %v606, %v638
      %v666 = vmul.f32 %v611, %v638
      %v667 = vmul.f32 %v614, %v638
      %v668 = vmul.f32 %v619, %v638
      %v669 = vmul.f32 %v622, %v638
      %v670 = vmul.f32 %v627, %v638
      %v671 = vmul.f32 %v630, %v638
      %v672 = vld [vmem:[%s3] sm:$0x1]
      %v674 = vlaneseq
      %v675 = vshrl.u32 %v674, 7
      %v676 = vsub.s32 0, %v675
      %v677 = vrot.slane %v672, %v676
      %v679 = vadd.f32 %v640, %v677
      %v680 = vadd.f32 %v641, %v677
      %v681 = vadd.f32 %v642, %v677
      %v682 = vadd.f32 %v643, %v677
      %v683 = vadd.f32 %v644, %v677
      %v684 = vadd.f32 %v645, %v677
      %v685 = vadd.f32 %v646, %v677
      %v686 = vadd.f32 %v647, %v677
      %v687 = vadd.f32 %v648, %v677
      %v688 = vadd.f32 %v649, %v677
      %v689 = vadd.f32 %v650, %v677
      %v690 = vadd.f32 %v651, %v677
      %v691 = vadd.f32 %v652, %v677
      %v692 = vadd.f32 %v653, %v677
      %v693 = vadd.f32 %v654, %v677
      %v694 = vadd.f32 %v655, %v677
      %v695 = vadd.f32 %v656, %v677
      %v696 = vadd.f32 %v657, %v677
      %v697 = vadd.f32 %v658, %v677
      %v698 = vadd.f32 %v659, %v677
      %v699 = vadd.f32 %v660, %v677
      %v700 = vadd.f32 %v661, %v677
      %v701 = vadd.f32 %v662, %v677
      %v702 = vadd.f32 %v663, %v677
      %v703 = vadd.f32 %v664, %v677
      %v704 = vadd.f32 %v665, %v677
      %v705 = vadd.f32 %v666, %v677
      %v706 = vadd.f32 %v667, %v677
      %v707 = vadd.f32 %v668, %v677
      %v708 = vadd.f32 %v669, %v677
      %v709 = vadd.f32 %v670, %v677
      %v710 = vadd.f32 %v671, %v677
      %v711 = vmax.f32 %v679, 0.0
      %v712 = vmax.f32 %v680, 0.0
      %v713 = vmax.f32 %v681, 0.0
      %v714 = vmax.f32 %v682, 0.0
      %v715 = vmax.f32 %v683, 0.0
      %v716 = vmax.f32 %v684, 0.0
      %v717 = vmax.f32 %v685, 0.0
      %v718 = vmax.f32 %v686, 0.0
      %v719 = vmax.f32 %v687, 0.0
      %v720 = vmax.f32 %v688, 0.0
      %v721 = vmax.f32 %v689, 0.0
      %v722 = vmax.f32 %v690, 0.0
      %v723 = vmax.f32 %v691, 0.0
      %v724 = vmax.f32 %v692, 0.0
      %v725 = vmax.f32 %v693, 0.0
      %v726 = vmax.f32 %v694, 0.0
      %v727 = vmax.f32 %v695, 0.0
      %v728 = vmax.f32 %v696, 0.0
      %v729 = vmax.f32 %v697, 0.0
      %v730 = vmax.f32 %v698, 0.0
      %v731 = vmax.f32 %v699, 0.0
      %v732 = vmax.f32 %v700, 0.0
      %v733 = vmax.f32 %v701, 0.0
      %v734 = vmax.f32 %v702, 0.0
      %v735 = vmax.f32 %v703, 0.0
      %v736 = vmax.f32 %v704, 0.0
      %v737 = vmax.f32 %v705, 0.0
      %v738 = vmax.f32 %v706, 0.0
      %v739 = vmax.f32 %v707, 0.0
      %v740 = vmax.f32 %v708, 0.0
      %v741 = vmax.f32 %v709, 0.0
      %v742 = vmax.f32 %v710, 0.0
      %v743 = vpack.c.bf16 %v712, %v711
      %v744 = vpack.c.bf16 %v714, %v713
      %v745 = vpack.c.bf16 %v716, %v715
      %v746 = vpack.c.bf16 %v718, %v717
      %v747 = vpack.c.bf16 %v720, %v719
      %v748 = vpack.c.bf16 %v722, %v721
      %v749 = vpack.c.bf16 %v724, %v723
      %v750 = vpack.c.bf16 %v726, %v725
      %v751 = vpack.c.bf16 %v728, %v727
      %v752 = vpack.c.bf16 %v730, %v729
      %v753 = vpack.c.bf16 %v732, %v731
      %v754 = vpack.c.bf16 %v734, %v733
      %v755 = vpack.c.bf16 %v736, %v735
      %v756 = vpack.c.bf16 %v738, %v737
      %v757 = vpack.c.bf16 %v740, %v739
      %v758 = vpack.c.bf16 %v742, %v741
      %759 = vst [vmem:[#allocation2] sm:$0xff] 0
      %760 = vst [vmem:[#allocation2 + $0x8] sm:$0xf] 0
      %761 = vst [vmem:[#allocation2 + $0xc] sm:$0xff] 0
      %762 = vst [vmem:[#allocation2 + $0x14] sm:$0xf] 0
      %s763 = scalar_lea.vmem [#allocation2], 408
      %764 = vst [vmem:[%s763] sm:$0xff] 0
      %765 = vst [vmem:[%s763 + $0x8] sm:$0xf] 0
      %766 = vst [vmem:[%s763 + $0xc] sm:$0xff] 0
      %767 = vst [vmem:[%s763 + $0x14] sm:$0xf] 0
      %v784 = vunpack.c.l.b16 %v743
      %v785 = vunpack.c.h.b16 %v743
      %v786 = vunpack.c.l.b16 %v744
      %v787 = vunpack.c.h.b16 %v744
      %v788 = vunpack.c.l.b16 %v745
      %v789 = vunpack.c.h.b16 %v745
      %v790 = vunpack.c.l.b16 %v746
      %v791 = vunpack.c.h.b16 %v746
      %v792 = vunpack.c.l.b16 %v747
      %v793 = vunpack.c.h.b16 %v747
      %v794 = vunpack.c.l.b16 %v748
      %v795 = vunpack.c.h.b16 %v748
      %v796 = vunpack.c.l.b16 %v749
      %v797 = vunpack.c.h.b16 %v749
      %v798 = vunpack.c.l.b16 %v750
      %v799 = vunpack.c.h.b16 %v750
      %v800 = vunpack.c.l.b16 %v751
      %v801 = vunpack.c.h.b16 %v751
      %v802 = vunpack.c.l.b16 %v752
      %v803 = vunpack.c.h.b16 %v752
      %v804 = vunpack.c.l.b16 %v753
      %v805 = vunpack.c.h.b16 %v753
      %v806 = vunpack.c.l.b16 %v754
      %v807 = vunpack.c.h.b16 %v754
      %v808 = vunpack.c.l.b16 %v755
      %v809 = vunpack.c.h.b16 %v755
      %v810 = vunpack.c.l.b16 %v756
      %v811 = vunpack.c.h.b16 %v756
      %v812 = vunpack.c.l.b16 %v757
      %v813 = vunpack.c.h.b16 %v757
      %v814 = vunpack.c.l.b16 %v758
      %v815 = vunpack.c.h.b16 %v758
      %v816 = vpack.c.b16 %v784, %v784
      %v817 = vpack.c.b16 %v785, %v785
      %v818 = vpack.c.b16 %v786, %v786
      %v819 = vpack.c.b16 %v787, %v787
      %v820 = vpack.c.b16 %v788, %v788
      %v821 = vpack.c.b16 %v789, %v789
      %v822 = vpack.c.b16 %v790, %v790
      %v823 = vpack.c.b16 %v791, %v791
      %v824 = vpack.c.b16 %v792, %v792
      %v825 = vpack.c.b16 %v793, %v793
      %v826 = vpack.c.b16 %v794, %v794
      %v827 = vpack.c.b16 %v795, %v795
      %v828 = vpack.c.b16 %v796, %v796
      %v829 = vpack.c.b16 %v797, %v797
      %v830 = vpack.c.b16 %v798, %v798
      %v831 = vpack.c.b16 %v799, %v799
      %v832 = vpack.c.b16 %v800, %v800
      %v833 = vpack.c.b16 %v801, %v801
      %v834 = vpack.c.b16 %v802, %v802
      %v835 = vpack.c.b16 %v803, %v803
      %v836 = vpack.c.b16 %v804, %v804
      %v837 = vpack.c.b16 %v805, %v805
      %v838 = vpack.c.b16 %v806, %v806
      %v839 = vpack.c.b16 %v807, %v807
      %v840 = vpack.c.b16 %v808, %v808
      %v841 = vpack.c.b16 %v809, %v809
      %v842 = vpack.c.b16 %v810, %v810
      %v843 = vpack.c.b16 %v811, %v811
      %v844 = vpack.c.b16 %v812, %v812
      %v845 = vpack.c.b16 %v813, %v813
      %v846 = vpack.c.b16 %v814, %v814
      %v847 = vpack.c.b16 %v815, %v815
      %s880 = scalar_lea.vmem [#allocation2], 24
      %881 = vst [vmem:[%s880 + $0x4] sm:$0xf] %v816
      %882 = vst [vmem:[%s880 + $0x10] sm:$0xf] %v817
      %883 = vst [vmem:[%s880 + $0x1c] sm:$0xf] %v818
      %884 = vst [vmem:[%s880 + $0x28] sm:$0xf] %v819
      %885 = vst [vmem:[%s880 + $0x34] sm:$0xf] %v820
      %886 = vst [vmem:[%s880 + $0x40] sm:$0xf] %v821
      %887 = vst [vmem:[%s880 + $0x4c] sm:$0xf] %v822
      %888 = vst [vmem:[%s880 + $0x58] sm:$0xf] %v823
      %889 = vst [vmem:[%s880 + $0x64] sm:$0xf] %v824
      %890 = vst [vmem:[%s880 + $0x70] sm:$0xf] %v825
      %891 = vst [vmem:[%s880 + $0x7c] sm:$0xf] %v826
      %892 = vst [vmem:[%s880 + $0x88] sm:$0xf] %v827
      %893 = vst [vmem:[%s880 + $0x94] sm:$0xf] %v828
      %894 = vst [vmem:[%s880 + $0xa0] sm:$0xf] %v829
      %895 = vst [vmem:[%s880 + $0xac] sm:$0xf] %v830
      %896 = vst [vmem:[%s880 + $0xb8] sm:$0xf] %v831
      %897 = vst [vmem:[%s880 + $0xc4] sm:$0xf] %v832
      %898 = vst [vmem:[%s880 + $0xd0] sm:$0xf] %v833
      %899 = vst [vmem:[%s880 + $0xdc] sm:$0xf] %v834
      %900 = vst [vmem:[%s880 + $0xe8] sm:$0xf] %v835
      %901 = vst [vmem:[%s880 + $0xf4] sm:$0xf] %v836
      %902 = vst [vmem:[%s880 + $0x100] sm:$0xf] %v837
      %903 = vst [vmem:[%s880 + $0x10c] sm:$0xf] %v838
      %904 = vst [vmem:[%s880 + $0x118] sm:$0xf] %v839
      %905 = vst [vmem:[%s880 + $0x124] sm:$0xf] %v840
      %906 = vst [vmem:[%s880 + $0x130] sm:$0xf] %v841
      %907 = vst [vmem:[%s880 + $0x13c] sm:$0xf] %v842
      %908 = vst [vmem:[%s880 + $0x148] sm:$0xf] %v843
      %909 = vst [vmem:[%s880 + $0x154] sm:$0xf] %v844
      %910 = vst [vmem:[%s880 + $0x160] sm:$0xf] %v845
      %911 = vst [vmem:[%s880 + $0x16c] sm:$0xf] %v846
      %912 = vst [vmem:[%s880 + $0x178] sm:$0xf] %v847
      %vm913 = vcmask 1040384
      %vm914 = vsmask.f32 256
      %vm915 = vmand %vm913, %vm914
      %v916 = vld [vmem:[%s880] sm:$0x1]
      %v917 = vsel %vm915, 0, %v916
      %918 = vst [vmem:[%s880] sm:$0x1] %v917
      %v919 = vld [vmem:[%s880 + $0x18] sm:$0x1]
      %v920 = vsel %vm915, 0, %v919
      %921 = vst [vmem:[%s880 + $0x18] sm:$0x1] %v920
      %v922 = vld [vmem:[%s880 + $0x30] sm:$0x1]
      %v923 = vsel %vm915, 0, %v922
      %924 = vst [vmem:[%s880 + $0x30] sm:$0x1] %v923
      %v925 = vld [vmem:[%s880 + $0x48] sm:$0x1]
      %v926 = vsel %vm915, 0, %v925
      %927 = vst [vmem:[%s880 + $0x48] sm:$0x1] %v926
      %v928 = vld [vmem:[%s880 + $0x60] sm:$0x1]
      %v929 = vsel %vm915, 0, %v928
      %930 = vst [vmem:[%s880 + $0x60] sm:$0x1] %v929
      %v931 = vld [vmem:[%s880 + $0x78] sm:$0x1]
      %v932 = vsel %vm915, 0, %v931
      %933 = vst [vmem:[%s880 + $0x78] sm:$0x1] %v932
      %v934 = vld [vmem:[%s880 + $0x90] sm:$0x1]
      %v935 = vsel %vm915, 0, %v934
      %936 = vst [vmem:[%s880 + $0x90] sm:$0x1] %v935
      %v937 = vld [vmem:[%s880 + $0xa8] sm:$0x1]
      %v938 = vsel %vm915, 0, %v937
      %939 = vst [vmem:[%s880 + $0xa8] sm:$0x1] %v938
      %v940 = vld [vmem:[%s880 + $0xc0] sm:$0x1]
      %v941 = vsel %vm915, 0, %v940
      %942 = vst [vmem:[%s880 + $0xc0] sm:$0x1] %v941
      %v943 = vld [vmem:[%s880 + $0xd8] sm:$0x1]
      %v944 = vsel %vm915, 0, %v943
      %945 = vst [vmem:[%s880 + $0xd8] sm:$0x1] %v944
      %v946 = vld [vmem:[%s880 + $0xf0] sm:$0x1]
      %v947 = vsel %vm915, 0, %v946
      %948 = vst [vmem:[%s880 + $0xf0] sm:$0x1] %v947
      %v949 = vld [vmem:[%s880 + $0x108] sm:$0x1]
      %v950 = vsel %vm915, 0, %v949
      %951 = vst [vmem:[%s880 + $0x108] sm:$0x1] %v950
      %v952 = vld [vmem:[%s880 + $0x120] sm:$0x1]
      %v953 = vsel %vm915, 0, %v952
      %954 = vst [vmem:[%s880 + $0x120] sm:$0x1] %v953
      %v955 = vld [vmem:[%s880 + $0x138] sm:$0x1]
      %v956 = vsel %vm915, 0, %v955
      %957 = vst [vmem:[%s880 + $0x138] sm:$0x1] %v956
      %v958 = vld [vmem:[%s880 + $0x150] sm:$0x1]
      %v959 = vsel %vm915, 0, %v958
      %960 = vst [vmem:[%s880 + $0x150] sm:$0x1] %v959
      %v961 = vld [vmem:[%s880 + $0x168] sm:$0x1]
      %v962 = vsel %vm915, 0, %v961
      %963 = vst [vmem:[%s880 + $0x168] sm:$0x1] %v962
      %vm964 = vsmask.f32 4368
      %vm965 = vmor %vm914, %vm964
      %v967 = vshrl.u32 %v816, 16
      %v969 = vrot.slane %v967, 7
      %v970 = vshll.u32 %v816, 16
      %v972 = vor.u32 %v969, %v970
      %v973 = vrot.slane %v969, 4
      %v975 = vshrl.u32 %v817, 16
      %v977 = vrot.slane %v975, 7
      %v978 = vshll.u32 %v817, 16
      %v980 = vor.u32 %v977, %v978
      %v981 = vsel %vm965, %v973, %v980
      %v983 = vshrl.u32 %v818, 16
      %v985 = vrot.slane %v983, 7
      %v986 = vshll.u32 %v818, 16
      %v988 = vor.u32 %v985, %v986
      %v989 = vrot.slane %v985, 4
      %v991 = vshrl.u32 %v819, 16
      %v993 = vrot.slane %v991, 7
      %v994 = vshll.u32 %v819, 16
      %v996 = vor.u32 %v993, %v994
      %v997 = vsel %vm965, %v989, %v996
      %v999 = vshrl.u32 %v820, 16
      %v1001 = vrot.slane %v999, 7
      %v1002 = vshll.u32 %v820, 16
      %v1004 = vor.u32 %v1001, %v1002
      %v1005 = vrot.slane %v1001, 4
      %v1007 = vshrl.u32 %v821, 16
      %v1009 = vrot.slane %v1007, 7
      %v1010 = vshll.u32 %v821, 16
      %v1012 = vor.u32 %v1009, %v1010
      %v1013 = vsel %vm965, %v1005, %v1012
      %v1015 = vshrl.u32 %v822, 16
      %v1017 = vrot.slane %v1015, 7
      %v1018 = vshll.u32 %v822, 16
      %v1020 = vor.u32 %v1017, %v1018
      %v1021 = vrot.slane %v1017, 4
      %v1023 = vshrl.u32 %v823, 16
      %v1025 = vrot.slane %v1023, 7
      %v1026 = vshll.u32 %v823, 16
      %v1028 = vor.u32 %v1025, %v1026
      %v1029 = vsel %vm965, %v1021, %v1028
      %v1031 = vshrl.u32 %v824, 16
      %v1033 = vrot.slane %v1031, 7
      %v1034 = vshll.u32 %v824, 16
      %v1036 = vor.u32 %v1033, %v1034
      %v1037 = vrot.slane %v1033, 4
      %v1039 = vshrl.u32 %v825, 16
      %v1041 = vrot.slane %v1039, 7
      %v1042 = vshll.u32 %v825, 16
      %v1044 = vor.u32 %v1041, %v1042
      %v1045 = vsel %vm965, %v1037, %v1044
      %v1047 = vshrl.u32 %v826, 16
      %v1049 = vrot.slane %v1047, 7
      %v1050 = vshll.u32 %v826, 16
      %v1052 = vor.u32 %v1049, %v1050
      %v1053 = vrot.slane %v1049, 4
      %v1055 = vshrl.u32 %v827, 16
      %v1057 = vrot.slane %v1055, 7
      %v1058 = vshll.u32 %v827, 16
      %v1060 = vor.u32 %v1057, %v1058
      %v1061 = vsel %vm965, %v1053, %v1060
      %v1063 = vshrl.u32 %v828, 16
      %v1065 = vrot.slane %v1063, 7
      %v1066 = vshll.u32 %v828, 16
      %v1068 = vor.u32 %v1065, %v1066
      %v1069 = vrot.slane %v1065, 4
      %v1071 = vshrl.u32 %v829, 16
      %v1073 = vrot.slane %v1071, 7
      %v1074 = vshll.u32 %v829, 16
      %v1076 = vor.u32 %v1073, %v1074
      %v1077 = vsel %vm965, %v1069, %v1076
      %v1079 = vshrl.u32 %v830, 16
      %v1081 = vrot.slane %v1079, 7
      %v1082 = vshll.u32 %v830, 16
      %v1084 = vor.u32 %v1081, %v1082
      %v1085 = vrot.slane %v1081, 4
      %v1087 = vshrl.u32 %v831, 16
      %v1089 = vrot.slane %v1087, 7
      %v1090 = vshll.u32 %v831, 16
      %v1092 = vor.u32 %v1089, %v1090
      %v1093 = vsel %vm965, %v1085, %v1092
      %v1095 = vshrl.u32 %v832, 16
      %v1097 = vrot.slane %v1095, 7
      %v1098 = vshll.u32 %v832, 16
      %v1100 = vor.u32 %v1097, %v1098
      %v1101 = vrot.slane %v1097, 4
      %v1103 = vshrl.u32 %v833, 16
      %v1105 = vrot.slane %v1103, 7
      %v1106 = vshll.u32 %v833, 16
      %v1108 = vor.u32 %v1105, %v1106
      %v1109 = vsel %vm965, %v1101, %v1108
      %v1111 = vshrl.u32 %v834, 16
      %v1113 = vrot.slane %v1111, 7
      %v1114 = vshll.u32 %v834, 16
      %v1116 = vor.u32 %v1113, %v1114
      %v1117 = vrot.slane %v1113, 4
      %v1119 = vshrl.u32 %v835, 16
      %v1121 = vrot.slane %v1119, 7
      %v1122 = vshll.u32 %v835, 16
      %v1124 = vor.u32 %v1121, %v1122
      %v1125 = vsel %vm965, %v1117, %v1124
      %v1127 = vshrl.u32 %v836, 16
      %v1129 = vrot.slane %v1127, 7
      %v1130 = vshll.u32 %v836, 16
      %v1132 = vor.u32 %v1129, %v1130
      %v1133 = vrot.slane %v1129, 4
      %v1135 = vshrl.u32 %v837, 16
      %v1137 = vrot.slane %v1135, 7
      %v1138 = vshll.u32 %v837, 16
      %v1140 = vor.u32 %v1137, %v1138
      %v1141 = vsel %vm965, %v1133, %v1140
      %v1143 = vshrl.u32 %v838, 16
      %v1145 = vrot.slane %v1143, 7
      %v1146 = vshll.u32 %v838, 16
      %v1148 = vor.u32 %v1145, %v1146
      %v1149 = vrot.slane %v1145, 4
      %v1151 = vshrl.u32 %v839, 16
      %v1153 = vrot.slane %v1151, 7
      %v1154 = vshll.u32 %v839, 16
      %v1156 = vor.u32 %v1153, %v1154
      %v1157 = vsel %vm965, %v1149, %v1156
      %v1159 = vshrl.u32 %v840, 16
      %v1161 = vrot.slane %v1159, 7
      %v1162 = vshll.u32 %v840, 16
      %v1164 = vor.u32 %v1161, %v1162
      %v1165 = vrot.slane %v1161, 4
      %v1167 = vshrl.u32 %v841, 16
      %v1169 = vrot.slane %v1167, 7
      %v1170 = vshll.u32 %v841, 16
      %v1172 = vor.u32 %v1169, %v1170
      %v1173 = vsel %vm965, %v1165, %v1172
      %v1175 = vshrl.u32 %v842, 16
      %v1177 = vrot.slane %v1175, 7
      %v1178 = vshll.u32 %v842, 16
      %v1180 = vor.u32 %v1177, %v1178
      %v1181 = vrot.slane %v1177, 4
      %v1183 = vshrl.u32 %v843, 16
      %v1185 = vrot.slane %v1183, 7
      %v1186 = vshll.u32 %v843, 16
      %v1188 = vor.u32 %v1185, %v1186
      %v1189 = vsel %vm965, %v1181, %v1188
      %v1191 = vshrl.u32 %v844, 16
      %v1193 = vrot.slane %v1191, 7
      %v1194 = vshll.u32 %v844, 16
      %v1196 = vor.u32 %v1193, %v1194
      %v1197 = vrot.slane %v1193, 4
      %v1199 = vshrl.u32 %v845, 16
      %v1201 = vrot.slane %v1199, 7
      %v1202 = vshll.u32 %v845, 16
      %v1204 = vor.u32 %v1201, %v1202
      %v1205 = vsel %vm965, %v1197, %v1204
      %v1207 = vshrl.u32 %v846, 16
      %v1209 = vrot.slane %v1207, 7
      %v1210 = vshll.u32 %v846, 16
      %v1212 = vor.u32 %v1209, %v1210
      %v1213 = vrot.slane %v1209, 4
      %v1215 = vshrl.u32 %v847, 16
      %v1217 = vrot.slane %v1215, 7
      %v1218 = vshll.u32 %v847, 16
      %v1220 = vor.u32 %v1217, %v1218
      %v1221 = vsel %vm965, %v1213, %v1220
      %vm1254 = vcmask 1043456
      %vm1255 = vsmask.f32 7938
      %vm1256 = vmand %vm1254, %vm1255
      %v1257 = vld [vmem:[%s880] sm:$0xf]
      %v1258 = vsel %vm1256, %v972, %v1257
      %1259 = vst [vmem:[%s880] sm:$0xf] %v1258
      %1260 = vst [vmem:[%s880 + $0xc] sm:$0xf] %v981
      %v1261 = vld [vmem:[%s880 + $0x18] sm:$0xf]
      %v1262 = vsel %vm1256, %v988, %v1261
      %1263 = vst [vmem:[%s880 + $0x18] sm:$0xf] %v1262
      %1264 = vst [vmem:[%s880 + $0x24] sm:$0xf] %v997
      %v1265 = vld [vmem:[%s880 + $0x30] sm:$0xf]
      %v1266 = vsel %vm1256, %v1004, %v1265
      %1267 = vst [vmem:[%s880 + $0x30] sm:$0xf] %v1266
      %1268 = vst [vmem:[%s880 + $0x3c] sm:$0xf] %v1013
      %v1269 = vld [vmem:[%s880 + $0x48] sm:$0xf]
      %v1270 = vsel %vm1256, %v1020, %v1269
      %1271 = vst [vmem:[%s880 + $0x48] sm:$0xf] %v1270
      %1272 = vst [vmem:[%s880 + $0x54] sm:$0xf] %v1029
      %v1273 = vld [vmem:[%s880 + $0x60] sm:$0xf]
      %v1274 = vsel %vm1256, %v1036, %v1273
      %1275 = vst [vmem:[%s880 + $0x60] sm:$0xf] %v1274
      %1276 = vst [vmem:[%s880 + $0x6c] sm:$0xf] %v1045
      %v1277 = vld [vmem:[%s880 + $0x78] sm:$0xf]
      %v1278 = vsel %vm1256, %v1052, %v1277
      %1279 = vst [vmem:[%s880 + $0x78] sm:$0xf] %v1278
      %1280 = vst [vmem:[%s880 + $0x84] sm:$0xf] %v1061
      %v1281 = vld [vmem:[%s880 + $0x90] sm:$0xf]
      %v1282 = vsel %vm1256, %v1068, %v1281
      %1283 = vst [vmem:[%s880 + $0x90] sm:$0xf] %v1282
      %1284 = vst [vmem:[%s880 + $0x9c] sm:$0xf] %v1077
      %v1285 = vld [vmem:[%s880 + $0xa8] sm:$0xf]
      %v1286 = vsel %vm1256, %v1084, %v1285
      %1287 = vst [vmem:[%s880 + $0xa8] sm:$0xf] %v1286
      %1288 = vst [vmem:[%s880 + $0xb4] sm:$0xf] %v1093
      %v1289 = vld [vmem:[%s880 + $0xc0] sm:$0xf]
      %v1290 = vsel %vm1256, %v1100, %v1289
      %1291 = vst [vmem:[%s880 + $0xc0] sm:$0xf] %v1290
      %1292 = vst [vmem:[%s880 + $0xcc] sm:$0xf] %v1109
      %v1293 = vld [vmem:[%s880 + $0xd8] sm:$0xf]
      %v1294 = vsel %vm1256, %v1116, %v1293
      %1295 = vst [vmem:[%s880 + $0xd8] sm:$0xf] %v1294
      %1296 = vst [vmem:[%s880 + $0xe4] sm:$0xf] %v1125
      %v1297 = vld [vmem:[%s880 + $0xf0] sm:$0xf]
      %v1298 = vsel %vm1256, %v1132, %v1297
      %1299 = vst [vmem:[%s880 + $0xf0] sm:$0xf] %v1298
      %1300 = vst [vmem:[%s880 + $0xfc] sm:$0xf] %v1141
      %v1301 = vld [vmem:[%s880 + $0x108] sm:$0xf]
      %v1302 = vsel %vm1256, %v1148, %v1301
      %1303 = vst [vmem:[%s880 + $0x108] sm:$0xf] %v1302
      %1304 = vst [vmem:[%s880 + $0x114] sm:$0xf] %v1157
      %v1305 = vld [vmem:[%s880 + $0x120] sm:$0xf]
      %v1306 = vsel %vm1256, %v1164, %v1305
      %1307 = vst [vmem:[%s880 + $0x120] sm:$0xf] %v1306
      %1308 = vst [vmem:[%s880 + $0x12c] sm:$0xf] %v1173
      %v1309 = vld [vmem:[%s880 + $0x138] sm:$0xf]
      %v1310 = vsel %vm1256, %v1180, %v1309
      %1311 = vst [vmem:[%s880 + $0x138] sm:$0xf] %v1310
      %1312 = vst [vmem:[%s880 + $0x144] sm:$0xf] %v1189
      %v1313 = vld [vmem:[%s880 + $0x150] sm:$0xf]
      %v1314 = vsel %vm1256, %v1196, %v1313
      %1315 = vst [vmem:[%s880 + $0x150] sm:$0xf] %v1314
      %1316 = vst [vmem:[%s880 + $0x15c] sm:$0xf] %v1205
      %v1317 = vld [vmem:[%s880 + $0x168] sm:$0xf]
      %v1318 = vsel %vm1256, %v1212, %v1317
      %1319 = vst [vmem:[%s880 + $0x168] sm:$0xf] %v1318
      %1320 = vst [vmem:[%s880 + $0x174] sm:$0xf] %v1221
      %vm1321 = vcmask 1043459
      %vm1322 = vsmask.f32 7950
      %vm1323 = vmand %vm1321, %vm1322
      %v1324 = vld [vmem:[%s880 + $0x14] sm:$0x8]
      %v1325 = vsel %vm1323, 0, %v1324
      %1326 = vst [vmem:[%s880 + $0x14] sm:$0x8] %v1325
      %v1327 = vld [vmem:[%s880 + $0x2c] sm:$0x8]
      %v1328 = vsel %vm1323, 0, %v1327
      %1329 = vst [vmem:[%s880 + $0x2c] sm:$0x8] %v1328
      %v1330 = vld [vmem:[%s880 + $0x44] sm:$0x8]
      %v1331 = vsel %vm1323, 0, %v1330
      %1332 = vst [vmem:[%s880 + $0x44] sm:$0x8] %v1331
      %v1333 = vld [vmem:[%s880 + $0x5c] sm:$0x8]
      %v1334 = vsel %vm1323, 0, %v1333
      %1335 = vst [vmem:[%s880 + $0x5c] sm:$0x8] %v1334
      %v1336 = vld [vmem:[%s880 + $0x74] sm:$0x8]
      %v1337 = vsel %vm1323, 0, %v1336
      %1338 = vst [vmem:[%s880 + $0x74] sm:$0x8] %v1337
      %v1339 = vld [vmem:[%s880 + $0x8c] sm:$0x8]
      %v1340 = vsel %vm1323, 0, %v1339
      %1341 = vst [vmem:[%s880 + $0x8c] sm:$0x8] %v1340
      %v1342 = vld [vmem:[%s880 + $0xa4] sm:$0x8]
      %v1343 = vsel %vm1323, 0, %v1342
      %1344 = vst [vmem:[%s880 + $0xa4] sm:$0x8] %v1343
      %v1345 = vld [vmem:[%s880 + $0xbc] sm:$0x8]
      %v1346 = vsel %vm1323, 0, %v1345
      %1347 = vst [vmem:[%s880 + $0xbc] sm:$0x8] %v1346
      %v1348 = vld [vmem:[%s880 + $0xd4] sm:$0x8]
      %v1349 = vsel %vm1323, 0, %v1348
      %1350 = vst [vmem:[%s880 + $0xd4] sm:$0x8] %v1349
      %v1351 = vld [vmem:[%s880 + $0xec] sm:$0x8]
      %v1352 = vsel %vm1323, 0, %v1351
      %1353 = vst [vmem:[%s880 + $0xec] sm:$0x8] %v1352
      %v1354 = vld [vmem:[%s880 + $0x104] sm:$0x8]
      %v1355 = vsel %vm1323, 0, %v1354
      %1356 = vst [vmem:[%s880 + $0x104] sm:$0x8] %v1355
      %v1357 = vld [vmem:[%s880 + $0x11c] sm:$0x8]
      %v1358 = vsel %vm1323, 0, %v1357
      %1359 = vst [vmem:[%s880 + $0x11c] sm:$0x8] %v1358
      %v1360 = vld [vmem:[%s880 + $0x134] sm:$0x8]
      %v1361 = vsel %vm1323, 0, %v1360
      %1362 = vst [vmem:[%s880 + $0x134] sm:$0x8] %v1361
      %v1363 = vld [vmem:[%s880 + $0x14c] sm:$0x8]
      %v1364 = vsel %vm1323, 0, %v1363
      %1365 = vst [vmem:[%s880 + $0x14c] sm:$0x8] %v1364
      %v1366 = vld [vmem:[%s880 + $0x164] sm:$0x8]
      %v1367 = vsel %vm1323, 0, %v1366
      %1368 = vst [vmem:[%s880 + $0x164] sm:$0x8] %v1367
      %v1369 = vld [vmem:[%s880 + $0x17c] sm:$0x8]
      %v1370 = vsel %vm1323, 0, %v1369
      %1371 = vst [vmem:[%s880 + $0x17c] sm:$0x8] %v1370
      %vm1372 = vsmask.f32 3328
      %vm1373 = vsmask.f32 7440
      %vm1374 = vmor %vm1372, %vm1373
      %v1375 = vrot.slane %v967, 4
      %v1376 = vrot.slane %v970, 5
      %v1377 = vor.u32 %v1375, %v1376
      %v1378 = vrot.slane %v1377, 4
      %v1379 = vrot.slane %v978, 5
      %v1380 = vsel %vm1374, %v1378, %v1379
      %v1381 = vrot.slane %v975, 4
      %v1382 = vor.u32 %v1381, %v1379
      %v1383 = vrot.slane %v1382, 4
      %v1384 = vrot.slane %v983, 4
      %v1385 = vrot.slane %v986, 5
      %v1386 = vor.u32 %v1384, %v1385
      %v1387 = vrot.slane %v1386, 4
      %v1388 = vrot.slane %v994, 5
      %v1389 = vsel %vm1374, %v1387, %v1388
      %v1390 = vrot.slane %v991, 4
      %v1391 = vor.u32 %v1390, %v1388
      %v1392 = vrot.slane %v1391, 4
      %v1393 = vrot.slane %v999, 4
      %v1394 = vrot.slane %v1002, 5
      %v1395 = vor.u32 %v1393, %v1394
      %v1396 = vrot.slane %v1395, 4
      %v1397 = vrot.slane %v1010, 5
      %v1398 = vsel %vm1374, %v1396, %v1397
      %v1399 = vrot.slane %v1007, 4
      %v1400 = vor.u32 %v1399, %v1397
      %v1401 = vrot.slane %v1400, 4
      %v1402 = vrot.slane %v1015, 4
      %v1403 = vrot.slane %v1018, 5
      %v1404 = vor.u32 %v1402, %v1403
      %v1405 = vrot.slane %v1404, 4
      %v1406 = vrot.slane %v1026, 5
      %v1407 = vsel %vm1374, %v1405, %v1406
      %v1408 = vrot.slane %v1023, 4
      %v1409 = vor.u32 %v1408, %v1406
      %v1410 = vrot.slane %v1409, 4
      %v1411 = vrot.slane %v1031, 4
      %v1412 = vrot.slane %v1034, 5
      %v1413 = vor.u32 %v1411, %v1412
      %v1414 = vrot.slane %v1413, 4
      %v1415 = vrot.slane %v1042, 5
      %v1416 = vsel %vm1374, %v1414, %v1415
      %v1417 = vrot.slane %v1039, 4
      %v1418 = vor.u32 %v1417, %v1415
      %v1419 = vrot.slane %v1418, 4
      %v1420 = vrot.slane %v1047, 4
      %v1421 = vrot.slane %v1050, 5
      %v1422 = vor.u32 %v1420, %v1421
      %v1423 = vrot.slane %v1422, 4
      %v1424 = vrot.slane %v1058, 5
      %v1425 = vsel %vm1374, %v1423, %v1424
      %v1426 = vrot.slane %v1055, 4
      %v1427 = vor.u32 %v1426, %v1424
      %v1428 = vrot.slane %v1427, 4
      %v1429 = vrot.slane %v1063, 4
      %v1430 = vrot.slane %v1066, 5
      %v1431 = vor.u32 %v1429, %v1430
      %v1432 = vrot.slane %v1431, 4
      %v1433 = vrot.slane %v1074, 5
      %v1434 = vsel %vm1374, %v1432, %v1433
      %v1435 = vrot.slane %v1071, 4
      %v1436 = vor.u32 %v1435, %v1433
      %v1437 = vrot.slane %v1436, 4
      %v1438 = vrot.slane %v1079, 4
      %v1439 = vrot.slane %v1082, 5
      %v1440 = vor.u32 %v1438, %v1439
      %v1441 = vrot.slane %v1440, 4
      %v1442 = vrot.slane %v1090, 5
      %v1443 = vsel %vm1374, %v1441, %v1442
      %v1444 = vrot.slane %v1087, 4
      %v1445 = vor.u32 %v1444, %v1442
      %v1446 = vrot.slane %v1445, 4
      %v1447 = vrot.slane %v1095, 4
      %v1448 = vrot.slane %v1098, 5
      %v1449 = vor.u32 %v1447, %v1448
      %v1450 = vrot.slane %v1449, 4
      %v1451 = vrot.slane %v1106, 5
      %v1452 = vsel %vm1374, %v1450, %v1451
      %v1453 = vrot.slane %v1103, 4
      %v1454 = vor.u32 %v1453, %v1451
      %v1455 = vrot.slane %v1454, 4
      %v1456 = vrot.slane %v1111, 4
      %v1457 = vrot.slane %v1114, 5
      %v1458 = vor.u32 %v1456, %v1457
      %v1459 = vrot.slane %v1458, 4
      %v1460 = vrot.slane %v1122, 5
      %v1461 = vsel %vm1374, %v1459, %v1460
      %v1462 = vrot.slane %v1119, 4
      %v1463 = vor.u32 %v1462, %v1460
      %v1464 = vrot.slane %v1463, 4
      %v1465 = vrot.slane %v1127, 4
      %v1466 = vrot.slane %v1130, 5
      %v1467 = vor.u32 %v1465, %v1466
      %v1468 = vrot.slane %v1467, 4
      %v1469 = vrot.slane %v1138, 5
      %v1470 = vsel %vm1374, %v1468, %v1469
      %v1471 = vrot.slane %v1135, 4
      %v1472 = vor.u32 %v1471, %v1469
      %v1473 = vrot.slane %v1472, 4
      %v1474 = vrot.slane %v1143, 4
      %v1475 = vrot.slane %v1146, 5
      %v1476 = vor.u32 %v1474, %v1475
      %v1477 = vrot.slane %v1476, 4
      %v1478 = vrot.slane %v1154, 5
      %v1479 = vsel %vm1374, %v1477, %v1478
      %v1480 = vrot.slane %v1151, 4
      %v1481 = vor.u32 %v1480, %v1478
      %v1482 = vrot.slane %v1481, 4
      %v1483 = vrot.slane %v1159, 4
      %v1484 = vrot.slane %v1162, 5
      %v1485 = vor.u32 %v1483, %v1484
      %v1486 = vrot.slane %v1485, 4
      %v1487 = vrot.slane %v1170, 5
      %v1488 = vsel %vm1374, %v1486, %v1487
      %v1489 = vrot.slane %v1167, 4
      %v1490 = vor.u32 %v1489, %v1487
      %v1491 = vrot.slane %v1490, 4
      %v1492 = vrot.slane %v1175, 4
      %v1493 = vrot.slane %v1178, 5
      %v1494 = vor.u32 %v1492, %v1493
      %v1495 = vrot.slane %v1494, 4
      %v1496 = vrot.slane %v1186, 5
      %v1497 = vsel %vm1374, %v1495, %v1496
      %v1498 = vrot.slane %v1183, 4
      %v1499 = vor.u32 %v1498, %v1496
      %v1500 = vrot.slane %v1499, 4
      %v1501 = vrot.slane %v1191, 4
      %v1502 = vrot.slane %v1194, 5
      %v1503 = vor.u32 %v1501, %v1502
      %v1504 = vrot.slane %v1503, 4
      %v1505 = vrot.slane %v1202, 5
      %v1506 = vsel %vm1374, %v1504, %v1505
      %v1507 = vrot.slane %v1199, 4
      %v1508 = vor.u32 %v1507, %v1505
      %v1509 = vrot.slane %v1508, 4
      %v1510 = vrot.slane %v1207, 4
      %v1511 = vrot.slane %v1210, 5
      %v1512 = vor.u32 %v1510, %v1511
      %v1513 = vrot.slane %v1512, 4
      %v1514 = vrot.slane %v1218, 5
      %v1515 = vsel %vm1374, %v1513, %v1514
      %v1516 = vrot.slane %v1215, 4
      %v1517 = vor.u32 %v1516, %v1514
      %v1518 = vrot.slane %v1517, 4
      %1551 = vst [vmem:[%s880 + $0x8] sm:$0xf] %v1380
      %vm1552 = vmand %vm1254, %vm1372
      %v1553 = vld [vmem:[%s880 + $0x14] sm:$0xf]
      %v1554 = vsel %vm1552, %v1383, %v1553
      %1555 = vst [vmem:[%s880 + $0x14] sm:$0xf] %v1554
      %1556 = vst [vmem:[%s880 + $0x20] sm:$0xf] %v1389
      %v1557 = vld [vmem:[%s880 + $0x2c] sm:$0xf]
      %v1558 = vsel %vm1552, %v1392, %v1557
      %1559 = vst [vmem:[%s880 + $0x2c] sm:$0xf] %v1558
      %1560 = vst [vmem:[%s880 + $0x38] sm:$0xf] %v1398
      %v1561 = vld [vmem:[%s880 + $0x44] sm:$0xf]
      %v1562 = vsel %vm1552, %v1401, %v1561
      %1563 = vst [vmem:[%s880 + $0x44] sm:$0xf] %v1562
      %1564 = vst [vmem:[%s880 + $0x50] sm:$0xf] %v1407
      %v1565 = vld [vmem:[%s880 + $0x5c] sm:$0xf]
      %v1566 = vsel %vm1552, %v1410, %v1565
      %1567 = vst [vmem:[%s880 + $0x5c] sm:$0xf] %v1566
      %1568 = vst [vmem:[%s880 + $0x68] sm:$0xf] %v1416
      %v1569 = vld [vmem:[%s880 + $0x74] sm:$0xf]
      %v1570 = vsel %vm1552, %v1419, %v1569
      %1571 = vst [vmem:[%s880 + $0x74] sm:$0xf] %v1570
      %1572 = vst [vmem:[%s880 + $0x80] sm:$0xf] %v1425
      %v1573 = vld [vmem:[%s880 + $0x8c] sm:$0xf]
      %v1574 = vsel %vm1552, %v1428, %v1573
      %1575 = vst [vmem:[%s880 + $0x8c] sm:$0xf] %v1574
      %1576 = vst [vmem:[%s880 + $0x98] sm:$0xf] %v1434
      %v1577 = vld [vmem:[%s880 + $0xa4] sm:$0xf]
      %v1578 = vsel %vm1552, %v1437, %v1577
      %1579 = vst [vmem:[%s880 + $0xa4] sm:$0xf] %v1578
      %1580 = vst [vmem:[%s880 + $0xb0] sm:$0xf] %v1443
      %v1581 = vld [vmem:[%s880 + $0xbc] sm:$0xf]
      %v1582 = vsel %vm1552, %v1446, %v1581
      %1583 = vst [vmem:[%s880 + $0xbc] sm:$0xf] %v1582
      %1584 = vst [vmem:[%s880 + $0xc8] sm:$0xf] %v1452
      %v1585 = vld [vmem:[%s880 + $0xd4] sm:$0xf]
      %v1586 = vsel %vm1552, %v1455, %v1585
      %1587 = vst [vmem:[%s880 + $0xd4] sm:$0xf] %v1586
      %1588 = vst [vmem:[%s880 + $0xe0] sm:$0xf] %v1461
      %v1589 = vld [vmem:[%s880 + $0xec] sm:$0xf]
      %v1590 = vsel %vm1552, %v1464, %v1589
      %1591 = vst [vmem:[%s880 + $0xec] sm:$0xf] %v1590
      %1592 = vst [vmem:[%s880 + $0xf8] sm:$0xf] %v1470
      %v1593 = vld [vmem:[%s880 + $0x104] sm:$0xf]
      %v1594 = vsel %vm1552, %v1473, %v1593
      %1595 = vst [vmem:[%s880 + $0x104] sm:$0xf] %v1594
      %1596 = vst [vmem:[%s880 + $0x110] sm:$0xf] %v1479
      %v1597 = vld [vmem:[%s880 + $0x11c] sm:$0xf]
      %v1598 = vsel %vm1552, %v1482, %v1597
      %1599 = vst [vmem:[%s880 + $0x11c] sm:$0xf] %v1598
      %1600 = vst [vmem:[%s880 + $0x128] sm:$0xf] %v1488
      %v1601 = vld [vmem:[%s880 + $0x134] sm:$0xf]
      %v1602 = vsel %vm1552, %v1491, %v1601
      %1603 = vst [vmem:[%s880 + $0x134] sm:$0xf] %v1602
      %1604 = vst [vmem:[%s880 + $0x140] sm:$0xf] %v1497
      %v1605 = vld [vmem:[%s880 + $0x14c] sm:$0xf]
      %v1606 = vsel %vm1552, %v1500, %v1605
      %1607 = vst [vmem:[%s880 + $0x14c] sm:$0xf] %v1606
      %1608 = vst [vmem:[%s880 + $0x158] sm:$0xf] %v1506
      %v1609 = vld [vmem:[%s880 + $0x164] sm:$0xf]
      %v1610 = vsel %vm1552, %v1509, %v1609
      %1611 = vst [vmem:[%s880 + $0x164] sm:$0xf] %v1610
      %1612 = vst [vmem:[%s880 + $0x170] sm:$0xf] %v1515
      %v1613 = vld [vmem:[%s880 + $0x17c] sm:$0xf]
      %v1614 = vsel %vm1552, %v1518, %v1613
      %1615 = vst [vmem:[%s880 + $0x17c] sm:$0xf] %v1614
      %v1616 = vld [vmem:[#allocation2] sm:$0xff]
      %v1617 = vld [vmem:[#allocation2 + $0x8] sm:$0xf]
      %v1618 = vld [vmem:[#allocation2 + $0xc] sm:$0xff]
      %v1619 = vld [vmem:[#allocation2 + $0x14] sm:$0xf]
      %v1620 = vld [vmem:[#allocation2 + $0x18] sm:$0xff]
      %v1621 = vld [vmem:[#allocation2 + $0x20] sm:$0xf]
      %v1622 = vld [vmem:[#allocation2 + $0x24] sm:$0xff]
      %v1623 = vld [vmem:[#allocation2 + $0x2c] sm:$0xf]
      %v1624 = vld [vmem:[#allocation2 + $0x30] sm:$0xff]
      %v1625 = vld [vmem:[#allocation2 + $0x38] sm:$0xf]
      %v1626 = vld [vmem:[#allocation2 + $0x3c] sm:$0xff]
      %v1627 = vld [vmem:[#allocation2 + $0x44] sm:$0xf]
      %v1628 = vld [vmem:[#allocation2 + $0x48] sm:$0xff]
      %v1629 = vld [vmem:[#allocation2 + $0x50] sm:$0xf]
      %v1630 = vld [vmem:[#allocation2 + $0x54] sm:$0xff]
      %v1631 = vld [vmem:[#allocation2 + $0x5c] sm:$0xf]
      %v1632 = vld [vmem:[#allocation2 + $0x60] sm:$0xff]
      %v1633 = vld [vmem:[#allocation2 + $0x68] sm:$0xf]
      %v1634 = vld [vmem:[#allocation2 + $0x6c] sm:$0xff]
      %v1635 = vld [vmem:[#allocation2 + $0x74] sm:$0xf]
      %v1636 = vld [vmem:[#allocation2 + $0x78] sm:$0xff]
      %v1637 = vld [vmem:[#allocation2 + $0x80] sm:$0xf]
      %v1638 = vld [vmem:[#allocation2 + $0x84] sm:$0xff]
      %v1639 = vld [vmem:[#allocation2 + $0x8c] sm:$0xf]
      %v1640 = vld [vmem:[#allocation2 + $0x90] sm:$0xff]
      %v1641 = vld [vmem:[#allocation2 + $0x98] sm:$0xf]
      %v1642 = vld [vmem:[#allocation2 + $0x9c] sm:$0xff]
      %v1643 = vld [vmem:[#allocation2 + $0xa4] sm:$0xf]
      %v1644 = vld [vmem:[#allocation2 + $0xa8] sm:$0xff]
      %v1645 = vld [vmem:[#allocation2 + $0xb0] sm:$0xf]
      %v1646 = vld [vmem:[#allocation2 + $0xb4] sm:$0xff]
      %v1647 = vld [vmem:[#allocation2 + $0xbc] sm:$0xf]
      %v1648 = vld [vmem:[#allocation2 + $0xc0] sm:$0xff]
      %v1649 = vld [vmem:[#allocation2 + $0xc8] sm:$0xf]
      %v1650 = vld [vmem:[#allocation2 + $0xcc] sm:$0xff]
      %v1651 = vld [vmem:[#allocation2 + $0xd4] sm:$0xf]
      %v1652 = vld [vmem:[#allocation2 + $0xd8] sm:$0xff]
      %v1653 = vld [vmem:[#allocation2 + $0xe0] sm:$0xf]
      %v1654 = vld [vmem:[#allocation2 + $0xe4] sm:$0xff]
      %v1655 = vld [vmem:[#allocation2 + $0xec] sm:$0xf]
      %v1656 = vld [vmem:[#allocation2 + $0xf0] sm:$0xff]
      %v1657 = vld [vmem:[#allocation2 + $0xf8] sm:$0xf]
      %v1658 = vld [vmem:[#allocation2 + $0xfc] sm:$0xff]
      %v1659 = vld [vmem:[#allocation2 + $0x104] sm:$0xf]
      %v1660 = vld [vmem:[#allocation2 + $0x108] sm:$0xff]
      %v1661 = vld [vmem:[#allocation2 + $0x110] sm:$0xf]
      %v1662 = vld [vmem:[#allocation2 + $0x114] sm:$0xff]
      %v1663 = vld [vmem:[#allocation2 + $0x11c] sm:$0xf]
      %v1664 = vld [vmem:[#allocation2 + $0x120] sm:$0xff]
      %v1665 = vld [vmem:[#allocation2 + $0x128] sm:$0xf]
      %v1666 = vld [vmem:[#allocation2 + $0x12c] sm:$0xff]
      %v1667 = vld [vmem:[#allocation2 + $0x134] sm:$0xf]
      %v1668 = vld [vmem:[#allocation2 + $0x138] sm:$0xff]
      %v1669 = vld [vmem:[#allocation2 + $0x140] sm:$0xf]
      %v1670 = vld [vmem:[#allocation2 + $0x144] sm:$0xff]
      %v1671 = vld [vmem:[#allocation2 + $0x14c] sm:$0xf]
      %v1672 = vld [vmem:[#allocation2 + $0x150] sm:$0xff]
      %v1673 = vld [vmem:[#allocation2 + $0x158] sm:$0xf]
      %v1674 = vld [vmem:[#allocation2 + $0x15c] sm:$0xff]
      %v1675 = vld [vmem:[#allocation2 + $0x164] sm:$0xf]
      %v1676 = vld [vmem:[#allocation2 + $0x168] sm:$0xff]
      %v1677 = vld [vmem:[#allocation2 + $0x170] sm:$0xf]
      %v1678 = vld [vmem:[#allocation2 + $0x174] sm:$0xff]
      %v1679 = vld [vmem:[#allocation2 + $0x17c] sm:$0xf]
      %v1680 = vld [vmem:[%s4] sm:$0xf]
      %v1681 = vld [vmem:[%s4 + $0x4] sm:$0xf]
      %v1682 = vld [vmem:[%s4 + $0x8] sm:$0xf]
      %v1683 = vld [vmem:[%s4 + $0xc] sm:$0xf]
      %v1684 = vld [vmem:[%s4 + $0x10] sm:$0xf]
      %v1685 = vld [vmem:[%s4 + $0x14] sm:$0xf]
      %v1686 = vld [vmem:[%s4 + $0x18] sm:$0xf]
      %v1687 = vld [vmem:[%s4 + $0x1c] sm:$0xf]
      %v1688 = vld [vmem:[%s4 + $0x20] sm:$0xf]
      %v1689 = vld [vmem:[%s4 + $0x24] sm:$0xf]
      %v1690 = vld [vmem:[%s4 + $0x28] sm:$0xf]
      %v1691 = vld [vmem:[%s4 + $0x2c] sm:$0xf]
      %v1692 = vld [vmem:[%s4 + $0x30] sm:$0xf]
      %v1693 = vld [vmem:[%s4 + $0x34] sm:$0xf]
      %v1694 = vld [vmem:[%s4 + $0x38] sm:$0xf]
      %v1695 = vld [vmem:[%s4 + $0x3c] sm:$0xf]
      %v1696 = vld [vmem:[%s4 + $0x40] sm:$0xf]
      %v1697 = vld [vmem:[%s4 + $0x44] sm:$0xf]
      %v1698 = vld [vmem:[%s4 + $0x48] sm:$0xf]
      %v1699 = vld [vmem:[%s4 + $0x4c] sm:$0xf]
      %v1700 = vld [vmem:[%s4 + $0x50] sm:$0xf]
      %v1701 = vld [vmem:[%s4 + $0x54] sm:$0xf]
      %v1702 = vld [vmem:[%s4 + $0x58] sm:$0xf]
      %v1703 = vld [vmem:[%s4 + $0x5c] sm:$0xf]
      %v1704 = vld [vmem:[%s4 + $0x60] sm:$0xf]
      %v1705 = vld [vmem:[%s4 + $0x64] sm:$0xf]
      %v1706 = vld [vmem:[%s4 + $0x68] sm:$0xf]
      %v1707 = vld [vmem:[%s4 + $0x6c] sm:$0xf]
      %v1708 = vld [vmem:[%s4 + $0x70] sm:$0xf]
      %v1709 = vld [vmem:[%s4 + $0x74] sm:$0xf]
      %v1710 = vld [vmem:[%s4 + $0x78] sm:$0xf]
      %v1711 = vld [vmem:[%s4 + $0x7c] sm:$0xf]
      %v1712 = vld [vmem:[%s4 + $0x80] sm:$0xf]
      %v1713 = vld [vmem:[%s4 + $0x84] sm:$0xf]
      %v1714 = vld [vmem:[%s4 + $0x88] sm:$0xf]
      %v1715 = vld [vmem:[%s4 + $0x8c] sm:$0xf]
      %v1716 = vld [vmem:[%s4 + $0x90] sm:$0xf]
      %v1717 = vld [vmem:[%s4 + $0x94] sm:$0xf]
      %v1718 = vld [vmem:[%s4 + $0x98] sm:$0xf]
      %v1719 = vld [vmem:[%s4 + $0x9c] sm:$0xf]
      %v1720 = vld [vmem:[%s4 + $0xa0] sm:$0xf]
      %v1721 = vld [vmem:[%s4 + $0xa4] sm:$0xf]
      %v1722 = vld [vmem:[%s4 + $0xa8] sm:$0xf]
      %v1723 = vld [vmem:[%s4 + $0xac] sm:$0xf]
      %v1724 = vld [vmem:[%s4 + $0xb0] sm:$0xf]
      %v1725 = vld [vmem:[%s4 + $0xb4] sm:$0xf]
      %v1726 = vld [vmem:[%s4 + $0xb8] sm:$0xf]
      %v1727 = vld [vmem:[%s4 + $0xbc] sm:$0xf]
      %v1728 = vld [vmem:[%s880] sm:$0xff]
      %v1729 = vld [vmem:[%s880 + $0x8] sm:$0xf]
      %v1730 = vld [vmem:[%s880 + $0xc] sm:$0xff]
      %v1731 = vld [vmem:[%s880 + $0x14] sm:$0xf]
      %v1732 = vld [vmem:[%s880 + $0x18] sm:$0xff]
      %v1733 = vld [vmem:[%s880 + $0x20] sm:$0xf]
      %v1734 = vld [vmem:[%s880 + $0x24] sm:$0xff]
      %v1735 = vld [vmem:[%s880 + $0x2c] sm:$0xf]
      %v1736 = vld [vmem:[%s880 + $0x30] sm:$0xff]
      %v1737 = vld [vmem:[%s880 + $0x38] sm:$0xf]
      %v1738 = vld [vmem:[%s880 + $0x3c] sm:$0xff]
      %v1739 = vld [vmem:[%s880 + $0x44] sm:$0xf]
      %v1740 = vld [vmem:[%s880 + $0x48] sm:$0xff]
      %v1741 = vld [vmem:[%s880 + $0x50] sm:$0xf]
      %v1742 = vld [vmem:[%s880 + $0x54] sm:$0xff]
      %v1743 = vld [vmem:[%s880 + $0x5c] sm:$0xf]
      %v1744 = vld [vmem:[%s880 + $0x60] sm:$0xff]
      %v1745 = vld [vmem:[%s880 + $0x68] sm:$0xf]
      %v1746 = vld [vmem:[%s880 + $0x6c] sm:$0xff]
      %v1747 = vld [vmem:[%s880 + $0x74] sm:$0xf]
      %v1748 = vld [vmem:[%s880 + $0x78] sm:$0xff]
      %v1749 = vld [vmem:[%s880 + $0x80] sm:$0xf]
      %v1750 = vld [vmem:[%s880 + $0x84] sm:$0xff]
      %v1751 = vld [vmem:[%s880 + $0x8c] sm:$0xf]
      %v1752 = vld [vmem:[%s880 + $0x90] sm:$0xff]
      %v1753 = vld [vmem:[%s880 + $0x98] sm:$0xf]
      %v1754 = vld [vmem:[%s880 + $0x9c] sm:$0xff]
      %v1755 = vld [vmem:[%s880 + $0xa4] sm:$0xf]
      %v1756 = vld [vmem:[%s880 + $0xa8] sm:$0xff]
      %v1757 = vld [vmem:[%s880 + $0xb0] sm:$0xf]
      %v1758 = vld [vmem:[%s880 + $0xb4] sm:$0xff]
      %v1759 = vld [vmem:[%s880 + $0xbc] sm:$0xf]
      %v1760 = vld [vmem:[%s880 + $0xc0] sm:$0xff]
      %v1761 = vld [vmem:[%s880 + $0xc8] sm:$0xf]
      %v1762 = vld [vmem:[%s880 + $0xcc] sm:$0xff]
      %v1763 = vld [vmem:[%s880 + $0xd4] sm:$0xf]
      %v1764 = vld [vmem:[%s880 + $0xd8] sm:$0xff]
      %v1765 = vld [vmem:[%s880 + $0xe0] sm:$0xf]
      %v1766 = vld [vmem:[%s880 + $0xe4] sm:$0xff]
      %v1767 = vld [vmem:[%s880 + $0xec] sm:$0xf]
      %v1768 = vld [vmem:[%s880 + $0xf0] sm:$0xff]
      %v1769 = vld [vmem:[%s880 + $0xf8] sm:$0xf]
      %v1770 = vld [vmem:[%s880 + $0xfc] sm:$0xff]
      %v1771 = vld [vmem:[%s880 + $0x104] sm:$0xf]
      %v1772 = vld [vmem:[%s880 + $0x108] sm:$0xff]
      %v1773 = vld [vmem:[%s880 + $0x110] sm:$0xf]
      %v1774 = vld [vmem:[%s880 + $0x114] sm:$0xff]
      %v1775 = vld [vmem:[%s880 + $0x11c] sm:$0xf]
      %v1776 = vld [vmem:[%s880 + $0x120] sm:$0xff]
      %v1777 = vld [vmem:[%s880 + $0x128] sm:$0xf]
      %v1778 = vld [vmem:[%s880 + $0x12c] sm:$0xff]
      %v1779 = vld [vmem:[%s880 + $0x134] sm:$0xf]
      %v1780 = vld [vmem:[%s880 + $0x138] sm:$0xff]
      %v1781 = vld [vmem:[%s880 + $0x140] sm:$0xf]
      %v1782 = vld [vmem:[%s880 + $0x144] sm:$0xff]
      %v1783 = vld [vmem:[%s880 + $0x14c] sm:$0xf]
      %v1784 = vld [vmem:[%s880 + $0x150] sm:$0xff]
      %v1785 = vld [vmem:[%s880 + $0x158] sm:$0xf]
      %v1786 = vld [vmem:[%s880 + $0x15c] sm:$0xff]
      %v1787 = vld [vmem:[%s880 + $0x164] sm:$0xf]
      %v1788 = vld [vmem:[%s880 + $0x168] sm:$0xff]
      %v1789 = vld [vmem:[%s880 + $0x170] sm:$0xf]
      %v1790 = vld [vmem:[%s880 + $0x174] sm:$0xff]
      %v1791 = vld [vmem:[%s880 + $0x17c] sm:$0xf]
      %s1792 = scalar_lea.vmem %s4, 192
      %v1793 = vld [vmem:[%s1792] sm:$0xf]
      %v1794 = vld [vmem:[%s1792 + $0x4] sm:$0xf]
      %v1795 = vld [vmem:[%s1792 + $0x8] sm:$0xf]
      %v1796 = vld [vmem:[%s1792 + $0xc] sm:$0xf]
      %v1797 = vld [vmem:[%s1792 + $0x10] sm:$0xf]
      %v1798 = vld [vmem:[%s1792 + $0x14] sm:$0xf]
      %v1799 = vld [vmem:[%s1792 + $0x18] sm:$0xf]
      %v1800 = vld [vmem:[%s1792 + $0x1c] sm:$0xf]
      %v1801 = vld [vmem:[%s1792 + $0x20] sm:$0xf]
      %v1802 = vld [vmem:[%s1792 + $0x24] sm:$0xf]
      %v1803 = vld [vmem:[%s1792 + $0x28] sm:$0xf]
      %v1804 = vld [vmem:[%s1792 + $0x2c] sm:$0xf]
      %v1805 = vld [vmem:[%s1792 + $0x30] sm:$0xf]
      %v1806 = vld [vmem:[%s1792 + $0x34] sm:$0xf]
      %v1807 = vld [vmem:[%s1792 + $0x38] sm:$0xf]
      %v1808 = vld [vmem:[%s1792 + $0x3c] sm:$0xf]
      %v1809 = vld [vmem:[%s1792 + $0x40] sm:$0xf]
      %v1810 = vld [vmem:[%s1792 + $0x44] sm:$0xf]
      %v1811 = vld [vmem:[%s1792 + $0x48] sm:$0xf]
      %v1812 = vld [vmem:[%s1792 + $0x4c] sm:$0xf]
      %v1813 = vld [vmem:[%s1792 + $0x50] sm:$0xf]
      %v1814 = vld [vmem:[%s1792 + $0x54] sm:$0xf]
      %v1815 = vld [vmem:[%s1792 + $0x58] sm:$0xf]
      %v1816 = vld [vmem:[%s1792 + $0x5c] sm:$0xf]
      %v1817 = vld [vmem:[%s1792 + $0x60] sm:$0xf]
      %v1818 = vld [vmem:[%s1792 + $0x64] sm:$0xf]
      %v1819 = vld [vmem:[%s1792 + $0x68] sm:$0xf]
      %v1820 = vld [vmem:[%s1792 + $0x6c] sm:$0xf]
      %v1821 = vld [vmem:[%s1792 + $0x70] sm:$0xf]
      %v1822 = vld [vmem:[%s1792 + $0x74] sm:$0xf]
      %v1823 = vld [vmem:[%s1792 + $0x78] sm:$0xf]
      %v1824 = vld [vmem:[%s1792 + $0x7c] sm:$0xf]
      %v1825 = vld [vmem:[%s1792 + $0x80] sm:$0xf]
      %v1826 = vld [vmem:[%s1792 + $0x84] sm:$0xf]
      %v1827 = vld [vmem:[%s1792 + $0x88] sm:$0xf]
      %v1828 = vld [vmem:[%s1792 + $0x8c] sm:$0xf]
      %v1829 = vld [vmem:[%s1792 + $0x90] sm:$0xf]
      %v1830 = vld [vmem:[%s1792 + $0x94] sm:$0xf]
      %v1831 = vld [vmem:[%s1792 + $0x98] sm:$0xf]
      %v1832 = vld [vmem:[%s1792 + $0x9c] sm:$0xf]
      %v1833 = vld [vmem:[%s1792 + $0xa0] sm:$0xf]
      %v1834 = vld [vmem:[%s1792 + $0xa4] sm:$0xf]
      %v1835 = vld [vmem:[%s1792 + $0xa8] sm:$0xf]
      %v1836 = vld [vmem:[%s1792 + $0xac] sm:$0xf]
      %v1837 = vld [vmem:[%s1792 + $0xb0] sm:$0xf]
      %v1838 = vld [vmem:[%s1792 + $0xb4] sm:$0xf]
      %v1839 = vld [vmem:[%s1792 + $0xb8] sm:$0xf]
      %v1840 = vld [vmem:[%s1792 + $0xbc] sm:$0xf]
      %v1905 = vunpack.c.l.b16 %v1728
      %v1906 = vunpack.c.h.b16 %v1728
      %v1907 = vunpack.c.l.b16 %v1729
      %v1908 = vunpack.c.l.b16 %v1730
      %v1909 = vunpack.c.h.b16 %v1730
      %v1910 = vunpack.c.l.b16 %v1731
      %v1911 = vunpack.c.l.b16 %v1732
      %v1912 = vunpack.c.h.b16 %v1732
      %v1913 = vunpack.c.l.b16 %v1733
      %v1914 = vunpack.c.l.b16 %v1734
      %v1915 = vunpack.c.h.b16 %v1734
      %v1916 = vunpack.c.l.b16 %v1735
      %v1917 = vunpack.c.l.b16 %v1736
      %v1918 = vunpack.c.h.b16 %v1736
      %v1919 = vunpack.c.l.b16 %v1737
      %v1920 = vunpack.c.l.b16 %v1738
      %v1921 = vunpack.c.h.b16 %v1738
      %v1922 = vunpack.c.l.b16 %v1739
      %v1923 = vunpack.c.l.b16 %v1740
      %v1924 = vunpack.c.h.b16 %v1740
      %v1925 = vunpack.c.l.b16 %v1741
      %v1926 = vunpack.c.l.b16 %v1742
      %v1927 = vunpack.c.h.b16 %v1742
      %v1928 = vunpack.c.l.b16 %v1743
      %v1929 = vunpack.c.l.b16 %v1744
      %v1930 = vunpack.c.h.b16 %v1744
      %v1931 = vunpack.c.l.b16 %v1745
      %v1932 = vunpack.c.l.b16 %v1746
      %v1933 = vunpack.c.h.b16 %v1746
      %v1934 = vunpack.c.l.b16 %v1747
      %v1935 = vunpack.c.l.b16 %v1748
      %v1936 = vunpack.c.h.b16 %v1748
      %v1937 = vunpack.c.l.b16 %v1749
      %v1938 = vunpack.c.l.b16 %v1750
      %v1939 = vunpack.c.h.b16 %v1750
      %v1940 = vunpack.c.l.b16 %v1751
      %v1941 = vunpack.c.l.b16 %v1752
      %v1942 = vunpack.c.h.b16 %v1752
      %v1943 = vunpack.c.l.b16 %v1753
      %v1944 = vunpack.c.l.b16 %v1754
      %v1945 = vunpack.c.h.b16 %v1754
      %v1946 = vunpack.c.l.b16 %v1755
      %v1947 = vunpack.c.l.b16 %v1756
      %v1948 = vunpack.c.h.b16 %v1756
      %v1949 = vunpack.c.l.b16 %v1757
      %v1950 = vunpack.c.l.b16 %v1758
      %v1951 = vunpack.c.h.b16 %v1758
      %v1952 = vunpack.c.l.b16 %v1759
      %v1953 = vunpack.c.l.b16 %v1760
      %v1954 = vunpack.c.h.b16 %v1760
      %v1955 = vunpack.c.l.b16 %v1761
      %v1956 = vunpack.c.l.b16 %v1762
      %v1957 = vunpack.c.h.b16 %v1762
      %v1958 = vunpack.c.l.b16 %v1763
      %v1959 = vunpack.c.l.b16 %v1764
      %v1960 = vunpack.c.h.b16 %v1764
      %v1961 = vunpack.c.l.b16 %v1765
      %v1962 = vunpack.c.l.b16 %v1766
      %v1963 = vunpack.c.h.b16 %v1766
      %v1964 = vunpack.c.l.b16 %v1767
      %v1965 = vunpack.c.l.b16 %v1768
      %v1966 = vunpack.c.h.b16 %v1768
      %v1967 = vunpack.c.l.b16 %v1769
      %v1968 = vunpack.c.l.b16 %v1770
      %v1969 = vunpack.c.h.b16 %v1770
      %v1970 = vunpack.c.l.b16 %v1771
      %v1971 = vunpack.c.l.b16 %v1772
      %v1972 = vunpack.c.h.b16 %v1772
      %v1973 = vunpack.c.l.b16 %v1773
      %v1974 = vunpack.c.l.b16 %v1774
      %v1975 = vunpack.c.h.b16 %v1774
      %v1976 = vunpack.c.l.b16 %v1775
      %v1977 = vunpack.c.l.b16 %v1776
      %v1978 = vunpack.c.h.b16 %v1776
      %v1979 = vunpack.c.l.b16 %v1777
      %v1980 = vunpack.c.l.b16 %v1778
      %v1981 = vunpack.c.h.b16 %v1778
      %v1982 = vunpack.c.l.b16 %v1779
      %v1983 = vunpack.c.l.b16 %v1780
      %v1984 = vunpack.c.h.b16 %v1780
      %v1985 = vunpack.c.l.b16 %v1781
      %v1986 = vunpack.c.l.b16 %v1782
      %v1987 = vunpack.c.h.b16 %v1782
      %v1988 = vunpack.c.l.b16 %v1783
      %v1989 = vunpack.c.l.b16 %v1784
      %v1990 = vunpack.c.h.b16 %v1784
      %v1991 = vunpack.c.l.b16 %v1785
      %v1992 = vunpack.c.l.b16 %v1786
      %v1993 = vunpack.c.h.b16 %v1786
      %v1994 = vunpack.c.l.b16 %v1787
      %v1995 = vunpack.c.l.b16 %v1788
      %v1996 = vunpack.c.h.b16 %v1788
      %v1997 = vunpack.c.l.b16 %v1789
      %v1998 = vunpack.c.l.b16 %v1790
      %v1999 = vunpack.c.h.b16 %v1790
      %v2000 = vunpack.c.l.b16 %v1791
      %v2001 = vpack.c.b16 %v1908, %v1905
      %v2002 = vpack.c.b16 %v1909, %v1906
      %v2003 = vpack.c.b16 %v1910, %v1907
      %v2004 = vpack.c.b16 %v1914, %v1911
      %v2005 = vpack.c.b16 %v1915, %v1912
      %v2006 = vpack.c.b16 %v1916, %v1913
      %v2007 = vpack.c.b16 %v1920, %v1917
      %v2008 = vpack.c.b16 %v1921, %v1918
      %v2009 = vpack.c.b16 %v1922, %v1919
      %v2010 = vpack.c.b16 %v1926, %v1923
      %v2011 = vpack.c.b16 %v1927, %v1924
      %v2012 = vpack.c.b16 %v1928, %v1925
      %v2013 = vpack.c.b16 %v1932, %v1929
      %v2014 = vpack.c.b16 %v1933, %v1930
      %v2015 = vpack.c.b16 %v1934, %v1931
      %v2016 = vpack.c.b16 %v1938, %v1935
      %v2017 = vpack.c.b16 %v1939, %v1936
      %v2018 = vpack.c.b16 %v1940, %v1937
      %v2019 = vpack.c.b16 %v1944, %v1941
      %v2020 = vpack.c.b16 %v1945, %v1942
      %v2021 = vpack.c.b16 %v1946, %v1943
      %v2022 = vpack.c.b16 %v1950, %v1947
      %v2023 = vpack.c.b16 %v1951, %v1948
      %v2024 = vpack.c.b16 %v1952, %v1949
      %v2025 = vpack.c.b16 %v1956, %v1953
      %v2026 = vpack.c.b16 %v1957, %v1954
      %v2027 = vpack.c.b16 %v1958, %v1955
      %v2028 = vpack.c.b16 %v1962, %v1959
      %v2029 = vpack.c.b16 %v1963, %v1960
      %v2030 = vpack.c.b16 %v1964, %v1961
      %v2031 = vpack.c.b16 %v1968, %v1965
      %v2032 = vpack.c.b16 %v1969, %v1966
      %v2033 = vpack.c.b16 %v1970, %v1967
      %v2034 = vpack.c.b16 %v1974, %v1971
      %v2035 = vpack.c.b16 %v1975, %v1972
      %v2036 = vpack.c.b16 %v1976, %v1973
      %v2037 = vpack.c.b16 %v1980, %v1977
      %v2038 = vpack.c.b16 %v1981, %v1978
      %v2039 = vpack.c.b16 %v1982, %v1979
      %v2040 = vpack.c.b16 %v1986, %v1983
      %v2041 = vpack.c.b16 %v1987, %v1984
      %v2042 = vpack.c.b16 %v1988, %v1985
      %v2043 = vpack.c.b16 %v1992, %v1989
      %v2044 = vpack.c.b16 %v1993, %v1990
      %v2045 = vpack.c.b16 %v1994, %v1991
      %v2046 = vpack.c.b16 %v1998, %v1995
      %v2047 = vpack.c.b16 %v1999, %v1996
      %v2048 = vpack.c.b16 %v2000, %v1997
      %v2145 = vunpack.c.l.b16 %v1793
      %v2146 = vunpack.c.l.b16 %v1794
      %v2147 = vunpack.c.l.b16 %v1795
      %v2148 = vunpack.c.l.b16 %v1796
      %v2149 = vunpack.c.l.b16 %v1797
      %v2150 = vunpack.c.l.b16 %v1798
      %v2151 = vunpack.c.l.b16 %v1799
      %v2152 = vunpack.c.l.b16 %v1800
      %v2153 = vunpack.c.l.b16 %v1801
      %v2154 = vunpack.c.l.b16 %v1802
      %v2155 = vunpack.c.l.b16 %v1803
      %v2156 = vunpack.c.l.b16 %v1804
      %v2157 = vunpack.c.l.b16 %v1805
      %v2158 = vunpack.c.l.b16 %v1806
      %v2159 = vunpack.c.l.b16 %v1807
      %v2160 = vunpack.c.l.b16 %v1808
      %v2161 = vunpack.c.l.b16 %v1809
      %v2162 = vunpack.c.l.b16 %v1810
      %v2163 = vunpack.c.l.b16 %v1811
      %v2164 = vunpack.c.l.b16 %v1812
      %v2165 = vunpack.c.l.b16 %v1813
      %v2166 = vunpack.c.l.b16 %v1814
      %v2167 = vunpack.c.l.b16 %v1815
      %v2168 = vunpack.c.l.b16 %v1816
      %v2169 = vunpack.c.l.b16 %v1817
      %v2170 = vunpack.c.l.b16 %v1818
      %v2171 = vunpack.c.l.b16 %v1819
      %v2172 = vunpack.c.l.b16 %v1820
      %v2173 = vunpack.c.l.b16 %v1821
      %v2174 = vunpack.c.l.b16 %v1822
      %v2175 = vunpack.c.l.b16 %v1823
      %v2176 = vunpack.c.l.b16 %v1824
      %v2177 = vunpack.c.l.b16 %v1825
      %v2178 = vunpack.c.l.b16 %v1826
      %v2179 = vunpack.c.l.b16 %v1827
      %v2180 = vunpack.c.l.b16 %v1828
      %v2181 = vunpack.c.l.b16 %v1829
      %v2182 = vunpack.c.l.b16 %v1830
      %v2183 = vunpack.c.l.b16 %v1831
      %v2184 = vunpack.c.l.b16 %v1832
      %v2185 = vunpack.c.l.b16 %v1833
      %v2186 = vunpack.c.l.b16 %v1834
      %v2187 = vunpack.c.l.b16 %v1835
      %v2188 = vunpack.c.l.b16 %v1836
      %v2189 = vunpack.c.l.b16 %v1837
      %v2190 = vunpack.c.l.b16 %v1838
      %v2191 = vunpack.c.l.b16 %v1839
      %v2192 = vunpack.c.l.b16 %v1840
      %v2193 = vpack.c.b16 %v2146, %v2145
      %v2194 = vpack.c.b16 %v2148, %v2147
      %v2195 = vpack.c.b16 %v2150, %v2149
      %v2196 = vpack.c.b16 %v2152, %v2151
      %v2197 = vpack.c.b16 %v2154, %v2153
      %v2198 = vpack.c.b16 %v2156, %v2155
      %v2199 = vpack.c.b16 %v2158, %v2157
      %v2200 = vpack.c.b16 %v2160, %v2159
      %v2201 = vpack.c.b16 %v2162, %v2161
      %v2202 = vpack.c.b16 %v2164, %v2163
      %v2203 = vpack.c.b16 %v2166, %v2165
      %v2204 = vpack.c.b16 %v2168, %v2167
      %v2205 = vpack.c.b16 %v2170, %v2169
      %v2206 = vpack.c.b16 %v2172, %v2171
      %v2207 = vpack.c.b16 %v2174, %v2173
      %v2208 = vpack.c.b16 %v2176, %v2175
      %v2209 = vpack.c.b16 %v2178, %v2177
      %v2210 = vpack.c.b16 %v2180, %v2179
      %v2211 = vpack.c.b16 %v2182, %v2181
      %v2212 = vpack.c.b16 %v2184, %v2183
      %v2213 = vpack.c.b16 %v2186, %v2185
      %v2214 = vpack.c.b16 %v2188, %v2187
      %v2215 = vpack.c.b16 %v2190, %v2189
      %v2216 = vpack.c.b16 %v2192, %v2191
      %2241 = vmatprep.subr.bf16.mxu0 0
      %2242 = vmatpush1.bf16.msra.mxu0 %v2200
      %2243 = vmatprep.subr.bf16.mxu0 0
      %2244 = vmatpush1.bf16.msra.mxu0 %v2199
      %2245 = vmatprep.subr.bf16.mxu0 0
      %2246 = vmatpush1.bf16.msra.mxu0 %v2198
      %2247 = vmatprep.subr.bf16.mxu0 0
      %2248 = vmatpush1.bf16.msra.mxu0 %v2197
      %2249 = vmatprep.subr.bf16.mxu0 0
      %2250 = vmatpush1.bf16.msra.mxu0 %v2196
      %2251 = vmatprep.subr.bf16.mxu0 0
      %2252 = vmatpush1.bf16.msra.mxu0 %v2195
      %2253 = vmatprep.subr.bf16.mxu0 0
      %2254 = vmatpush1.bf16.msra.mxu0 %v2194
      %2255 = vmatprep.subr.bf16.mxu0 0
      %2256 = vmatpush1.bf16.msra.mxu0 %v2193
      %2257 = vmatprep.subr.bf16.mxu0 0
      %2258 = vmatpush2.bf16.msra.mxu0 %v2208
      %2259 = vmatprep.subr.bf16.mxu0 0
      %2260 = vmatpush2.bf16.msra.mxu0 %v2207
      %2261 = vmatprep.subr.bf16.mxu0 0
      %2262 = vmatpush2.bf16.msra.mxu0 %v2206
      %2263 = vmatprep.subr.bf16.mxu0 0
      %2264 = vmatpush2.bf16.msra.mxu0 %v2205
      %2265 = vmatprep.subr.bf16.mxu0 0
      %2266 = vmatpush2.bf16.msra.mxu0 %v2204
      %2267 = vmatprep.subr.bf16.mxu0 0
      %2268 = vmatpush2.bf16.msra.mxu0 %v2203
      %2269 = vmatprep.subr.bf16.mxu0 0
      %2270 = vmatpush2.bf16.msra.mxu0 %v2202
      %2271 = vmatprep.subr.bf16.mxu0 0
      %2272 = vmatpush2.bf16.msra.mxu0 %v2201
      %2273 = vmatprep.mubr.bf16.mxu0 %v2002
      %2274 = vmatmul.mubr.bf16.gmra.mxu0 %v2001
      %v2275 = vpop.f32.mrf.mxu0
      %v2276 = vadd.f32 0.0, %v2275
      %v2277 = vpop.f32.mrf.mxu0
      %v2278 = vpop.f32.mrf.mxu0
      %v2279 = vadd.f32 0.0, %v2278
      %v2280 = vpop.f32.mrf.mxu0
      %2281 = vmatprep.mubr.bf16.mxu0 %v2005
      %2282 = vmatmul.mubr.bf16.gmra.mxu0 %v2004
      %v2283 = vpop.f32.mrf.mxu0
      %v2284 = vadd.f32 0.0, %v2283
      %v2285 = vpop.f32.mrf.mxu0
      %v2286 = vpop.f32.mrf.mxu0
      %v2287 = vadd.f32 0.0, %v2286
      %v2288 = vpop.f32.mrf.mxu0
      %2289 = vmatprep.mubr.bf16.mxu0 %v2008
      %2290 = vmatmul.mubr.bf16.gmra.mxu0 %v2007
      %v2291 = vpop.f32.mrf.mxu0
      %v2292 = vadd.f32 0.0, %v2291
      %v2293 = vpop.f32.mrf.mxu0
      %v2294 = vpop.f32.mrf.mxu0
      %v2295 = vadd.f32 0.0, %v2294
      %v2296 = vpop.f32.mrf.mxu0
      %2297 = vmatprep.mubr.bf16.mxu0 %v2011
      %2298 = vmatmul.mubr.bf16.gmra.mxu0 %v2010
      %v2299 = vpop.f32.mrf.mxu0
      %v2300 = vadd.f32 0.0, %v2299
      %v2301 = vpop.f32.mrf.mxu0
      %v2302 = vpop.f32.mrf.mxu0
      %v2303 = vadd.f32 0.0, %v2302
      %v2304 = vpop.f32.mrf.mxu0
      %2305 = vmatprep.mubr.bf16.mxu0 %v2014
      %2306 = vmatmul.mubr.bf16.gmra.mxu0 %v2013
      %v2307 = vpop.f32.mrf.mxu0
      %v2308 = vadd.f32 0.0, %v2307
      %v2309 = vpop.f32.mrf.mxu0
      %v2310 = vpop.f32.mrf.mxu0
      %v2311 = vadd.f32 0.0, %v2310
      %v2312 = vpop.f32.mrf.mxu0
      %2313 = vmatprep.mubr.bf16.mxu0 %v2017
      %2314 = vmatmul.mubr.bf16.gmra.mxu0 %v2016
      %v2315 = vpop.f32.mrf.mxu0
      %v2316 = vadd.f32 0.0, %v2315
      %v2317 = vpop.f32.mrf.mxu0
      %v2318 = vpop.f32.mrf.mxu0
      %v2319 = vadd.f32 0.0, %v2318
      %v2320 = vpop.f32.mrf.mxu0
      %2321 = vmatprep.mubr.bf16.mxu0 %v2020
      %2322 = vmatmul.mubr.bf16.gmra.mxu0 %v2019
      %v2323 = vpop.f32.mrf.mxu0
      %v2324 = vadd.f32 0.0, %v2323
      %v2325 = vpop.f32.mrf.mxu0
      %v2326 = vpop.f32.mrf.mxu0
      %v2327 = vadd.f32 0.0, %v2326
      %v2328 = vpop.f32.mrf.mxu0
      %2329 = vmatprep.mubr.bf16.mxu0 %v2023
      %2330 = vmatmul.mubr.bf16.gmra.mxu0 %v2022
      %v2331 = vpop.f32.mrf.mxu0
      %v2332 = vadd.f32 0.0, %v2331
      %v2333 = vpop.f32.mrf.mxu0
      %v2334 = vpop.f32.mrf.mxu0
      %v2335 = vadd.f32 0.0, %v2334
      %v2336 = vpop.f32.mrf.mxu0
      %2337 = vmatprep.mubr.bf16.mxu0 %v2026
      %2338 = vmatmul.mubr.bf16.gmra.mxu0 %v2025
      %v2339 = vpop.f32.mrf.mxu0
      %v2340 = vadd.f32 0.0, %v2339
      %v2341 = vpop.f32.mrf.mxu0
      %v2342 = vpop.f32.mrf.mxu0
      %v2343 = vadd.f32 0.0, %v2342
      %v2344 = vpop.f32.mrf.mxu0
      %2345 = vmatprep.mubr.bf16.mxu0 %v2029
      %2346 = vmatmul.mubr.bf16.gmra.mxu0 %v2028
      %v2347 = vpop.f32.mrf.mxu0
      %v2348 = vadd.f32 0.0, %v2347
      %v2349 = vpop.f32.mrf.mxu0
      %v2350 = vpop.f32.mrf.mxu0
      %v2351 = vadd.f32 0.0, %v2350
      %v2352 = vpop.f32.mrf.mxu0
      %2353 = vmatprep.mubr.bf16.mxu0 %v2032
      %2354 = vmatmul.mubr.bf16.gmra.mxu0 %v2031
      %v2355 = vpop.f32.mrf.mxu0
      %v2356 = vadd.f32 0.0, %v2355
      %v2357 = vpop.f32.mrf.mxu0
      %v2358 = vpop.f32.mrf.mxu0
      %v2359 = vadd.f32 0.0, %v2358
      %v2360 = vpop.f32.mrf.mxu0
      %2361 = vmatprep.mubr.bf16.mxu0 %v2035
      %2362 = vmatmul.mubr.bf16.gmra.mxu0 %v2034
      %v2363 = vpop.f32.mrf.mxu0
      %v2364 = vadd.f32 0.0, %v2363
      %v2365 = vpop.f32.mrf.mxu0
      %v2366 = vpop.f32.mrf.mxu0
      %v2367 = vadd.f32 0.0, %v2366
      %v2368 = vpop.f32.mrf.mxu0
      %2369 = vmatprep.mubr.bf16.mxu0 %v2038
      %2370 = vmatmul.mubr.bf16.gmra.mxu0 %v2037
      %v2371 = vpop.f32.mrf.mxu0
      %v2372 = vadd.f32 0.0, %v2371
      %v2373 = vpop.f32.mrf.mxu0
      %v2374 = vpop.f32.mrf.mxu0
      %v2375 = vadd.f32 0.0, %v2374
      %v2376 = vpop.f32.mrf.mxu0
      %2377 = vmatprep.mubr.bf16.mxu0 %v2041
      %2378 = vmatmul.mubr.bf16.gmra.mxu0 %v2040
      %v2379 = vpop.f32.mrf.mxu0
      %v2380 = vadd.f32 0.0, %v2379
      %v2381 = vpop.f32.mrf.mxu0
      %v2382 = vpop.f32.mrf.mxu0
      %v2383 = vadd.f32 0.0, %v2382
      %v2384 = vpop.f32.mrf.mxu0
      %2385 = vmatprep.mubr.bf16.mxu0 %v2044
      %2386 = vmatmul.mubr.bf16.gmra.mxu0 %v2043
      %v2387 = vpop.f32.mrf.mxu0
      %v2388 = vadd.f32 0.0, %v2387
      %v2389 = vpop.f32.mrf.mxu0
      %v2390 = vpop.f32.mrf.mxu0
      %v2391 = vadd.f32 0.0, %v2390
      %v2392 = vpop.f32.mrf.mxu0
      %2393 = vmatprep.mubr.bf16.mxu0 %v2047
      %2394 = vmatmul.mubr.bf16.gmra.mxu0 %v2046
      %v2395 = vpop.f32.mrf.mxu0
      %v2396 = vadd.f32 0.0, %v2395
      %v2397 = vpop.f32.mrf.mxu0
      %v2398 = vpop.f32.mrf.mxu0
      %v2399 = vadd.f32 0.0, %v2398
      %v2400 = vpop.f32.mrf.mxu0
      %2401 = vdwg.mxu0
      %2402 = vmatprep.subr.bf16.mxu0 0
      %2403 = vmatpush1.bf16.msra.mxu0 %v2216
      %2404 = vmatprep.subr.bf16.mxu0 0
      %2405 = vmatpush1.bf16.msra.mxu0 %v2215
      %2406 = vmatprep.subr.bf16.mxu0 0
      %2407 = vmatpush1.bf16.msra.mxu0 %v2214
      %2408 = vmatprep.subr.bf16.mxu0 0
      %2409 = vmatpush1.bf16.msra.mxu0 %v2213
      %2410 = vmatprep.subr.bf16.mxu0 0
      %2411 = vmatpush1.bf16.msra.mxu0 %v2212
      %2412 = vmatprep.subr.bf16.mxu0 0
      %2413 = vmatpush1.bf16.msra.mxu0 %v2211
      %2414 = vmatprep.subr.bf16.mxu0 0
      %2415 = vmatpush1.bf16.msra.mxu0 %v2210
      %2416 = vmatprep.subr.bf16.mxu0 0
      %2417 = vmatpush1.bf16.msra.mxu0 %v2209
      %2418 = vmatprep.subr.bf16.mxu0 0
      %2419 = vmatpush2.bf16.msra.mxu0 0
      %2420 = vmatprep.subr.bf16.mxu0 0
      %2421 = vmatpush2.bf16.msra.mxu0 0
      %2422 = vmatprep.subr.bf16.mxu0 0
      %2423 = vmatpush2.bf16.msra.mxu0 0
      %2424 = vmatprep.subr.bf16.mxu0 0
      %2425 = vmatpush2.bf16.msra.mxu0 0
      %2426 = vmatprep.subr.bf16.mxu0 0
      %2427 = vmatpush2.bf16.msra.mxu0 0
      %2428 = vmatprep.subr.bf16.mxu0 0
      %2429 = vmatpush2.bf16.msra.mxu0 0
      %2430 = vmatprep.subr.bf16.mxu0 0
      %2431 = vmatpush2.bf16.msra.mxu0 0
      %2432 = vmatprep.subr.bf16.mxu0 0
      %2433 = vmatpush2.bf16.msra.mxu0 0
      %2434 = vmatprep.mubr.bf16.mxu0 0
      %2435 = vmatmul.mubr.bf16.gmra.mxu0 %v2003
      %v2436 = vpop.f32.mrf.mxu0
      %v2437 = vadd.f32 %v2276, %v2436
      %v2438 = vpop.f32.mrf.mxu0
      %v2439 = vpop.f32.mrf.mxu0
      %v2440 = vadd.f32 %v2279, %v2439
      %v2441 = vpop.f32.mrf.mxu0
      %2442 = vmatprep.mubr.bf16.mxu0 0
      %2443 = vmatmul.mubr.bf16.gmra.mxu0 %v2006
      %v2444 = vpop.f32.mrf.mxu0
      %v2445 = vadd.f32 %v2284, %v2444
      %v2446 = vpop.f32.mrf.mxu0
      %v2447 = vpop.f32.mrf.mxu0
      %v2448 = vadd.f32 %v2287, %v2447
      %v2449 = vpop.f32.mrf.mxu0
      %2450 = vmatprep.mubr.bf16.mxu0 0
      %2451 = vmatmul.mubr.bf16.gmra.mxu0 %v2009
      %v2452 = vpop.f32.mrf.mxu0
      %v2453 = vadd.f32 %v2292, %v2452
      %v2454 = vpop.f32.mrf.mxu0
      %v2455 = vpop.f32.mrf.mxu0
      %v2456 = vadd.f32 %v2295, %v2455
      %v2457 = vpop.f32.mrf.mxu0
      %2458 = vmatprep.mubr.bf16.mxu0 0
      %2459 = vmatmul.mubr.bf16.gmra.mxu0 %v2012
      %v2460 = vpop.f32.mrf.mxu0
      %v2461 = vadd.f32 %v2300, %v2460
      %v2462 = vpop.f32.mrf.mxu0
      %v2463 = vpop.f32.mrf.mxu0
      %v2464 = vadd.f32 %v2303, %v2463
      %v2465 = vpop.f32.mrf.mxu0
      %2466 = vmatprep.mubr.bf16.mxu0 0
      %2467 = vmatmul.mubr.bf16.gmra.mxu0 %v2015
      %v2468 = vpop.f32.mrf.mxu0
      %v2469 = vadd.f32 %v2308, %v2468
      %v2470 = vpop.f32.mrf.mxu0
      %v2471 = vpop.f32.mrf.mxu0
      %v2472 = vadd.f32 %v2311, %v2471
      %v2473 = vpop.f32.mrf.mxu0
      %2474 = vmatprep.mubr.bf16.mxu0 0
      %2475 = vmatmul.mubr.bf16.gmra.mxu0 %v2018
      %v2476 = vpop.f32.mrf.mxu0
      %v2477 = vadd.f32 %v2316, %v2476
      %v2478 = vpop.f32.mrf.mxu0
      %v2479 = vpop.f32.mrf.mxu0
      %v2480 = vadd.f32 %v2319, %v2479
      %v2481 = vpop.f32.mrf.mxu0
      %2482 = vmatprep.mubr.bf16.mxu0 0
      %2483 = vmatmul.mubr.bf16.gmra.mxu0 %v2021
      %v2484 = vpop.f32.mrf.mxu0
      %v2485 = vadd.f32 %v2324, %v2484
      %v2486 = vpop.f32.mrf.mxu0
      %v2487 = vpop.f32.mrf.mxu0
      %v2488 = vadd.f32 %v2327, %v2487
      %v2489 = vpop.f32.mrf.mxu0
      %2490 = vmatprep.mubr.bf16.mxu0 0
      %2491 = vmatmul.mubr.bf16.gmra.mxu0 %v2024
      %v2492 = vpop.f32.mrf.mxu0
      %v2493 = vadd.f32 %v2332, %v2492
      %v2494 = vpop.f32.mrf.mxu0
      %v2495 = vpop.f32.mrf.mxu0
      %v2496 = vadd.f32 %v2335, %v2495
      %v2497 = vpop.f32.mrf.mxu0
      %2498 = vmatprep.mubr.bf16.mxu0 0
      %2499 = vmatmul.mubr.bf16.gmra.mxu0 %v2027
      %v2500 = vpop.f32.mrf.mxu0
      %v2501 = vadd.f32 %v2340, %v2500
      %v2502 = vpop.f32.mrf.mxu0
      %v2503 = vpop.f32.mrf.mxu0
      %v2504 = vadd.f32 %v2343, %v2503
      %v2505 = vpop.f32.mrf.mxu0
      %2506 = vmatprep.mubr.bf16.mxu0 0
      %2507 = vmatmul.mubr.bf16.gmra.mxu0 %v2030
      %v2508 = vpop.f32.mrf.mxu0
      %v2509 = vadd.f32 %v2348, %v2508
      %v2510 = vpop.f32.mrf.mxu0
      %v2511 = vpop.f32.mrf.mxu0
      %v2512 = vadd.f32 %v2351, %v2511
      %v2513 = vpop.f32.mrf.mxu0
      %2514 = vmatprep.mubr.bf16.mxu0 0
      %2515 = vmatmul.mubr.bf16.gmra.mxu0 %v2033
      %v2516 = vpop.f32.mrf.mxu0
      %v2517 = vadd.f32 %v2356, %v2516
      %v2518 = vpop.f32.mrf.mxu0
      %v2519 = vpop.f32.mrf.mxu0
      %v2520 = vadd.f32 %v2359, %v2519
      %v2521 = vpop.f32.mrf.mxu0
      %2522 = vmatprep.mubr.bf16.mxu0 0
      %2523 = vmatmul.mubr.bf16.gmra.mxu0 %v2036
      %v2524 = vpop.f32.mrf.mxu0
      %v2525 = vadd.f32 %v2364, %v2524
      %v2526 = vpop.f32.mrf.mxu0
      %v2527 = vpop.f32.mrf.mxu0
      %v2528 = vadd.f32 %v2367, %v2527
      %v2529 = vpop.f32.mrf.mxu0
      %2530 = vmatprep.mubr.bf16.mxu0 0
      %2531 = vmatmul.mubr.bf16.gmra.mxu0 %v2039
      %v2532 = vpop.f32.mrf.mxu0
      %v2533 = vadd.f32 %v2372, %v2532
      %v2534 = vpop.f32.mrf.mxu0
      %v2535 = vpop.f32.mrf.mxu0
      %v2536 = vadd.f32 %v2375, %v2535
      %v2537 = vpop.f32.mrf.mxu0
      %2538 = vmatprep.mubr.bf16.mxu0 0
      %2539 = vmatmul.mubr.bf16.gmra.mxu0 %v2042
      %v2540 = vpop.f32.mrf.mxu0
      %v2541 = vadd.f32 %v2380, %v2540
      %v2542 = vpop.f32.mrf.mxu0
      %v2543 = vpop.f32.mrf.mxu0
      %v2544 = vadd.f32 %v2383, %v2543
      %v2545 = vpop.f32.mrf.mxu0
      %2546 = vmatprep.mubr.bf16.mxu0 0
      %2547 = vmatmul.mubr.bf16.gmra.mxu0 %v2045
      %v2548 = vpop.f32.mrf.mxu0
      %v2549 = vadd.f32 %v2388, %v2548
      %v2550 = vpop.f32.mrf.mxu0
      %v2551 = vpop.f32.mrf.mxu0
      %v2552 = vadd.f32 %v2391, %v2551
      %v2553 = vpop.f32.mrf.mxu0
      %2554 = vmatprep.mubr.bf16.mxu0 0
      %2555 = vmatmul.mubr.bf16.gmra.mxu0 %v2048
      %v2556 = vpop.f32.mrf.mxu0
      %v2557 = vadd.f32 %v2396, %v2556
      %v2558 = vpop.f32.mrf.mxu0
      %v2559 = vpop.f32.mrf.mxu0
      %v2560 = vadd.f32 %v2399, %v2559
      %v2561 = vpop.f32.mrf.mxu0
      %2562 = vdwg.mxu0
      %v2627 = vunpack.c.l.b16 %v1616
      %v2628 = vunpack.c.h.b16 %v1616
      %v2629 = vunpack.c.l.b16 %v1617
      %v2630 = vunpack.c.l.b16 %v1618
      %v2631 = vunpack.c.h.b16 %v1618
      %v2632 = vunpack.c.l.b16 %v1619
      %v2633 = vunpack.c.l.b16 %v1620
      %v2634 = vunpack.c.h.b16 %v1620
      %v2635 = vunpack.c.l.b16 %v1621
      %v2636 = vunpack.c.l.b16 %v1622
      %v2637 = vunpack.c.h.b16 %v1622
      %v2638 = vunpack.c.l.b16 %v1623
      %v2639 = vunpack.c.l.b16 %v1624
      %v2640 = vunpack.c.h.b16 %v1624
      %v2641 = vunpack.c.l.b16 %v1625
      %v2642 = vunpack.c.l.b16 %v1626
      %v2643 = vunpack.c.h.b16 %v1626
      %v2644 = vunpack.c.l.b16 %v1627
      %v2645 = vunpack.c.l.b16 %v1628
      %v2646 = vunpack.c.h.b16 %v1628
      %v2647 = vunpack.c.l.b16 %v1629
      %v2648 = vunpack.c.l.b16 %v1630
      %v2649 = vunpack.c.h.b16 %v1630
      %v2650 = vunpack.c.l.b16 %v1631
      %v2651 = vunpack.c.l.b16 %v1632
      %v2652 = vunpack.c.h.b16 %v1632
      %v2653 = vunpack.c.l.b16 %v1633
      %v2654 = vunpack.c.l.b16 %v1634
      %v2655 = vunpack.c.h.b16 %v1634
      %v2656 = vunpack.c.l.b16 %v1635
      %v2657 = vunpack.c.l.b16 %v1636
      %v2658 = vunpack.c.h.b16 %v1636
      %v2659 = vunpack.c.l.b16 %v1637
      %v2660 = vunpack.c.l.b16 %v1638
      %v2661 = vunpack.c.h.b16 %v1638
      %v2662 = vunpack.c.l.b16 %v1639
      %v2663 = vunpack.c.l.b16 %v1640
      %v2664 = vunpack.c.h.b16 %v1640
      %v2665 = vunpack.c.l.b16 %v1641
      %v2666 = vunpack.c.l.b16 %v1642
      %v2667 = vunpack.c.h.b16 %v1642
      %v2668 = vunpack.c.l.b16 %v1643
      %v2669 = vunpack.c.l.b16 %v1644
      %v2670 = vunpack.c.h.b16 %v1644
      %v2671 = vunpack.c.l.b16 %v1645
      %v2672 = vunpack.c.l.b16 %v1646
      %v2673 = vunpack.c.h.b16 %v1646
      %v2674 = vunpack.c.l.b16 %v1647
      %v2675 = vunpack.c.l.b16 %v1648
      %v2676 = vunpack.c.h.b16 %v1648
      %v2677 = vunpack.c.l.b16 %v1649
      %v2678 = vunpack.c.l.b16 %v1650
      %v2679 = vunpack.c.h.b16 %v1650
      %v2680 = vunpack.c.l.b16 %v1651
      %v2681 = vunpack.c.l.b16 %v1652
      %v2682 = vunpack.c.h.b16 %v1652
      %v2683 = vunpack.c.l.b16 %v1653
      %v2684 = vunpack.c.l.b16 %v1654
      %v2685 = vunpack.c.h.b16 %v1654
      %v2686 = vunpack.c.l.b16 %v1655
      %v2687 = vunpack.c.l.b16 %v1656
      %v2688 = vunpack.c.h.b16 %v1656
      %v2689 = vunpack.c.l.b16 %v1657
      %v2690 = vunpack.c.l.b16 %v1658
      %v2691 = vunpack.c.h.b16 %v1658
      %v2692 = vunpack.c.l.b16 %v1659
      %v2693 = vunpack.c.l.b16 %v1660
      %v2694 = vunpack.c.h.b16 %v1660
      %v2695 = vunpack.c.l.b16 %v1661
      %v2696 = vunpack.c.l.b16 %v1662
      %v2697 = vunpack.c.h.b16 %v1662
      %v2698 = vunpack.c.l.b16 %v1663
      %v2699 = vunpack.c.l.b16 %v1664
      %v2700 = vunpack.c.h.b16 %v1664
      %v2701 = vunpack.c.l.b16 %v1665
      %v2702 = vunpack.c.l.b16 %v1666
      %v2703 = vunpack.c.h.b16 %v1666
      %v2704 = vunpack.c.l.b16 %v1667
      %v2705 = vunpack.c.l.b16 %v1668
      %v2706 = vunpack.c.h.b16 %v1668
      %v2707 = vunpack.c.l.b16 %v1669
      %v2708 = vunpack.c.l.b16 %v1670
      %v2709 = vunpack.c.h.b16 %v1670
      %v2710 = vunpack.c.l.b16 %v1671
      %v2711 = vunpack.c.l.b16 %v1672
      %v2712 = vunpack.c.h.b16 %v1672
      %v2713 = vunpack.c.l.b16 %v1673
      %v2714 = vunpack.c.l.b16 %v1674
      %v2715 = vunpack.c.h.b16 %v1674
      %v2716 = vunpack.c.l.b16 %v1675
      %v2717 = vunpack.c.l.b16 %v1676
      %v2718 = vunpack.c.h.b16 %v1676
      %v2719 = vunpack.c.l.b16 %v1677
      %v2720 = vunpack.c.l.b16 %v1678
      %v2721 = vunpack.c.h.b16 %v1678
      %v2722 = vunpack.c.l.b16 %v1679
      %v2723 = vpack.c.b16 %v2630, %v2627
      %v2724 = vpack.c.b16 %v2631, %v2628
      %v2725 = vpack.c.b16 %v2632, %v2629
      %v2726 = vpack.c.b16 %v2636, %v2633
      %v2727 = vpack.c.b16 %v2637, %v2634
      %v2728 = vpack.c.b16 %v2638, %v2635
      %v2729 = vpack.c.b16 %v2642, %v2639
      %v2730 = vpack.c.b16 %v2643, %v2640
      %v2731 = vpack.c.b16 %v2644, %v2641
      %v2732 = vpack.c.b16 %v2648, %v2645
      %v2733 = vpack.c.b16 %v2649, %v2646
      %v2734 = vpack.c.b16 %v2650, %v2647
      %v2735 = vpack.c.b16 %v2654, %v2651
      %v2736 = vpack.c.b16 %v2655, %v2652
      %v2737 = vpack.c.b16 %v2656, %v2653
      %v2738 = vpack.c.b16 %v2660, %v2657
      %v2739 = vpack.c.b16 %v2661, %v2658
      %v2740 = vpack.c.b16 %v2662, %v2659
      %v2741 = vpack.c.b16 %v2666, %v2663
      %v2742 = vpack.c.b16 %v2667, %v2664
      %v2743 = vpack.c.b16 %v2668, %v2665
      %v2744 = vpack.c.b16 %v2672, %v2669
      %v2745 = vpack.c.b16 %v2673, %v2670
      %v2746 = vpack.c.b16 %v2674, %v2671
      %v2747 = vpack.c.b16 %v2678, %v2675
      %v2748 = vpack.c.b16 %v2679, %v2676
      %v2749 = vpack.c.b16 %v2680, %v2677
      %v2750 = vpack.c.b16 %v2684, %v2681
      %v2751 = vpack.c.b16 %v2685, %v2682
      %v2752 = vpack.c.b16 %v2686, %v2683
      %v2753 = vpack.c.b16 %v2690, %v2687
      %v2754 = vpack.c.b16 %v2691, %v2688
      %v2755 = vpack.c.b16 %v2692, %v2689
      %v2756 = vpack.c.b16 %v2696, %v2693
      %v2757 = vpack.c.b16 %v2697, %v2694
      %v2758 = vpack.c.b16 %v2698, %v2695
      %v2759 = vpack.c.b16 %v2702, %v2699
      %v2760 = vpack.c.b16 %v2703, %v2700
      %v2761 = vpack.c.b16 %v2704, %v2701
      %v2762 = vpack.c.b16 %v2708, %v2705
      %v2763 = vpack.c.b16 %v2709, %v2706
      %v2764 = vpack.c.b16 %v2710, %v2707
      %v2765 = vpack.c.b16 %v2714, %v2711
      %v2766 = vpack.c.b16 %v2715, %v2712
      %v2767 = vpack.c.b16 %v2716, %v2713
      %v2768 = vpack.c.b16 %v2720, %v2717
      %v2769 = vpack.c.b16 %v2721, %v2718
      %v2770 = vpack.c.b16 %v2722, %v2719
      %v2867 = vunpack.c.l.b16 %v1680
      %v2868 = vunpack.c.l.b16 %v1681
      %v2869 = vunpack.c.l.b16 %v1682
      %v2870 = vunpack.c.l.b16 %v1683
      %v2871 = vunpack.c.l.b16 %v1684
      %v2872 = vunpack.c.l.b16 %v1685
      %v2873 = vunpack.c.l.b16 %v1686
      %v2874 = vunpack.c.l.b16 %v1687
      %v2875 = vunpack.c.l.b16 %v1688
      %v2876 = vunpack.c.l.b16 %v1689
      %v2877 = vunpack.c.l.b16 %v1690
      %v2878 = vunpack.c.l.b16 %v1691
      %v2879 = vunpack.c.l.b16 %v1692
      %v2880 = vunpack.c.l.b16 %v1693
      %v2881 = vunpack.c.l.b16 %v1694
      %v2882 = vunpack.c.l.b16 %v1695
      %v2883 = vunpack.c.l.b16 %v1696
      %v2884 = vunpack.c.l.b16 %v1697
      %v2885 = vunpack.c.l.b16 %v1698
      %v2886 = vunpack.c.l.b16 %v1699
      %v2887 = vunpack.c.l.b16 %v1700
      %v2888 = vunpack.c.l.b16 %v1701
      %v2889 = vunpack.c.l.b16 %v1702
      %v2890 = vunpack.c.l.b16 %v1703
      %v2891 = vunpack.c.l.b16 %v1704
      %v2892 = vunpack.c.l.b16 %v1705
      %v2893 = vunpack.c.l.b16 %v1706
      %v2894 = vunpack.c.l.b16 %v1707
      %v2895 = vunpack.c.l.b16 %v1708
      %v2896 = vunpack.c.l.b16 %v1709
      %v2897 = vunpack.c.l.b16 %v1710
      %v2898 = vunpack.c.l.b16 %v1711
      %v2899 = vunpack.c.l.b16 %v1712
      %v2900 = vunpack.c.l.b16 %v1713
      %v2901 = vunpack.c.l.b16 %v1714
      %v2902 = vunpack.c.l.b16 %v1715
      %v2903 = vunpack.c.l.b16 %v1716
      %v2904 = vunpack.c.l.b16 %v1717
      %v2905 = vunpack.c.l.b16 %v1718
      %v2906 = vunpack.c.l.b16 %v1719
      %v2907 = vunpack.c.l.b16 %v1720
      %v2908 = vunpack.c.l.b16 %v1721
      %v2909 = vunpack.c.l.b16 %v1722
      %v2910 = vunpack.c.l.b16 %v1723
      %v2911 = vunpack.c.l.b16 %v1724
      %v2912 = vunpack.c.l.b16 %v1725
      %v2913 = vunpack.c.l.b16 %v1726
      %v2914 = vunpack.c.l.b16 %v1727
      %v2915 = vpack.c.b16 %v2868, %v2867
      %v2916 = vpack.c.b16 %v2870, %v2869
      %v2917 = vpack.c.b16 %v2872, %v2871
      %v2918 = vpack.c.b16 %v2874, %v2873
      %v2919 = vpack.c.b16 %v2876, %v2875
      %v2920 = vpack.c.b16 %v2878, %v2877
      %v2921 = vpack.c.b16 %v2880, %v2879
      %v2922 = vpack.c.b16 %v2882, %v2881
      %v2923 = vpack.c.b16 %v2884, %v2883
      %v2924 = vpack.c.b16 %v2886, %v2885
      %v2925 = vpack.c.b16 %v2888, %v2887
      %v2926 = vpack.c.b16 %v2890, %v2889
      %v2927 = vpack.c.b16 %v2892, %v2891
      %v2928 = vpack.c.b16 %v2894, %v2893
      %v2929 = vpack.c.b16 %v2896, %v2895
      %v2930 = vpack.c.b16 %v2898, %v2897
      %v2931 = vpack.c.b16 %v2900, %v2899
      %v2932 = vpack.c.b16 %v2902, %v2901
      %v2933 = vpack.c.b16 %v2904, %v2903
      %v2934 = vpack.c.b16 %v2906, %v2905
      %v2935 = vpack.c.b16 %v2908, %v2907
      %v2936 = vpack.c.b16 %v2910, %v2909
      %v2937 = vpack.c.b16 %v2912, %v2911
      %v2938 = vpack.c.b16 %v2914, %v2913
      %2963 = vmatprep.subr.bf16.mxu0 0
      %2964 = vmatpush1.bf16.msra.mxu0 %v2922
      %2965 = vmatprep.subr.bf16.mxu0 0
      %2966 = vmatpush1.bf16.msra.mxu0 %v2921
      %2967 = vmatprep.subr.bf16.mxu0 0
      %2968 = vmatpush1.bf16.msra.mxu0 %v2920
      %2969 = vmatprep.subr.bf16.mxu0 0
      %2970 = vmatpush1.bf16.msra.mxu0 %v2919
      %2971 = vmatprep.subr.bf16.mxu0 0
      %2972 = vmatpush1.bf16.msra.mxu0 %v2918
      %2973 = vmatprep.subr.bf16.mxu0 0
      %2974 = vmatpush1.bf16.msra.mxu0 %v2917
      %2975 = vmatprep.subr.bf16.mxu0 0
      %2976 = vmatpush1.bf16.msra.mxu0 %v2916
      %2977 = vmatprep.subr.bf16.mxu0 0
      %2978 = vmatpush1.bf16.msra.mxu0 %v2915
      %2979 = vmatprep.subr.bf16.mxu0 0
      %2980 = vmatpush2.bf16.msra.mxu0 %v2930
      %2981 = vmatprep.subr.bf16.mxu0 0
      %2982 = vmatpush2.bf16.msra.mxu0 %v2929
      %2983 = vmatprep.subr.bf16.mxu0 0
      %2984 = vmatpush2.bf16.msra.mxu0 %v2928
      %2985 = vmatprep.subr.bf16.mxu0 0
      %2986 = vmatpush2.bf16.msra.mxu0 %v2927
      %2987 = vmatprep.subr.bf16.mxu0 0
      %2988 = vmatpush2.bf16.msra.mxu0 %v2926
      %2989 = vmatprep.subr.bf16.mxu0 0
      %2990 = vmatpush2.bf16.msra.mxu0 %v2925
      %2991 = vmatprep.subr.bf16.mxu0 0
      %2992 = vmatpush2.bf16.msra.mxu0 %v2924
      %2993 = vmatprep.subr.bf16.mxu0 0
      %2994 = vmatpush2.bf16.msra.mxu0 %v2923
      %2995 = vmatprep.mubr.bf16.mxu0 %v2724
      %2996 = vmatmul.mubr.bf16.gmra.mxu0 %v2723
      %v2997 = vpop.f32.mrf.mxu0
      %v2998 = vadd.f32 %v2437, %v2997
      %v2999 = vpop.f32.mrf.mxu0
      %v3000 = vpop.f32.mrf.mxu0
      %v3001 = vadd.f32 %v2440, %v3000
      %v3002 = vpop.f32.mrf.mxu0
      %3003 = vmatprep.mubr.bf16.mxu0 %v2727
      %3004 = vmatmul.mubr.bf16.gmra.mxu0 %v2726
      %v3005 = vpop.f32.mrf.mxu0
      %v3006 = vadd.f32 %v2445, %v3005
      %v3007 = vpop.f32.mrf.mxu0
      %v3008 = vpop.f32.mrf.mxu0
      %v3009 = vadd.f32 %v2448, %v3008
      %v3010 = vpop.f32.mrf.mxu0
      %3011 = vmatprep.mubr.bf16.mxu0 %v2730
      %3012 = vmatmul.mubr.bf16.gmra.mxu0 %v2729
      %v3013 = vpop.f32.mrf.mxu0
      %v3014 = vadd.f32 %v2453, %v3013
      %v3015 = vpop.f32.mrf.mxu0
      %v3016 = vpop.f32.mrf.mxu0
      %v3017 = vadd.f32 %v2456, %v3016
      %v3018 = vpop.f32.mrf.mxu0
      %3019 = vmatprep.mubr.bf16.mxu0 %v2733
      %3020 = vmatmul.mubr.bf16.gmra.mxu0 %v2732
      %v3021 = vpop.f32.mrf.mxu0
      %v3022 = vadd.f32 %v2461, %v3021
      %v3023 = vpop.f32.mrf.mxu0
      %v3024 = vpop.f32.mrf.mxu0
      %v3025 = vadd.f32 %v2464, %v3024
      %v3026 = vpop.f32.mrf.mxu0
      %3027 = vmatprep.mubr.bf16.mxu0 %v2736
      %3028 = vmatmul.mubr.bf16.gmra.mxu0 %v2735
      %v3029 = vpop.f32.mrf.mxu0
      %v3030 = vadd.f32 %v2469, %v3029
      %v3031 = vpop.f32.mrf.mxu0
      %v3032 = vpop.f32.mrf.mxu0
      %v3033 = vadd.f32 %v2472, %v3032
      %v3034 = vpop.f32.mrf.mxu0
      %3035 = vmatprep.mubr.bf16.mxu0 %v2739
      %3036 = vmatmul.mubr.bf16.gmra.mxu0 %v2738
      %v3037 = vpop.f32.mrf.mxu0
      %v3038 = vadd.f32 %v2477, %v3037
      %v3039 = vpop.f32.mrf.mxu0
      %v3040 = vpop.f32.mrf.mxu0
      %v3041 = vadd.f32 %v2480, %v3040
      %v3042 = vpop.f32.mrf.mxu0
      %3043 = vmatprep.mubr.bf16.mxu0 %v2742
      %3044 = vmatmul.mubr.bf16.gmra.mxu0 %v2741
      %v3045 = vpop.f32.mrf.mxu0
      %v3046 = vadd.f32 %v2485, %v3045
      %v3047 = vpop.f32.mrf.mxu0
      %v3048 = vpop.f32.mrf.mxu0
      %v3049 = vadd.f32 %v2488, %v3048
      %v3050 = vpop.f32.mrf.mxu0
      %3051 = vmatprep.mubr.bf16.mxu0 %v2745
      %3052 = vmatmul.mubr.bf16.gmra.mxu0 %v2744
      %v3053 = vpop.f32.mrf.mxu0
      %v3054 = vadd.f32 %v2493, %v3053
      %v3055 = vpop.f32.mrf.mxu0
      %v3056 = vpop.f32.mrf.mxu0
      %v3057 = vadd.f32 %v2496, %v3056
      %v3058 = vpop.f32.mrf.mxu0
      %3059 = vmatprep.mubr.bf16.mxu0 %v2748
      %3060 = vmatmul.mubr.bf16.gmra.mxu0 %v2747
      %v3061 = vpop.f32.mrf.mxu0
      %v3062 = vadd.f32 %v2501, %v3061
      %v3063 = vpop.f32.mrf.mxu0
      %v3064 = vpop.f32.mrf.mxu0
      %v3065 = vadd.f32 %v2504, %v3064
      %v3066 = vpop.f32.mrf.mxu0
      %3067 = vmatprep.mubr.bf16.mxu0 %v2751
      %3068 = vmatmul.mubr.bf16.gmra.mxu0 %v2750
      %v3069 = vpop.f32.mrf.mxu0
      %v3070 = vadd.f32 %v2509, %v3069
      %v3071 = vpop.f32.mrf.mxu0
      %v3072 = vpop.f32.mrf.mxu0
      %v3073 = vadd.f32 %v2512, %v3072
      %v3074 = vpop.f32.mrf.mxu0
      %3075 = vmatprep.mubr.bf16.mxu0 %v2754
      %3076 = vmatmul.mubr.bf16.gmra.mxu0 %v2753
      %v3077 = vpop.f32.mrf.mxu0
      %v3078 = vadd.f32 %v2517, %v3077
      %v3079 = vpop.f32.mrf.mxu0
      %v3080 = vpop.f32.mrf.mxu0
      %v3081 = vadd.f32 %v2520, %v3080
      %v3082 = vpop.f32.mrf.mxu0
      %3083 = vmatprep.mubr.bf16.mxu0 %v2757
      %3084 = vmatmul.mubr.bf16.gmra.mxu0 %v2756
      %v3085 = vpop.f32.mrf.mxu0
      %v3086 = vadd.f32 %v2525, %v3085
      %v3087 = vpop.f32.mrf.mxu0
      %v3088 = vpop.f32.mrf.mxu0
      %v3089 = vadd.f32 %v2528, %v3088
      %v3090 = vpop.f32.mrf.mxu0
      %3091 = vmatprep.mubr.bf16.mxu0 %v2760
      %3092 = vmatmul.mubr.bf16.gmra.mxu0 %v2759
      %v3093 = vpop.f32.mrf.mxu0
      %v3094 = vadd.f32 %v2533, %v3093
      %v3095 = vpop.f32.mrf.mxu0
      %v3096 = vpop.f32.mrf.mxu0
      %v3097 = vadd.f32 %v2536, %v3096
      %v3098 = vpop.f32.mrf.mxu0
      %3099 = vmatprep.mubr.bf16.mxu0 %v2763
      %3100 = vmatmul.mubr.bf16.gmra.mxu0 %v2762
      %v3101 = vpop.f32.mrf.mxu0
      %v3102 = vadd.f32 %v2541, %v3101
      %v3103 = vpop.f32.mrf.mxu0
      %v3104 = vpop.f32.mrf.mxu0
      %v3105 = vadd.f32 %v2544, %v3104
      %v3106 = vpop.f32.mrf.mxu0
      %3107 = vmatprep.mubr.bf16.mxu0 %v2766
      %3108 = vmatmul.mubr.bf16.gmra.mxu0 %v2765
      %v3109 = vpop.f32.mrf.mxu0
      %v3110 = vadd.f32 %v2549, %v3109
      %v3111 = vpop.f32.mrf.mxu0
      %v3112 = vpop.f32.mrf.mxu0
      %v3113 = vadd.f32 %v2552, %v3112
      %v3114 = vpop.f32.mrf.mxu0
      %3115 = vmatprep.mubr.bf16.mxu0 %v2769
      %3116 = vmatmul.mubr.bf16.gmra.mxu0 %v2768
      %v3117 = vpop.f32.mrf.mxu0
      %v3118 = vadd.f32 %v2557, %v3117
      %v3119 = vpop.f32.mrf.mxu0
      %v3120 = vpop.f32.mrf.mxu0
      %v3121 = vadd.f32 %v2560, %v3120
      %v3122 = vpop.f32.mrf.mxu0
      %3123 = vdwg.mxu0
      %3124 = vmatprep.subr.bf16.mxu0 0
      %3125 = vmatpush1.bf16.msra.mxu0 %v2938
      %3126 = vmatprep.subr.bf16.mxu0 0
      %3127 = vmatpush1.bf16.msra.mxu0 %v2937
      %3128 = vmatprep.subr.bf16.mxu0 0
      %3129 = vmatpush1.bf16.msra.mxu0 %v2936
      %3130 = vmatprep.subr.bf16.mxu0 0
      %3131 = vmatpush1.bf16.msra.mxu0 %v2935
      %3132 = vmatprep.subr.bf16.mxu0 0
      %3133 = vmatpush1.bf16.msra.mxu0 %v2934
      %3134 = vmatprep.subr.bf16.mxu0 0
      %3135 = vmatpush1.bf16.msra.mxu0 %v2933
      %3136 = vmatprep.subr.bf16.mxu0 0
      %3137 = vmatpush1.bf16.msra.mxu0 %v2932
      %3138 = vmatprep.subr.bf16.mxu0 0
      %3139 = vmatpush1.bf16.msra.mxu0 %v2931
      %3140 = vmatprep.subr.bf16.mxu0 0
      %3141 = vmatpush2.bf16.msra.mxu0 0
      %3142 = vmatprep.subr.bf16.mxu0 0
      %3143 = vmatpush2.bf16.msra.mxu0 0
      %3144 = vmatprep.subr.bf16.mxu0 0
      %3145 = vmatpush2.bf16.msra.mxu0 0
      %3146 = vmatprep.subr.bf16.mxu0 0
      %3147 = vmatpush2.bf16.msra.mxu0 0
      %3148 = vmatprep.subr.bf16.mxu0 0
      %3149 = vmatpush2.bf16.msra.mxu0 0
      %3150 = vmatprep.subr.bf16.mxu0 0
      %3151 = vmatpush2.bf16.msra.mxu0 0
      %3152 = vmatprep.subr.bf16.mxu0 0
      %3153 = vmatpush2.bf16.msra.mxu0 0
      %3154 = vmatprep.subr.bf16.mxu0 0
      %3155 = vmatpush2.bf16.msra.mxu0 0
      %3156 = vmatprep.mubr.bf16.mxu0 0
      %3157 = vmatmul.mubr.bf16.gmra.mxu0 %v2725
      %v3158 = vpop.f32.mrf.mxu0
      %v3159 = vadd.f32 %v2998, %v3158
      %v3160 = vpop.f32.mrf.mxu0
      %v3161 = vpop.f32.mrf.mxu0
      %v3162 = vadd.f32 %v3001, %v3161
      %v3163 = vpop.f32.mrf.mxu0
      %3164 = vmatprep.mubr.bf16.mxu0 0
      %3165 = vmatmul.mubr.bf16.gmra.mxu0 %v2728
      %v3166 = vpop.f32.mrf.mxu0
      %v3167 = vadd.f32 %v3006, %v3166
      %v3168 = vpop.f32.mrf.mxu0
      %v3169 = vpop.f32.mrf.mxu0
      %v3170 = vadd.f32 %v3009, %v3169
      %v3171 = vpop.f32.mrf.mxu0
      %3172 = vmatprep.mubr.bf16.mxu0 0
      %3173 = vmatmul.mubr.bf16.gmra.mxu0 %v2731
      %v3174 = vpop.f32.mrf.mxu0
      %v3175 = vadd.f32 %v3014, %v3174
      %v3176 = vpop.f32.mrf.mxu0
      %v3177 = vpop.f32.mrf.mxu0
      %v3178 = vadd.f32 %v3017, %v3177
      %v3179 = vpop.f32.mrf.mxu0
      %3180 = vmatprep.mubr.bf16.mxu0 0
      %3181 = vmatmul.mubr.bf16.gmra.mxu0 %v2734
      %v3182 = vpop.f32.mrf.mxu0
      %v3183 = vadd.f32 %v3022, %v3182
      %v3184 = vpop.f32.mrf.mxu0
      %v3185 = vpop.f32.mrf.mxu0
      %v3186 = vadd.f32 %v3025, %v3185
      %v3187 = vpop.f32.mrf.mxu0
      %3188 = vmatprep.mubr.bf16.mxu0 0
      %3189 = vmatmul.mubr.bf16.gmra.mxu0 %v2737
      %v3190 = vpop.f32.mrf.mxu0
      %v3191 = vadd.f32 %v3030, %v3190
      %v3192 = vpop.f32.mrf.mxu0
      %v3193 = vpop.f32.mrf.mxu0
      %v3194 = vadd.f32 %v3033, %v3193
      %v3195 = vpop.f32.mrf.mxu0
      %3196 = vmatprep.mubr.bf16.mxu0 0
      %3197 = vmatmul.mubr.bf16.gmra.mxu0 %v2740
      %v3198 = vpop.f32.mrf.mxu0
      %v3199 = vadd.f32 %v3038, %v3198
      %v3200 = vpop.f32.mrf.mxu0
      %v3201 = vpop.f32.mrf.mxu0
      %v3202 = vadd.f32 %v3041, %v3201
      %v3203 = vpop.f32.mrf.mxu0
      %3204 = vmatprep.mubr.bf16.mxu0 0
      %3205 = vmatmul.mubr.bf16.gmra.mxu0 %v2743
      %v3206 = vpop.f32.mrf.mxu0
      %v3207 = vadd.f32 %v3046, %v3206
      %v3208 = vpop.f32.mrf.mxu0
      %v3209 = vpop.f32.mrf.mxu0
      %v3210 = vadd.f32 %v3049, %v3209
      %v3211 = vpop.f32.mrf.mxu0
      %3212 = vmatprep.mubr.bf16.mxu0 0
      %3213 = vmatmul.mubr.bf16.gmra.mxu0 %v2746
      %v3214 = vpop.f32.mrf.mxu0
      %v3215 = vadd.f32 %v3054, %v3214
      %v3216 = vpop.f32.mrf.mxu0
      %v3217 = vpop.f32.mrf.mxu0
      %v3218 = vadd.f32 %v3057, %v3217
      %v3219 = vpop.f32.mrf.mxu0
      %3220 = vmatprep.mubr.bf16.mxu0 0
      %3221 = vmatmul.mubr.bf16.gmra.mxu0 %v2749
      %v3222 = vpop.f32.mrf.mxu0
      %v3223 = vadd.f32 %v3062, %v3222
      %v3224 = vpop.f32.mrf.mxu0
      %v3225 = vpop.f32.mrf.mxu0
      %v3226 = vadd.f32 %v3065, %v3225
      %v3227 = vpop.f32.mrf.mxu0
      %3228 = vmatprep.mubr.bf16.mxu0 0
      %3229 = vmatmul.mubr.bf16.gmra.mxu0 %v2752
      %v3230 = vpop.f32.mrf.mxu0
      %v3231 = vadd.f32 %v3070, %v3230
      %v3232 = vpop.f32.mrf.mxu0
      %v3233 = vpop.f32.mrf.mxu0
      %v3234 = vadd.f32 %v3073, %v3233
      %v3235 = vpop.f32.mrf.mxu0
      %3236 = vmatprep.mubr.bf16.mxu0 0
      %3237 = vmatmul.mubr.bf16.gmra.mxu0 %v2755
      %v3238 = vpop.f32.mrf.mxu0
      %v3239 = vadd.f32 %v3078, %v3238
      %v3240 = vpop.f32.mrf.mxu0
      %v3241 = vpop.f32.mrf.mxu0
      %v3242 = vadd.f32 %v3081, %v3241
      %v3243 = vpop.f32.mrf.mxu0
      %3244 = vmatprep.mubr.bf16.mxu0 0
      %3245 = vmatmul.mubr.bf16.gmra.mxu0 %v2758
      %v3246 = vpop.f32.mrf.mxu0
      %v3247 = vadd.f32 %v3086, %v3246
      %v3248 = vpop.f32.mrf.mxu0
      %v3249 = vpop.f32.mrf.mxu0
      %v3250 = vadd.f32 %v3089, %v3249
      %v3251 = vpop.f32.mrf.mxu0
      %3252 = vmatprep.mubr.bf16.mxu0 0
      %3253 = vmatmul.mubr.bf16.gmra.mxu0 %v2761
      %v3254 = vpop.f32.mrf.mxu0
      %v3255 = vadd.f32 %v3094, %v3254
      %v3256 = vpop.f32.mrf.mxu0
      %v3257 = vpop.f32.mrf.mxu0
      %v3258 = vadd.f32 %v3097, %v3257
      %v3259 = vpop.f32.mrf.mxu0
      %3260 = vmatprep.mubr.bf16.mxu0 0
      %3261 = vmatmul.mubr.bf16.gmra.mxu0 %v2764
      %v3262 = vpop.f32.mrf.mxu0
      %v3263 = vadd.f32 %v3102, %v3262
      %v3264 = vpop.f32.mrf.mxu0
      %v3265 = vpop.f32.mrf.mxu0
      %v3266 = vadd.f32 %v3105, %v3265
      %v3267 = vpop.f32.mrf.mxu0
      %3268 = vmatprep.mubr.bf16.mxu0 0
      %3269 = vmatmul.mubr.bf16.gmra.mxu0 %v2767
      %v3270 = vpop.f32.mrf.mxu0
      %v3271 = vadd.f32 %v3110, %v3270
      %v3272 = vpop.f32.mrf.mxu0
      %v3273 = vpop.f32.mrf.mxu0
      %v3274 = vadd.f32 %v3113, %v3273
      %v3275 = vpop.f32.mrf.mxu0
      %3276 = vmatprep.mubr.bf16.mxu0 0
      %3277 = vmatmul.mubr.bf16.gmra.mxu0 %v2770
      %v3278 = vpop.f32.mrf.mxu0
      %v3279 = vadd.f32 %v3118, %v3278
      %v3280 = vpop.f32.mrf.mxu0
      %v3281 = vpop.f32.mrf.mxu0
      %v3282 = vadd.f32 %v3121, %v3281
      %v3283 = vpop.f32.mrf.mxu0
      %3284 = vdwg.mxu0
      %s3285 = scalar_lea.vmem [#allocation2], 48
      %v3286 = vld [vmem:[%s3285] sm:$0xff]
      %v3287 = vld [vmem:[%s3285 + $0x8] sm:$0xf]
      %v3288 = vld [vmem:[%s3285 + $0xc] sm:$0xff]
      %v3289 = vld [vmem:[%s3285 + $0x14] sm:$0xf]
      %v3290 = vld [vmem:[%s3285 + $0x18] sm:$0xff]
      %v3291 = vld [vmem:[%s3285 + $0x20] sm:$0xf]
      %v3292 = vld [vmem:[%s3285 + $0x24] sm:$0xff]
      %v3293 = vld [vmem:[%s3285 + $0x2c] sm:$0xf]
      %v3294 = vld [vmem:[%s3285 + $0x30] sm:$0xff]
      %v3295 = vld [vmem:[%s3285 + $0x38] sm:$0xf]
      %v3296 = vld [vmem:[%s3285 + $0x3c] sm:$0xff]
      %v3297 = vld [vmem:[%s3285 + $0x44] sm:$0xf]
      %v3298 = vld [vmem:[%s3285 + $0x48] sm:$0xff]
      %v3299 = vld [vmem:[%s3285 + $0x50] sm:$0xf]
      %v3300 = vld [vmem:[%s3285 + $0x54] sm:$0xff]
      %v3301 = vld [vmem:[%s3285 + $0x5c] sm:$0xf]
      %v3302 = vld [vmem:[%s3285 + $0x60] sm:$0xff]
      %v3303 = vld [vmem:[%s3285 + $0x68] sm:$0xf]
      %v3304 = vld [vmem:[%s3285 + $0x6c] sm:$0xff]
      %v3305 = vld [vmem:[%s3285 + $0x74] sm:$0xf]
      %v3306 = vld [vmem:[%s3285 + $0x78] sm:$0xff]
      %v3307 = vld [vmem:[%s3285 + $0x80] sm:$0xf]
      %v3308 = vld [vmem:[%s3285 + $0x84] sm:$0xff]
      %v3309 = vld [vmem:[%s3285 + $0x8c] sm:$0xf]
      %v3310 = vld [vmem:[%s3285 + $0x90] sm:$0xff]
      %v3311 = vld [vmem:[%s3285 + $0x98] sm:$0xf]
      %v3312 = vld [vmem:[%s3285 + $0x9c] sm:$0xff]
      %v3313 = vld [vmem:[%s3285 + $0xa4] sm:$0xf]
      %v3314 = vld [vmem:[%s3285 + $0xa8] sm:$0xff]
      %v3315 = vld [vmem:[%s3285 + $0xb0] sm:$0xf]
      %v3316 = vld [vmem:[%s3285 + $0xb4] sm:$0xff]
      %v3317 = vld [vmem:[%s3285 + $0xbc] sm:$0xf]
      %v3318 = vld [vmem:[%s3285 + $0xc0] sm:$0xff]
      %v3319 = vld [vmem:[%s3285 + $0xc8] sm:$0xf]
      %v3320 = vld [vmem:[%s3285 + $0xcc] sm:$0xff]
      %v3321 = vld [vmem:[%s3285 + $0xd4] sm:$0xf]
      %v3322 = vld [vmem:[%s3285 + $0xd8] sm:$0xff]
      %v3323 = vld [vmem:[%s3285 + $0xe0] sm:$0xf]
      %v3324 = vld [vmem:[%s3285 + $0xe4] sm:$0xff]
      %v3325 = vld [vmem:[%s3285 + $0xec] sm:$0xf]
      %v3326 = vld [vmem:[%s3285 + $0xf0] sm:$0xff]
      %v3327 = vld [vmem:[%s3285 + $0xf8] sm:$0xf]
      %v3328 = vld [vmem:[%s3285 + $0xfc] sm:$0xff]
      %v3329 = vld [vmem:[%s3285 + $0x104] sm:$0xf]
      %v3330 = vld [vmem:[%s3285 + $0x108] sm:$0xff]
      %v3331 = vld [vmem:[%s3285 + $0x110] sm:$0xf]
      %v3332 = vld [vmem:[%s3285 + $0x114] sm:$0xff]
      %v3333 = vld [vmem:[%s3285 + $0x11c] sm:$0xf]
      %v3334 = vld [vmem:[%s3285 + $0x120] sm:$0xff]
      %v3335 = vld [vmem:[%s3285 + $0x128] sm:$0xf]
      %v3336 = vld [vmem:[%s3285 + $0x12c] sm:$0xff]
      %v3337 = vld [vmem:[%s3285 + $0x134] sm:$0xf]
      %v3338 = vld [vmem:[%s3285 + $0x138] sm:$0xff]
      %v3339 = vld [vmem:[%s3285 + $0x140] sm:$0xf]
      %v3340 = vld [vmem:[%s3285 + $0x144] sm:$0xff]
      %v3341 = vld [vmem:[%s3285 + $0x14c] sm:$0xf]
      %v3342 = vld [vmem:[%s3285 + $0x150] sm:$0xff]
      %v3343 = vld [vmem:[%s3285 + $0x158] sm:$0xf]
      %v3344 = vld [vmem:[%s3285 + $0x15c] sm:$0xff]
      %v3345 = vld [vmem:[%s3285 + $0x164] sm:$0xf]
      %v3346 = vld [vmem:[%s3285 + $0x168] sm:$0xff]
      %v3347 = vld [vmem:[%s3285 + $0x170] sm:$0xf]
      %v3348 = vld [vmem:[%s3285 + $0x174] sm:$0xff]
      %v3349 = vld [vmem:[%s3285 + $0x17c] sm:$0xf]
      %s3350 = scalar_lea.vmem %s4, 384
      %v3351 = vld [vmem:[%s3350] sm:$0xf]
      %v3352 = vld [vmem:[%s3350 + $0x4] sm:$0xf]
      %v3353 = vld [vmem:[%s3350 + $0x8] sm:$0xf]
      %v3354 = vld [vmem:[%s3350 + $0xc] sm:$0xf]
      %v3355 = vld [vmem:[%s3350 + $0x10] sm:$0xf]
      %v3356 = vld [vmem:[%s3350 + $0x14] sm:$0xf]
      %v3357 = vld [vmem:[%s3350 + $0x18] sm:$0xf]
      %v3358 = vld [vmem:[%s3350 + $0x1c] sm:$0xf]
      %v3359 = vld [vmem:[%s3350 + $0x20] sm:$0xf]
      %v3360 = vld [vmem:[%s3350 + $0x24] sm:$0xf]
      %v3361 = vld [vmem:[%s3350 + $0x28] sm:$0xf]
      %v3362 = vld [vmem:[%s3350 + $0x2c] sm:$0xf]
      %v3363 = vld [vmem:[%s3350 + $0x30] sm:$0xf]
      %v3364 = vld [vmem:[%s3350 + $0x34] sm:$0xf]
      %v3365 = vld [vmem:[%s3350 + $0x38] sm:$0xf]
      %v3366 = vld [vmem:[%s3350 + $0x3c] sm:$0xf]
      %v3367 = vld [vmem:[%s3350 + $0x40] sm:$0xf]
      %v3368 = vld [vmem:[%s3350 + $0x44] sm:$0xf]
      %v3369 = vld [vmem:[%s3350 + $0x48] sm:$0xf]
      %v3370 = vld [vmem:[%s3350 + $0x4c] sm:$0xf]
      %v3371 = vld [vmem:[%s3350 + $0x50] sm:$0xf]
      %v3372 = vld [vmem:[%s3350 + $0x54] sm:$0xf]
      %v3373 = vld [vmem:[%s3350 + $0x58] sm:$0xf]
      %v3374 = vld [vmem:[%s3350 + $0x5c] sm:$0xf]
      %v3375 = vld [vmem:[%s3350 + $0x60] sm:$0xf]
      %v3376 = vld [vmem:[%s3350 + $0x64] sm:$0xf]
      %v3377 = vld [vmem:[%s3350 + $0x68] sm:$0xf]
      %v3378 = vld [vmem:[%s3350 + $0x6c] sm:$0xf]
      %v3379 = vld [vmem:[%s3350 + $0x70] sm:$0xf]
      %v3380 = vld [vmem:[%s3350 + $0x74] sm:$0xf]
      %v3381 = vld [vmem:[%s3350 + $0x78] sm:$0xf]
      %v3382 = vld [vmem:[%s3350 + $0x7c] sm:$0xf]
      %v3383 = vld [vmem:[%s3350 + $0x80] sm:$0xf]
      %v3384 = vld [vmem:[%s3350 + $0x84] sm:$0xf]
      %v3385 = vld [vmem:[%s3350 + $0x88] sm:$0xf]
      %v3386 = vld [vmem:[%s3350 + $0x8c] sm:$0xf]
      %v3387 = vld [vmem:[%s3350 + $0x90] sm:$0xf]
      %v3388 = vld [vmem:[%s3350 + $0x94] sm:$0xf]
      %v3389 = vld [vmem:[%s3350 + $0x98] sm:$0xf]
      %v3390 = vld [vmem:[%s3350 + $0x9c] sm:$0xf]
      %v3391 = vld [vmem:[%s3350 + $0xa0] sm:$0xf]
      %v3392 = vld [vmem:[%s3350 + $0xa4] sm:$0xf]
      %v3393 = vld [vmem:[%s3350 + $0xa8] sm:$0xf]
      %v3394 = vld [vmem:[%s3350 + $0xac] sm:$0xf]
      %v3395 = vld [vmem:[%s3350 + $0xb0] sm:$0xf]
      %v3396 = vld [vmem:[%s3350 + $0xb4] sm:$0xf]
      %v3397 = vld [vmem:[%s3350 + $0xb8] sm:$0xf]
      %v3398 = vld [vmem:[%s3350 + $0xbc] sm:$0xf]
      %v3463 = vunpack.c.l.b16 %v3286
      %v3464 = vunpack.c.h.b16 %v3286
      %v3465 = vunpack.c.l.b16 %v3287
      %v3466 = vunpack.c.l.b16 %v3288
      %v3467 = vunpack.c.h.b16 %v3288
      %v3468 = vunpack.c.l.b16 %v3289
      %v3469 = vunpack.c.l.b16 %v3290
      %v3470 = vunpack.c.h.b16 %v3290
      %v3471 = vunpack.c.l.b16 %v3291
      %v3472 = vunpack.c.l.b16 %v3292
      %v3473 = vunpack.c.h.b16 %v3292
      %v3474 = vunpack.c.l.b16 %v3293
      %v3475 = vunpack.c.l.b16 %v3294
      %v3476 = vunpack.c.h.b16 %v3294
      %v3477 = vunpack.c.l.b16 %v3295
      %v3478 = vunpack.c.l.b16 %v3296
      %v3479 = vunpack.c.h.b16 %v3296
      %v3480 = vunpack.c.l.b16 %v3297
      %v3481 = vunpack.c.l.b16 %v3298
      %v3482 = vunpack.c.h.b16 %v3298
      %v3483 = vunpack.c.l.b16 %v3299
      %v3484 = vunpack.c.l.b16 %v3300
      %v3485 = vunpack.c.h.b16 %v3300
      %v3486 = vunpack.c.l.b16 %v3301
      %v3487 = vunpack.c.l.b16 %v3302
      %v3488 = vunpack.c.h.b16 %v3302
      %v3489 = vunpack.c.l.b16 %v3303
      %v3490 = vunpack.c.l.b16 %v3304
      %v3491 = vunpack.c.h.b16 %v3304
      %v3492 = vunpack.c.l.b16 %v3305
      %v3493 = vunpack.c.l.b16 %v3306
      %v3494 = vunpack.c.h.b16 %v3306
      %v3495 = vunpack.c.l.b16 %v3307
      %v3496 = vunpack.c.l.b16 %v3308
      %v3497 = vunpack.c.h.b16 %v3308
      %v3498 = vunpack.c.l.b16 %v3309
      %v3499 = vunpack.c.l.b16 %v3310
      %v3500 = vunpack.c.h.b16 %v3310
      %v3501 = vunpack.c.l.b16 %v3311
      %v3502 = vunpack.c.l.b16 %v3312
      %v3503 = vunpack.c.h.b16 %v3312
      %v3504 = vunpack.c.l.b16 %v3313
      %v3505 = vunpack.c.l.b16 %v3314
      %v3506 = vunpack.c.h.b16 %v3314
      %v3507 = vunpack.c.l.b16 %v3315
      %v3508 = vunpack.c.l.b16 %v3316
      %v3509 = vunpack.c.h.b16 %v3316
      %v3510 = vunpack.c.l.b16 %v3317
      %v3511 = vunpack.c.l.b16 %v3318
      %v3512 = vunpack.c.h.b16 %v3318
      %v3513 = vunpack.c.l.b16 %v3319
      %v3514 = vunpack.c.l.b16 %v3320
      %v3515 = vunpack.c.h.b16 %v3320
      %v3516 = vunpack.c.l.b16 %v3321
      %v3517 = vunpack.c.l.b16 %v3322
      %v3518 = vunpack.c.h.b16 %v3322
      %v3519 = vunpack.c.l.b16 %v3323
      %v3520 = vunpack.c.l.b16 %v3324
      %v3521 = vunpack.c.h.b16 %v3324
      %v3522 = vunpack.c.l.b16 %v3325
      %v3523 = vunpack.c.l.b16 %v3326
      %v3524 = vunpack.c.h.b16 %v3326
      %v3525 = vunpack.c.l.b16 %v3327
      %v3526 = vunpack.c.l.b16 %v3328
      %v3527 = vunpack.c.h.b16 %v3328
      %v3528 = vunpack.c.l.b16 %v3329
      %v3529 = vunpack.c.l.b16 %v3330
      %v3530 = vunpack.c.h.b16 %v3330
      %v3531 = vunpack.c.l.b16 %v3331
      %v3532 = vunpack.c.l.b16 %v3332
      %v3533 = vunpack.c.h.b16 %v3332
      %v3534 = vunpack.c.l.b16 %v3333
      %v3535 = vunpack.c.l.b16 %v3334
      %v3536 = vunpack.c.h.b16 %v3334
      %v3537 = vunpack.c.l.b16 %v3335
      %v3538 = vunpack.c.l.b16 %v3336
      %v3539 = vunpack.c.h.b16 %v3336
      %v3540 = vunpack.c.l.b16 %v3337
      %v3541 = vunpack.c.l.b16 %v3338
      %v3542 = vunpack.c.h.b16 %v3338
      %v3543 = vunpack.c.l.b16 %v3339
      %v3544 = vunpack.c.l.b16 %v3340
      %v3545 = vunpack.c.h.b16 %v3340
      %v3546 = vunpack.c.l.b16 %v3341
      %v3547 = vunpack.c.l.b16 %v3342
      %v3548 = vunpack.c.h.b16 %v3342
      %v3549 = vunpack.c.l.b16 %v3343
      %v3550 = vunpack.c.l.b16 %v3344
      %v3551 = vunpack.c.h.b16 %v3344
      %v3552 = vunpack.c.l.b16 %v3345
      %v3553 = vunpack.c.l.b16 %v3346
      %v3554 = vunpack.c.h.b16 %v3346
      %v3555 = vunpack.c.l.b16 %v3347
      %v3556 = vunpack.c.l.b16 %v3348
      %v3557 = vunpack.c.h.b16 %v3348
      %v3558 = vunpack.c.l.b16 %v3349
      %v3559 = vpack.c.b16 %v3466, %v3463
      %v3560 = vpack.c.b16 %v3467, %v3464
      %v3561 = vpack.c.b16 %v3468, %v3465
      %v3562 = vpack.c.b16 %v3472, %v3469
      %v3563 = vpack.c.b16 %v3473, %v3470
      %v3564 = vpack.c.b16 %v3474, %v3471
      %v3565 = vpack.c.b16 %v3478, %v3475
      %v3566 = vpack.c.b16 %v3479, %v3476
      %v3567 = vpack.c.b16 %v3480, %v3477
      %v3568 = vpack.c.b16 %v3484, %v3481
      %v3569 = vpack.c.b16 %v3485, %v3482
      %v3570 = vpack.c.b16 %v3486, %v3483
      %v3571 = vpack.c.b16 %v3490, %v3487
      %v3572 = vpack.c.b16 %v3491, %v3488
      %v3573 = vpack.c.b16 %v3492, %v3489
      %v3574 = vpack.c.b16 %v3496, %v3493
      %v3575 = vpack.c.b16 %v3497, %v3494
      %v3576 = vpack.c.b16 %v3498, %v3495
      %v3577 = vpack.c.b16 %v3502, %v3499
      %v3578 = vpack.c.b16 %v3503, %v3500
      %v3579 = vpack.c.b16 %v3504, %v3501
      %v3580 = vpack.c.b16 %v3508, %v3505
      %v3581 = vpack.c.b16 %v3509, %v3506
      %v3582 = vpack.c.b16 %v3510, %v3507
      %v3583 = vpack.c.b16 %v3514, %v3511
      %v3584 = vpack.c.b16 %v3515, %v3512
      %v3585 = vpack.c.b16 %v3516, %v3513
      %v3586 = vpack.c.b16 %v3520, %v3517
      %v3587 = vpack.c.b16 %v3521, %v3518
      %v3588 = vpack.c.b16 %v3522, %v3519
      %v3589 = vpack.c.b16 %v3526, %v3523
      %v3590 = vpack.c.b16 %v3527, %v3524
      %v3591 = vpack.c.b16 %v3528, %v3525
      %v3592 = vpack.c.b16 %v3532, %v3529
      %v3593 = vpack.c.b16 %v3533, %v3530
      %v3594 = vpack.c.b16 %v3534, %v3531
      %v3595 = vpack.c.b16 %v3538, %v3535
      %v3596 = vpack.c.b16 %v3539, %v3536
      %v3597 = vpack.c.b16 %v3540, %v3537
      %v3598 = vpack.c.b16 %v3544, %v3541
      %v3599 = vpack.c.b16 %v3545, %v3542
      %v3600 = vpack.c.b16 %v3546, %v3543
      %v3601 = vpack.c.b16 %v3550, %v3547
      %v3602 = vpack.c.b16 %v3551, %v3548
      %v3603 = vpack.c.b16 %v3552, %v3549
      %v3604 = vpack.c.b16 %v3556, %v3553
      %v3605 = vpack.c.b16 %v3557, %v3554
      %v3606 = vpack.c.b16 %v3558, %v3555
      %v3703 = vunpack.c.l.b16 %v3351
      %v3704 = vunpack.c.l.b16 %v3352
      %v3705 = vunpack.c.l.b16 %v3353
      %v3706 = vunpack.c.l.b16 %v3354
      %v3707 = vunpack.c.l.b16 %v3355
      %v3708 = vunpack.c.l.b16 %v3356
      %v3709 = vunpack.c.l.b16 %v3357
      %v3710 = vunpack.c.l.b16 %v3358
      %v3711 = vunpack.c.l.b16 %v3359
      %v3712 = vunpack.c.l.b16 %v3360
      %v3713 = vunpack.c.l.b16 %v3361
      %v3714 = vunpack.c.l.b16 %v3362
      %v3715 = vunpack.c.l.b16 %v3363
      %v3716 = vunpack.c.l.b16 %v3364
      %v3717 = vunpack.c.l.b16 %v3365
      %v3718 = vunpack.c.l.b16 %v3366
      %v3719 = vunpack.c.l.b16 %v3367
      %v3720 = vunpack.c.l.b16 %v3368
      %v3721 = vunpack.c.l.b16 %v3369
      %v3722 = vunpack.c.l.b16 %v3370
      %v3723 = vunpack.c.l.b16 %v3371
      %v3724 = vunpack.c.l.b16 %v3372
      %v3725 = vunpack.c.l.b16 %v3373
      %v3726 = vunpack.c.l.b16 %v3374
      %v3727 = vunpack.c.l.b16 %v3375
      %v3728 = vunpack.c.l.b16 %v3376
      %v3729 = vunpack.c.l.b16 %v3377
      %v3730 = vunpack.c.l.b16 %v3378
      %v3731 = vunpack.c.l.b16 %v3379
      %v3732 = vunpack.c.l.b16 %v3380
      %v3733 = vunpack.c.l.b16 %v3381
      %v3734 = vunpack.c.l.b16 %v3382
      %v3735 = vunpack.c.l.b16 %v3383
      %v3736 = vunpack.c.l.b16 %v3384
      %v3737 = vunpack.c.l.b16 %v3385
      %v3738 = vunpack.c.l.b16 %v3386
      %v3739 = vunpack.c.l.b16 %v3387
      %v3740 = vunpack.c.l.b16 %v3388
      %v3741 = vunpack.c.l.b16 %v3389
      %v3742 = vunpack.c.l.b16 %v3390
      %v3743 = vunpack.c.l.b16 %v3391
      %v3744 = vunpack.c.l.b16 %v3392
      %v3745 = vunpack.c.l.b16 %v3393
      %v3746 = vunpack.c.l.b16 %v3394
      %v3747 = vunpack.c.l.b16 %v3395
      %v3748 = vunpack.c.l.b16 %v3396
      %v3749 = vunpack.c.l.b16 %v3397
      %v3750 = vunpack.c.l.b16 %v3398
      %v3751 = vpack.c.b16 %v3704, %v3703
      %v3752 = vpack.c.b16 %v3706, %v3705
      %v3753 = vpack.c.b16 %v3708, %v3707
      %v3754 = vpack.c.b16 %v3710, %v3709
      %v3755 = vpack.c.b16 %v3712, %v3711
      %v3756 = vpack.c.b16 %v3714, %v3713
      %v3757 = vpack.c.b16 %v3716, %v3715
      %v3758 = vpack.c.b16 %v3718, %v3717
      %v3759 = vpack.c.b16 %v3720, %v3719
      %v3760 = vpack.c.b16 %v3722, %v3721
      %v3761 = vpack.c.b16 %v3724, %v3723
      %v3762 = vpack.c.b16 %v3726, %v3725
      %v3763 = vpack.c.b16 %v3728, %v3727
      %v3764 = vpack.c.b16 %v3730, %v3729
      %v3765 = vpack.c.b16 %v3732, %v3731
      %v3766 = vpack.c.b16 %v3734, %v3733
      %v3767 = vpack.c.b16 %v3736, %v3735
      %v3768 = vpack.c.b16 %v3738, %v3737
      %v3769 = vpack.c.b16 %v3740, %v3739
      %v3770 = vpack.c.b16 %v3742, %v3741
      %v3771 = vpack.c.b16 %v3744, %v3743
      %v3772 = vpack.c.b16 %v3746, %v3745
      %v3773 = vpack.c.b16 %v3748, %v3747
      %v3774 = vpack.c.b16 %v3750, %v3749
      %3799 = vmatprep.subr.bf16.mxu0 0
      %3800 = vmatpush1.bf16.msra.mxu0 %v3758
      %3801 = vmatprep.subr.bf16.mxu0 0
      %3802 = vmatpush1.bf16.msra.mxu0 %v3757
      %3803 = vmatprep.subr.bf16.mxu0 0
      %3804 = vmatpush1.bf16.msra.mxu0 %v3756
      %3805 = vmatprep.subr.bf16.mxu0 0
      %3806 = vmatpush1.bf16.msra.mxu0 %v3755
      %3807 = vmatprep.subr.bf16.mxu0 0
      %3808 = vmatpush1.bf16.msra.mxu0 %v3754
      %3809 = vmatprep.subr.bf16.mxu0 0
      %3810 = vmatpush1.bf16.msra.mxu0 %v3753
      %3811 = vmatprep.subr.bf16.mxu0 0
      %3812 = vmatpush1.bf16.msra.mxu0 %v3752
      %3813 = vmatprep.subr.bf16.mxu0 0
      %3814 = vmatpush1.bf16.msra.mxu0 %v3751
      %3815 = vmatprep.subr.bf16.mxu0 0
      %3816 = vmatpush2.bf16.msra.mxu0 %v3766
      %3817 = vmatprep.subr.bf16.mxu0 0
      %3818 = vmatpush2.bf16.msra.mxu0 %v3765
      %3819 = vmatprep.subr.bf16.mxu0 0
      %3820 = vmatpush2.bf16.msra.mxu0 %v3764
      %3821 = vmatprep.subr.bf16.mxu0 0
      %3822 = vmatpush2.bf16.msra.mxu0 %v3763
      %3823 = vmatprep.subr.bf16.mxu0 0
      %3824 = vmatpush2.bf16.msra.mxu0 %v3762
      %3825 = vmatprep.subr.bf16.mxu0 0
      %3826 = vmatpush2.bf16.msra.mxu0 %v3761
      %3827 = vmatprep.subr.bf16.mxu0 0
      %3828 = vmatpush2.bf16.msra.mxu0 %v3760
      %3829 = vmatprep.subr.bf16.mxu0 0
      %3830 = vmatpush2.bf16.msra.mxu0 %v3759
      %3831 = vmatprep.mubr.bf16.mxu0 %v3560
      %3832 = vmatmul.mubr.bf16.gmra.mxu0 %v3559
      %v3833 = vpop.f32.mrf.mxu0
      %v3834 = vadd.f32 0.0, %v3833
      %v3835 = vpop.f32.mrf.mxu0
      %v3836 = vpop.f32.mrf.mxu0
      %v3837 = vadd.f32 0.0, %v3836
      %v3838 = vpop.f32.mrf.mxu0
      %3839 = vmatprep.mubr.bf16.mxu0 %v3563
      %3840 = vmatmul.mubr.bf16.gmra.mxu0 %v3562
      %v3841 = vpop.f32.mrf.mxu0
      %v3842 = vadd.f32 0.0, %v3841
      %v3843 = vpop.f32.mrf.mxu0
      %v3844 = vpop.f32.mrf.mxu0
      %v3845 = vadd.f32 0.0, %v3844
      %v3846 = vpop.f32.mrf.mxu0
      %3847 = vmatprep.mubr.bf16.mxu0 %v3566
      %3848 = vmatmul.mubr.bf16.gmra.mxu0 %v3565
      %v3849 = vpop.f32.mrf.mxu0
      %v3850 = vadd.f32 0.0, %v3849
      %v3851 = vpop.f32.mrf.mxu0
      %v3852 = vpop.f32.mrf.mxu0
      %v3853 = vadd.f32 0.0, %v3852
      %v3854 = vpop.f32.mrf.mxu0
      %3855 = vmatprep.mubr.bf16.mxu0 %v3569
      %3856 = vmatmul.mubr.bf16.gmra.mxu0 %v3568
      %v3857 = vpop.f32.mrf.mxu0
      %v3858 = vadd.f32 0.0, %v3857
      %v3859 = vpop.f32.mrf.mxu0
      %v3860 = vpop.f32.mrf.mxu0
      %v3861 = vadd.f32 0.0, %v3860
      %v3862 = vpop.f32.mrf.mxu0
      %3863 = vmatprep.mubr.bf16.mxu0 %v3572
      %3864 = vmatmul.mubr.bf16.gmra.mxu0 %v3571
      %v3865 = vpop.f32.mrf.mxu0
      %v3866 = vadd.f32 0.0, %v3865
      %v3867 = vpop.f32.mrf.mxu0
      %v3868 = vpop.f32.mrf.mxu0
      %v3869 = vadd.f32 0.0, %v3868
      %v3870 = vpop.f32.mrf.mxu0
      %3871 = vmatprep.mubr.bf16.mxu0 %v3575
      %3872 = vmatmul.mubr.bf16.gmra.mxu0 %v3574
      %v3873 = vpop.f32.mrf.mxu0
      %v3874 = vadd.f32 0.0, %v3873
      %v3875 = vpop.f32.mrf.mxu0
      %v3876 = vpop.f32.mrf.mxu0
      %v3877 = vadd.f32 0.0, %v3876
      %v3878 = vpop.f32.mrf.mxu0
      %3879 = vmatprep.mubr.bf16.mxu0 %v3578
      %3880 = vmatmul.mubr.bf16.gmra.mxu0 %v3577
      %v3881 = vpop.f32.mrf.mxu0
      %v3882 = vadd.f32 0.0, %v3881
      %v3883 = vpop.f32.mrf.mxu0
      %v3884 = vpop.f32.mrf.mxu0
      %v3885 = vadd.f32 0.0, %v3884
      %v3886 = vpop.f32.mrf.mxu0
      %3887 = vmatprep.mubr.bf16.mxu0 %v3581
      %3888 = vmatmul.mubr.bf16.gmra.mxu0 %v3580
      %v3889 = vpop.f32.mrf.mxu0
      %v3890 = vadd.f32 0.0, %v3889
      %v3891 = vpop.f32.mrf.mxu0
      %v3892 = vpop.f32.mrf.mxu0
      %v3893 = vadd.f32 0.0, %v3892
      %v3894 = vpop.f32.mrf.mxu0
      %3895 = vmatprep.mubr.bf16.mxu0 %v3584
      %3896 = vmatmul.mubr.bf16.gmra.mxu0 %v3583
      %v3897 = vpop.f32.mrf.mxu0
      %v3898 = vadd.f32 0.0, %v3897
      %v3899 = vpop.f32.mrf.mxu0
      %v3900 = vpop.f32.mrf.mxu0
      %v3901 = vadd.f32 0.0, %v3900
      %v3902 = vpop.f32.mrf.mxu0
      %3903 = vmatprep.mubr.bf16.mxu0 %v3587
      %3904 = vmatmul.mubr.bf16.gmra.mxu0 %v3586
      %v3905 = vpop.f32.mrf.mxu0
      %v3906 = vadd.f32 0.0, %v3905
      %v3907 = vpop.f32.mrf.mxu0
      %v3908 = vpop.f32.mrf.mxu0
      %v3909 = vadd.f32 0.0, %v3908
      %v3910 = vpop.f32.mrf.mxu0
      %3911 = vmatprep.mubr.bf16.mxu0 %v3590
      %3912 = vmatmul.mubr.bf16.gmra.mxu0 %v3589
      %v3913 = vpop.f32.mrf.mxu0
      %v3914 = vadd.f32 0.0, %v3913
      %v3915 = vpop.f32.mrf.mxu0
      %v3916 = vpop.f32.mrf.mxu0
      %v3917 = vadd.f32 0.0, %v3916
      %v3918 = vpop.f32.mrf.mxu0
      %3919 = vmatprep.mubr.bf16.mxu0 %v3593
      %3920 = vmatmul.mubr.bf16.gmra.mxu0 %v3592
      %v3921 = vpop.f32.mrf.mxu0
      %v3922 = vadd.f32 0.0, %v3921
      %v3923 = vpop.f32.mrf.mxu0
      %v3924 = vpop.f32.mrf.mxu0
      %v3925 = vadd.f32 0.0, %v3924
      %v3926 = vpop.f32.mrf.mxu0
      %3927 = vmatprep.mubr.bf16.mxu0 %v3596
      %3928 = vmatmul.mubr.bf16.gmra.mxu0 %v3595
      %v3929 = vpop.f32.mrf.mxu0
      %v3930 = vadd.f32 0.0, %v3929
      %v3931 = vpop.f32.mrf.mxu0
      %v3932 = vpop.f32.mrf.mxu0
      %v3933 = vadd.f32 0.0, %v3932
      %v3934 = vpop.f32.mrf.mxu0
      %3935 = vmatprep.mubr.bf16.mxu0 %v3599
      %3936 = vmatmul.mubr.bf16.gmra.mxu0 %v3598
      %v3937 = vpop.f32.mrf.mxu0
      %v3938 = vadd.f32 0.0, %v3937
      %v3939 = vpop.f32.mrf.mxu0
      %v3940 = vpop.f32.mrf.mxu0
      %v3941 = vadd.f32 0.0, %v3940
      %v3942 = vpop.f32.mrf.mxu0
      %3943 = vmatprep.mubr.bf16.mxu0 %v3602
      %3944 = vmatmul.mubr.bf16.gmra.mxu0 %v3601
      %v3945 = vpop.f32.mrf.mxu0
      %v3946 = vadd.f32 0.0, %v3945
      %v3947 = vpop.f32.mrf.mxu0
      %v3948 = vpop.f32.mrf.mxu0
      %v3949 = vadd.f32 0.0, %v3948
      %v3950 = vpop.f32.mrf.mxu0
      %3951 = vmatprep.mubr.bf16.mxu0 %v3605
      %3952 = vmatmul.mubr.bf16.gmra.mxu0 %v3604
      %v3953 = vpop.f32.mrf.mxu0
      %v3954 = vadd.f32 0.0, %v3953
      %v3955 = vpop.f32.mrf.mxu0
      %v3956 = vpop.f32.mrf.mxu0
      %v3957 = vadd.f32 0.0, %v3956
      %v3958 = vpop.f32.mrf.mxu0
      %3959 = vdwg.mxu0
      %3960 = vmatprep.subr.bf16.mxu0 0
      %3961 = vmatpush1.bf16.msra.mxu0 %v3774
      %3962 = vmatprep.subr.bf16.mxu0 0
      %3963 = vmatpush1.bf16.msra.mxu0 %v3773
      %3964 = vmatprep.subr.bf16.mxu0 0
      %3965 = vmatpush1.bf16.msra.mxu0 %v3772
      %3966 = vmatprep.subr.bf16.mxu0 0
      %3967 = vmatpush1.bf16.msra.mxu0 %v3771
      %3968 = vmatprep.subr.bf16.mxu0 0
      %3969 = vmatpush1.bf16.msra.mxu0 %v3770
      %3970 = vmatprep.subr.bf16.mxu0 0
      %3971 = vmatpush1.bf16.msra.mxu0 %v3769
      %3972 = vmatprep.subr.bf16.mxu0 0
      %3973 = vmatpush1.bf16.msra.mxu0 %v3768
      %3974 = vmatprep.subr.bf16.mxu0 0
      %3975 = vmatpush1.bf16.msra.mxu0 %v3767
      %3976 = vmatprep.subr.bf16.mxu0 0
      %3977 = vmatpush2.bf16.msra.mxu0 0
      %3978 = vmatprep.subr.bf16.mxu0 0
      %3979 = vmatpush2.bf16.msra.mxu0 0
      %3980 = vmatprep.subr.bf16.mxu0 0
      %3981 = vmatpush2.bf16.msra.mxu0 0
      %3982 = vmatprep.subr.bf16.mxu0 0
      %3983 = vmatpush2.bf16.msra.mxu0 0
      %3984 = vmatprep.subr.bf16.mxu0 0
      %3985 = vmatpush2.bf16.msra.mxu0 0
      %3986 = vmatprep.subr.bf16.mxu0 0
      %3987 = vmatpush2.bf16.msra.mxu0 0
      %3988 = vmatprep.subr.bf16.mxu0 0
      %3989 = vmatpush2.bf16.msra.mxu0 0
      %3990 = vmatprep.subr.bf16.mxu0 0
      %3991 = vmatpush2.bf16.msra.mxu0 0
      %3992 = vmatprep.mubr.bf16.mxu0 0
      %3993 = vmatmul.mubr.bf16.gmra.mxu0 %v3561
      %v3994 = vpop.f32.mrf.mxu0
      %v3995 = vadd.f32 %v3834, %v3994
      %v3996 = vpop.f32.mrf.mxu0
      %v3997 = vpop.f32.mrf.mxu0
      %v3998 = vadd.f32 %v3837, %v3997
      %v3999 = vpop.f32.mrf.mxu0
      %4000 = vmatprep.mubr.bf16.mxu0 0
      %4001 = vmatmul.mubr.bf16.gmra.mxu0 %v3564
      %v4002 = vpop.f32.mrf.mxu0
      %v4003 = vadd.f32 %v3842, %v4002
      %v4004 = vpop.f32.mrf.mxu0
      %v4005 = vpop.f32.mrf.mxu0
      %v4006 = vadd.f32 %v3845, %v4005
      %v4007 = vpop.f32.mrf.mxu0
      %4008 = vmatprep.mubr.bf16.mxu0 0
      %4009 = vmatmul.mubr.bf16.gmra.mxu0 %v3567
      %v4010 = vpop.f32.mrf.mxu0
      %v4011 = vadd.f32 %v3850, %v4010
      %v4012 = vpop.f32.mrf.mxu0
      %v4013 = vpop.f32.mrf.mxu0
      %v4014 = vadd.f32 %v3853, %v4013
      %v4015 = vpop.f32.mrf.mxu0
      %4016 = vmatprep.mubr.bf16.mxu0 0
      %4017 = vmatmul.mubr.bf16.gmra.mxu0 %v3570
      %v4018 = vpop.f32.mrf.mxu0
      %v4019 = vadd.f32 %v3858, %v4018
      %v4020 = vpop.f32.mrf.mxu0
      %v4021 = vpop.f32.mrf.mxu0
      %v4022 = vadd.f32 %v3861, %v4021
      %v4023 = vpop.f32.mrf.mxu0
      %4024 = vmatprep.mubr.bf16.mxu0 0
      %4025 = vmatmul.mubr.bf16.gmra.mxu0 %v3573
      %v4026 = vpop.f32.mrf.mxu0
      %v4027 = vadd.f32 %v3866, %v4026
      %v4028 = vpop.f32.mrf.mxu0
      %v4029 = vpop.f32.mrf.mxu0
      %v4030 = vadd.f32 %v3869, %v4029
      %v4031 = vpop.f32.mrf.mxu0
      %4032 = vmatprep.mubr.bf16.mxu0 0
      %4033 = vmatmul.mubr.bf16.gmra.mxu0 %v3576
      %v4034 = vpop.f32.mrf.mxu0
      %v4035 = vadd.f32 %v3874, %v4034
      %v4036 = vpop.f32.mrf.mxu0
      %v4037 = vpop.f32.mrf.mxu0
      %v4038 = vadd.f32 %v3877, %v4037
      %v4039 = vpop.f32.mrf.mxu0
      %4040 = vmatprep.mubr.bf16.mxu0 0
      %4041 = vmatmul.mubr.bf16.gmra.mxu0 %v3579
      %v4042 = vpop.f32.mrf.mxu0
      %v4043 = vadd.f32 %v3882, %v4042
      %v4044 = vpop.f32.mrf.mxu0
      %v4045 = vpop.f32.mrf.mxu0
      %v4046 = vadd.f32 %v3885, %v4045
      %v4047 = vpop.f32.mrf.mxu0
      %4048 = vmatprep.mubr.bf16.mxu0 0
      %4049 = vmatmul.mubr.bf16.gmra.mxu0 %v3582
      %v4050 = vpop.f32.mrf.mxu0
      %v4051 = vadd.f32 %v3890, %v4050
      %v4052 = vpop.f32.mrf.mxu0
      %v4053 = vpop.f32.mrf.mxu0
      %v4054 = vadd.f32 %v3893, %v4053
      %v4055 = vpop.f32.mrf.mxu0
      %4056 = vmatprep.mubr.bf16.mxu0 0
      %4057 = vmatmul.mubr.bf16.gmra.mxu0 %v3585
      %v4058 = vpop.f32.mrf.mxu0
      %v4059 = vadd.f32 %v3898, %v4058
      %v4060 = vpop.f32.mrf.mxu0
      %v4061 = vpop.f32.mrf.mxu0
      %v4062 = vadd.f32 %v3901, %v4061
      %v4063 = vpop.f32.mrf.mxu0
      %4064 = vmatprep.mubr.bf16.mxu0 0
      %4065 = vmatmul.mubr.bf16.gmra.mxu0 %v3588
      %v4066 = vpop.f32.mrf.mxu0
      %v4067 = vadd.f32 %v3906, %v4066
      %v4068 = vpop.f32.mrf.mxu0
      %v4069 = vpop.f32.mrf.mxu0
      %v4070 = vadd.f32 %v3909, %v4069
      %v4071 = vpop.f32.mrf.mxu0
      %4072 = vmatprep.mubr.bf16.mxu0 0
      %4073 = vmatmul.mubr.bf16.gmra.mxu0 %v3591
      %v4074 = vpop.f32.mrf.mxu0
      %v4075 = vadd.f32 %v3914, %v4074
      %v4076 = vpop.f32.mrf.mxu0
      %v4077 = vpop.f32.mrf.mxu0
      %v4078 = vadd.f32 %v3917, %v4077
      %v4079 = vpop.f32.mrf.mxu0
      %4080 = vmatprep.mubr.bf16.mxu0 0
      %4081 = vmatmul.mubr.bf16.gmra.mxu0 %v3594
      %v4082 = vpop.f32.mrf.mxu0
      %v4083 = vadd.f32 %v3922, %v4082
      %v4084 = vpop.f32.mrf.mxu0
      %v4085 = vpop.f32.mrf.mxu0
      %v4086 = vadd.f32 %v3925, %v4085
      %v4087 = vpop.f32.mrf.mxu0
      %4088 = vmatprep.mubr.bf16.mxu0 0
      %4089 = vmatmul.mubr.bf16.gmra.mxu0 %v3597
      %v4090 = vpop.f32.mrf.mxu0
      %v4091 = vadd.f32 %v3930, %v4090
      %v4092 = vpop.f32.mrf.mxu0
      %v4093 = vpop.f32.mrf.mxu0
      %v4094 = vadd.f32 %v3933, %v4093
      %v4095 = vpop.f32.mrf.mxu0
      %4096 = vmatprep.mubr.bf16.mxu0 0
      %4097 = vmatmul.mubr.bf16.gmra.mxu0 %v3600
      %v4098 = vpop.f32.mrf.mxu0
      %v4099 = vadd.f32 %v3938, %v4098
      %v4100 = vpop.f32.mrf.mxu0
      %v4101 = vpop.f32.mrf.mxu0
      %v4102 = vadd.f32 %v3941, %v4101
      %v4103 = vpop.f32.mrf.mxu0
      %4104 = vmatprep.mubr.bf16.mxu0 0
      %4105 = vmatmul.mubr.bf16.gmra.mxu0 %v3603
      %v4106 = vpop.f32.mrf.mxu0
      %v4107 = vadd.f32 %v3946, %v4106
      %v4108 = vpop.f32.mrf.mxu0
      %v4109 = vpop.f32.mrf.mxu0
      %v4110 = vadd.f32 %v3949, %v4109
      %v4111 = vpop.f32.mrf.mxu0
      %4112 = vmatprep.mubr.bf16.mxu0 0
      %4113 = vmatmul.mubr.bf16.gmra.mxu0 %v3606
      %v4114 = vpop.f32.mrf.mxu0
      %v4115 = vadd.f32 %v3954, %v4114
      %v4116 = vpop.f32.mrf.mxu0
      %v4117 = vpop.f32.mrf.mxu0
      %v4118 = vadd.f32 %v3957, %v4117
      %v4119 = vpop.f32.mrf.mxu0
      %4120 = vdwg.mxu0
      %v4121 = vadd.f32 %v3159, %v3995
      %v4122 = vadd.f32 %v3162, %v3998
      %v4123 = vadd.f32 %v3167, %v4003
      %v4124 = vadd.f32 %v3170, %v4006
      %v4125 = vadd.f32 %v3175, %v4011
      %v4126 = vadd.f32 %v3178, %v4014
      %v4127 = vadd.f32 %v3183, %v4019
      %v4128 = vadd.f32 %v3186, %v4022
      %v4129 = vadd.f32 %v3191, %v4027
      %v4130 = vadd.f32 %v3194, %v4030
      %v4131 = vadd.f32 %v3199, %v4035
      %v4132 = vadd.f32 %v3202, %v4038
      %v4133 = vadd.f32 %v3207, %v4043
      %v4134 = vadd.f32 %v3210, %v4046
      %v4135 = vadd.f32 %v3215, %v4051
      %v4136 = vadd.f32 %v3218, %v4054
      %v4137 = vadd.f32 %v3223, %v4059
      %v4138 = vadd.f32 %v3226, %v4062
      %v4139 = vadd.f32 %v3231, %v4067
      %v4140 = vadd.f32 %v3234, %v4070
      %v4141 = vadd.f32 %v3239, %v4075
      %v4142 = vadd.f32 %v3242, %v4078
      %v4143 = vadd.f32 %v3247, %v4083
      %v4144 = vadd.f32 %v3250, %v4086
      %v4145 = vadd.f32 %v3255, %v4091
      %v4146 = vadd.f32 %v3258, %v4094
      %v4147 = vadd.f32 %v3263, %v4099
      %v4148 = vadd.f32 %v3266, %v4102
      %v4149 = vadd.f32 %v3271, %v4107
      %v4150 = vadd.f32 %v3274, %v4110
      %v4151 = vadd.f32 %v3279, %v4115
      %v4152 = vadd.f32 %v3282, %v4118
      %v4153 = vld [vmem:[%s5] sm:$0x1]
      %v4155 = vlaneseq
      %v4156 = vshrl.u32 %v4155, 7
      %v4157 = vsub.s32 0, %v4156
      %v4158 = vrot.slane %v4153, %v4157
      %v4160 = vmul.f32 %v4121, %v4158
      %v4161 = vmul.f32 %v4122, %v4158
      %v4162 = vmul.f32 %v4123, %v4158
      %v4163 = vmul.f32 %v4124, %v4158
      %v4164 = vmul.f32 %v4125, %v4158
      %v4165 = vmul.f32 %v4126, %v4158
      %v4166 = vmul.f32 %v4127, %v4158
      %v4167 = vmul.f32 %v4128, %v4158
      %v4168 = vmul.f32 %v4129, %v4158
      %v4169 = vmul.f32 %v4130, %v4158
      %v4170 = vmul.f32 %v4131, %v4158
      %v4171 = vmul.f32 %v4132, %v4158
      %v4172 = vmul.f32 %v4133, %v4158
      %v4173 = vmul.f32 %v4134, %v4158
      %v4174 = vmul.f32 %v4135, %v4158
      %v4175 = vmul.f32 %v4136, %v4158
      %v4176 = vmul.f32 %v4137, %v4158
      %v4177 = vmul.f32 %v4138, %v4158
      %v4178 = vmul.f32 %v4139, %v4158
      %v4179 = vmul.f32 %v4140, %v4158
      %v4180 = vmul.f32 %v4141, %v4158
      %v4181 = vmul.f32 %v4142, %v4158
      %v4182 = vmul.f32 %v4143, %v4158
      %v4183 = vmul.f32 %v4144, %v4158
      %v4184 = vmul.f32 %v4145, %v4158
      %v4185 = vmul.f32 %v4146, %v4158
      %v4186 = vmul.f32 %v4147, %v4158
      %v4187 = vmul.f32 %v4148, %v4158
      %v4188 = vmul.f32 %v4149, %v4158
      %v4189 = vmul.f32 %v4150, %v4158
      %v4190 = vmul.f32 %v4151, %v4158
      %v4191 = vmul.f32 %v4152, %v4158
      %v4192 = vld [vmem:[%s6] sm:$0x1]
      %v4194 = vlaneseq
      %v4195 = vshrl.u32 %v4194, 7
      %v4196 = vsub.s32 0, %v4195
      %v4197 = vrot.slane %v4192, %v4196
      %v4199 = vadd.f32 %v4160, %v4197
      %v4200 = vadd.f32 %v4161, %v4197
      %v4201 = vadd.f32 %v4162, %v4197
      %v4202 = vadd.f32 %v4163, %v4197
      %v4203 = vadd.f32 %v4164, %v4197
      %v4204 = vadd.f32 %v4165, %v4197
      %v4205 = vadd.f32 %v4166, %v4197
      %v4206 = vadd.f32 %v4167, %v4197
      %v4207 = vadd.f32 %v4168, %v4197
      %v4208 = vadd.f32 %v4169, %v4197
      %v4209 = vadd.f32 %v4170, %v4197
      %v4210 = vadd.f32 %v4171, %v4197
      %v4211 = vadd.f32 %v4172, %v4197
      %v4212 = vadd.f32 %v4173, %v4197
      %v4213 = vadd.f32 %v4174, %v4197
      %v4214 = vadd.f32 %v4175, %v4197
      %v4215 = vadd.f32 %v4176, %v4197
      %v4216 = vadd.f32 %v4177, %v4197
      %v4217 = vadd.f32 %v4178, %v4197
      %v4218 = vadd.f32 %v4179, %v4197
      %v4219 = vadd.f32 %v4180, %v4197
      %v4220 = vadd.f32 %v4181, %v4197
      %v4221 = vadd.f32 %v4182, %v4197
      %v4222 = vadd.f32 %v4183, %v4197
      %v4223 = vadd.f32 %v4184, %v4197
      %v4224 = vadd.f32 %v4185, %v4197
      %v4225 = vadd.f32 %v4186, %v4197
      %v4226 = vadd.f32 %v4187, %v4197
      %v4227 = vadd.f32 %v4188, %v4197
      %v4228 = vadd.f32 %v4189, %v4197
      %v4229 = vadd.f32 %v4190, %v4197
      %v4230 = vadd.f32 %v4191, %v4197
      %v4231 = vmax.f32 %v4199, 0.0
      %v4232 = vmax.f32 %v4200, 0.0
      %v4233 = vmax.f32 %v4201, 0.0
      %v4234 = vmax.f32 %v4202, 0.0
      %v4235 = vmax.f32 %v4203, 0.0
      %v4236 = vmax.f32 %v4204, 0.0
      %v4237 = vmax.f32 %v4205, 0.0
      %v4238 = vmax.f32 %v4206, 0.0
      %v4239 = vmax.f32 %v4207, 0.0
      %v4240 = vmax.f32 %v4208, 0.0
      %v4241 = vmax.f32 %v4209, 0.0
      %v4242 = vmax.f32 %v4210, 0.0
      %v4243 = vmax.f32 %v4211, 0.0
      %v4244 = vmax.f32 %v4212, 0.0
      %v4245 = vmax.f32 %v4213, 0.0
      %v4246 = vmax.f32 %v4214, 0.0
      %v4247 = vmax.f32 %v4215, 0.0
      %v4248 = vmax.f32 %v4216, 0.0
      %v4249 = vmax.f32 %v4217, 0.0
      %v4250 = vmax.f32 %v4218, 0.0
      %v4251 = vmax.f32 %v4219, 0.0
      %v4252 = vmax.f32 %v4220, 0.0
      %v4253 = vmax.f32 %v4221, 0.0
      %v4254 = vmax.f32 %v4222, 0.0
      %v4255 = vmax.f32 %v4223, 0.0
      %v4256 = vmax.f32 %v4224, 0.0
      %v4257 = vmax.f32 %v4225, 0.0
      %v4258 = vmax.f32 %v4226, 0.0
      %v4259 = vmax.f32 %v4227, 0.0
      %v4260 = vmax.f32 %v4228, 0.0
      %v4261 = vmax.f32 %v4229, 0.0
      %v4262 = vmax.f32 %v4230, 0.0
      %v4263 = vpack.c.bf16 %v4232, %v4231
      %v4264 = vpack.c.bf16 %v4234, %v4233
      %v4265 = vpack.c.bf16 %v4236, %v4235
      %v4266 = vpack.c.bf16 %v4238, %v4237
      %v4267 = vpack.c.bf16 %v4240, %v4239
      %v4268 = vpack.c.bf16 %v4242, %v4241
      %v4269 = vpack.c.bf16 %v4244, %v4243
      %v4270 = vpack.c.bf16 %v4246, %v4245
      %v4271 = vpack.c.bf16 %v4248, %v4247
      %v4272 = vpack.c.bf16 %v4250, %v4249
      %v4273 = vpack.c.bf16 %v4252, %v4251
      %v4274 = vpack.c.bf16 %v4254, %v4253
      %v4275 = vpack.c.bf16 %v4256, %v4255
      %v4276 = vpack.c.bf16 %v4258, %v4257
      %v4277 = vpack.c.bf16 %v4260, %v4259
      %v4278 = vpack.c.bf16 %v4262, %v4261
      %v4295 = vunpack.c.l.b16 %v4263
      %v4296 = vunpack.c.h.b16 %v4263
      %v4297 = vunpack.c.l.b16 %v4264
      %v4298 = vunpack.c.h.b16 %v4264
      %v4299 = vunpack.c.l.b16 %v4265
      %v4300 = vunpack.c.h.b16 %v4265
      %v4301 = vunpack.c.l.b16 %v4266
      %v4302 = vunpack.c.h.b16 %v4266
      %v4303 = vunpack.c.l.b16 %v4267
      %v4304 = vunpack.c.h.b16 %v4267
      %v4305 = vunpack.c.l.b16 %v4268
      %v4306 = vunpack.c.h.b16 %v4268
      %v4307 = vunpack.c.l.b16 %v4269
      %v4308 = vunpack.c.h.b16 %v4269
      %v4309 = vunpack.c.l.b16 %v4270
      %v4310 = vunpack.c.h.b16 %v4270
      %v4311 = vunpack.c.l.b16 %v4271
      %v4312 = vunpack.c.h.b16 %v4271
      %v4313 = vunpack.c.l.b16 %v4272
      %v4314 = vunpack.c.h.b16 %v4272
      %v4315 = vunpack.c.l.b16 %v4273
      %v4316 = vunpack.c.h.b16 %v4273
      %v4317 = vunpack.c.l.b16 %v4274
      %v4318 = vunpack.c.h.b16 %v4274
      %v4319 = vunpack.c.l.b16 %v4275
      %v4320 = vunpack.c.h.b16 %v4275
      %v4321 = vunpack.c.l.b16 %v4276
      %v4322 = vunpack.c.h.b16 %v4276
      %v4323 = vunpack.c.l.b16 %v4277
      %v4324 = vunpack.c.h.b16 %v4277
      %v4325 = vunpack.c.l.b16 %v4278
      %v4326 = vunpack.c.h.b16 %v4278
      %v4327 = vpack.c.b16 %v4295, %v4295
      %v4328 = vpack.c.b16 %v4296, %v4296
      %v4329 = vpack.c.b16 %v4297, %v4297
      %v4330 = vpack.c.b16 %v4298, %v4298
      %v4331 = vpack.c.b16 %v4299, %v4299
      %v4332 = vpack.c.b16 %v4300, %v4300
      %v4333 = vpack.c.b16 %v4301, %v4301
      %v4334 = vpack.c.b16 %v4302, %v4302
      %v4335 = vpack.c.b16 %v4303, %v4303
      %v4336 = vpack.c.b16 %v4304, %v4304
      %v4337 = vpack.c.b16 %v4305, %v4305
      %v4338 = vpack.c.b16 %v4306, %v4306
      %v4339 = vpack.c.b16 %v4307, %v4307
      %v4340 = vpack.c.b16 %v4308, %v4308
      %v4341 = vpack.c.b16 %v4309, %v4309
      %v4342 = vpack.c.b16 %v4310, %v4310
      %v4343 = vpack.c.b16 %v4311, %v4311
      %v4344 = vpack.c.b16 %v4312, %v4312
      %v4345 = vpack.c.b16 %v4313, %v4313
      %v4346 = vpack.c.b16 %v4314, %v4314
      %v4347 = vpack.c.b16 %v4315, %v4315
      %v4348 = vpack.c.b16 %v4316, %v4316
      %v4349 = vpack.c.b16 %v4317, %v4317
      %v4350 = vpack.c.b16 %v4318, %v4318
      %v4351 = vpack.c.b16 %v4319, %v4319
      %v4352 = vpack.c.b16 %v4320, %v4320
      %v4353 = vpack.c.b16 %v4321, %v4321
      %v4354 = vpack.c.b16 %v4322, %v4322
      %v4355 = vpack.c.b16 %v4323, %v4323
      %v4356 = vpack.c.b16 %v4324, %v4324
      %v4357 = vpack.c.b16 %v4325, %v4325
      %v4358 = vpack.c.b16 %v4326, %v4326
      %4391 = vst [vmem:[%s278] sm:$0xf] %v4327
      %4392 = vst [vmem:[%s278 + $0x4] sm:$0xf] %v4328
      %4393 = vst [vmem:[%s278 + $0x8] sm:$0xf] %v4329
      %4394 = vst [vmem:[%s278 + $0xc] sm:$0xf] %v4330
      %4395 = vst [vmem:[%s278 + $0x10] sm:$0xf] %v4331
      %4396 = vst [vmem:[%s278 + $0x14] sm:$0xf] %v4332
      %4397 = vst [vmem:[%s278 + $0x18] sm:$0xf] %v4333
      %4398 = vst [vmem:[%s278 + $0x1c] sm:$0xf] %v4334
      %4399 = vst [vmem:[%s278 + $0x20] sm:$0xf] %v4335
      %4400 = vst [vmem:[%s278 + $0x24] sm:$0xf] %v4336
      %4401 = vst [vmem:[%s278 + $0x28] sm:$0xf] %v4337
      %4402 = vst [vmem:[%s278 + $0x2c] sm:$0xf] %v4338
      %4403 = vst [vmem:[%s278 + $0x30] sm:$0xf] %v4339
      %4404 = vst [vmem:[%s278 + $0x34] sm:$0xf] %v4340
      %4405 = vst [vmem:[%s278 + $0x38] sm:$0xf] %v4341
      %4406 = vst [vmem:[%s278 + $0x3c] sm:$0xf] %v4342
      %4407 = vst [vmem:[%s278 + $0x40] sm:$0xf] %v4343
      %4408 = vst [vmem:[%s278 + $0x44] sm:$0xf] %v4344
      %4409 = vst [vmem:[%s278 + $0x48] sm:$0xf] %v4345
      %4410 = vst [vmem:[%s278 + $0x4c] sm:$0xf] %v4346
      %4411 = vst [vmem:[%s278 + $0x50] sm:$0xf] %v4347
      %4412 = vst [vmem:[%s278 + $0x54] sm:$0xf] %v4348
      %4413 = vst [vmem:[%s278 + $0x58] sm:$0xf] %v4349
      %4414 = vst [vmem:[%s278 + $0x5c] sm:$0xf] %v4350
      %4415 = vst [vmem:[%s278 + $0x60] sm:$0xf] %v4351
      %4416 = vst [vmem:[%s278 + $0x64] sm:$0xf] %v4352
      %4417 = vst [vmem:[%s278 + $0x68] sm:$0xf] %v4353
      %4418 = vst [vmem:[%s278 + $0x6c] sm:$0xf] %v4354
      %4419 = vst [vmem:[%s278 + $0x70] sm:$0xf] %v4355
      %4420 = vst [vmem:[%s278 + $0x74] sm:$0xf] %v4356
      %4421 = vst [vmem:[%s278 + $0x78] sm:$0xf] %v4357
      %4422 = vst [vmem:[%s278 + $0x7c] sm:$0xf] %v4358
      %p4423 = scmp.lt.s32.totalorder %s18, 1
      %s4424 = scalar_select %p4423, %s18, 1
      %s4425 = smul.addr %s4424, 32
      %s4426 = smul.addr %s4425, 4
      %s4427 = scalar_lea.vmem %s7, %s4426
      // Predicated region
      $region49: #{bottleneck_forward.2} parent=47 // pred_check
        %p4428 = pneg %p188
      $region50: #{bottleneck_forward.2} parent=47 // pred_check_branch
        %4430 = sbr.rel (%p4428) target = $region52
      $region51: #{bottleneck_forward.2} parent=47 // pred_region
        _
      $region52: #{bottleneck_forward.2} parent=47 // pred_fallthru
        _
    $region48: #{bottleneck_forward.2} parent=5 // pred_fallthru
      _
    %p4431 = scmp.le.s32.totalorder 2, %s13
    // Predicated region
    $region53: #{bottleneck_forward.2} parent=5 // pred_check
      %p4432 = pneg %p4431
    $region54: #{bottleneck_forward.2} parent=5 // pred_check_branch
      %4434 = sbr.rel (%p4432) target = $region56
    $region55: #{bottleneck_forward.2} parent=5 // pred_region
      %s4435 = ssub.s32 %s13, 2
      // Predicated region
      $region57: #{bottleneck_forward.2} parent=55 // pred_check
        %p4436 = pneg %p194
      $region58: #{bottleneck_forward.2} parent=55 // pred_check_branch
        %4438 = sbr.rel (%p4436) target = $region60
      $region59: #{bottleneck_forward.2} parent=55 // pred_region
        %p4439 = scmp.lt.s32.totalorder %s19, 1
        %s4440 = scalar_select %p4439, %s19, 1
        %s4441 = smul.addr %s4440, 32
        %s4442 = smul.addr %s4441, 4
        %s4443 = scalar_lea.vmem %s7, %s4442
      $region60: #{bottleneck_forward.2} parent=55 // pred_fallthru
        _
    $region56: #{bottleneck_forward.2} parent=5 // pred_fallthru
      _
  $region6: #{bottleneck_forward.2} parent=0 // loop_footer
    %s17 = sadd.s32 1, %s13
  $region7: #{bottleneck_forward.2} parent=0 // loop_footer_branch
    %12 = sbr.rel target = $region3
  $region8: #{bottleneck_forward.2} parent=0 // loop_exit
    _

</llo_original>
